<compile_context>
chip_gen: v7x
topology: tpu7x:2x2x1
jax: 0.10.0
libtpu: 0.0.40
codegen_flags: <defaults>
</compile_context>

<pallas_src>
import functools

import jax
import jax.numpy as jnp
from jax.experimental import pallas as pl
from jax.experimental.pallas import tpu as pltpu

BN_EPS = 1e-5


def _round_up(v, m):
    return (v + m - 1) // m * m


def _conv_stats_kernel(x_ref, w_ref, mask_ref, conv_ref, sum_ref, sumsq_ref, *,
                       k, hw, w_stride, out_len):
    # x_ref    : (1, Cin, Lp)  one sample, flattened (d*H*W + h*W + w) axis, zero padded
    # w_ref    : (k^3, Cout, Cin)  tap-major weights
    # mask_ref : (out_len, 1)  1.0 at valid output positions (do<Do, ho<Ho, wo<Wo)
    # conv_ref : (1, Cout, out_len)  transposed (lane-dense) conv result (padded grid)
    # sum_ref / sumsq_ref : (1, Cout, 1)  per-sample partial BN statistics
    x = x_ref[0]                                      # (Cin, Lp)
    acc = None
    for t in range(k * k * k):                        # 27 shifted matmuls, f32 accumulate
        kd, kh, kw = t // (k * k), (t // k) % k, t % k
        off = kd * hw + kh * w_stride + kw
        contrib = jnp.dot(w_ref[t], x[:, off:off + out_len],
                          preferred_element_type=jnp.float32)   # (Cout, out_len)
        acc = contrib if acc is None else acc + contrib
    conv_ref[0] = acc
    # Per-channel masked sums via the MXU (reduction along the lane axis).
    mask = mask_ref[...]                              # (out_len, 1) f32
    sum_ref[0] = jnp.dot(acc, mask, preferred_element_type=jnp.float32)
    sumsq_ref[0] = jnp.dot(acc * acc, mask, preferred_element_type=jnp.float32)


def _bn_relu_kernel(conv_ref, scale_ref, shift_ref, o_ref):
    # conv_ref: (1, Cout, L); scale/shift: (Cout, 1) loaded once, lane-broadcast
    y = conv_ref[0] * scale_ref[...] + shift_ref[...]
    o_ref[0] = jnp.maximum(y, 0.0).astype(o_ref.dtype)


@functools.partial(jax.jit, static_argnames=("kernel", "compute_dtype"))
def conv_unit_forward(x, weight, gamma, beta, kernel=3, compute_dtype=jnp.float32):
    """x: (N, Cin, D, H, W) f32; weight: (Cout, Cin, k, k, k) f32 (PyTorch layout).
    Returns (N, Cout, Do, Ho, Wo) f32.  compute_dtype=jnp.bfloat16 halves HBM/VMEM
    traffic of x on v6e/v7x (BN statistics and accumulation stay f32)."""
    n, cin, d, h, w = x.shape
    cout = weight.shape[0]
    k = kernel
    do, ho, wo = d - k + 1, h - k + 1, w - k + 1
    hw = h * w
    out_len = d * hw                                  # padded output grid (full spatial)
    shift_max = (k - 1) * (hw + w + 1)
    lp = _round_up(out_len + shift_max, 128)          # lane-aligned padded input length

    # Flatten spatial axis (free reshape) + small zero pad: HBM traffic ~= |x|.
    xf = jnp.pad(x.reshape(n, cin, out_len).astype(compute_dtype),
                 ((0, 0), (0, 0), (0, lp - out_len)))
    # (Cout, Cin, kd, kh, kw) -> (k^3, Cout, Cin), tap index t = kd*k^2 + kh*k + kw.
    w27 = weight.reshape(cout, cin, k ** 3).transpose(2, 0, 1).astype(compute_dtype)

    # Validity mask over the padded output grid (invalid positions hold garbage
    # partial sums; they are masked out of the BN stats and sliced away at the end).
    q = jnp.arange(out_len)
    qd, qr = q // hw, q % hw
    mask = (((qd < do) & ((qr // w) < ho) & ((qr % w) < wo))
            .astype(jnp.float32).reshape(out_len, 1))

    kern = functools.partial(_conv_stats_kernel, k=k, hw=hw, w_stride=w,
                             out_len=out_len)
    itemsize = jnp.dtype(compute_dtype).itemsize
    flops = 2 * n * out_len * cout * cin * (k ** 3)
    bytes_accessed = (xf.size * itemsize + w27.size * itemsize + mask.size * 4
                      + n * cout * out_len * 4 + 2 * n * cout * 4)

    conv_out, psum, psumsq = pl.pallas_call(
        kern,
        out_shape=(jax.ShapeDtypeStruct((n, cout, out_len), jnp.float32),
                   jax.ShapeDtypeStruct((n, cout, 1), jnp.float32),
                   jax.ShapeDtypeStruct((n, cout, 1), jnp.float32)),
        grid=(n,),
        in_specs=[pl.BlockSpec((1, cin, lp), lambda i: (i, 0, 0)),
                  pl.BlockSpec((k ** 3, cout, cin), lambda i: (0, 0, 0)),
                  pl.BlockSpec((out_len, 1), lambda i: (0, 0))],
        out_specs=(pl.BlockSpec((1, cout, out_len), lambda i: (i, 0, 0)),
                   pl.BlockSpec((1, cout, 1), lambda i: (i, 0, 0)),
                   pl.BlockSpec((1, cout, 1), lambda i: (i, 0, 0))),
        compiler_params=pltpu.CompilerParams(
            dimension_semantics=("parallel",),
            vmem_limit_bytes=32 * 1024 * 1024),
        cost_estimate=pl.CostEstimate(flops=flops, transcendentals=0,
                                      bytes_accessed=bytes_accessed),
    )(xf, w27, mask)

    # Tiny cross-batch merge of BN statistics (global batch stats, biased variance).
    count = jnp.float32(n * do * ho * wo)
    mean = jnp.sum(psum[:, :, 0], axis=0) / count          # (Cout,)
    ex2 = jnp.sum(psumsq[:, :, 0], axis=0) / count
    var = jnp.maximum(ex2 - mean * mean, 0.0)               # E[x^2]-mean^2, f32 accum
    inv = jax.lax.rsqrt(var + BN_EPS)
    scale = (gamma.astype(jnp.float32) * inv).reshape(cout, 1)
    shift = (beta.astype(jnp.float32) - mean * gamma.astype(jnp.float32) * inv
             ).reshape(cout, 1)

    y_pad = pl.pallas_call(
        _bn_relu_kernel,
        out_shape=jax.ShapeDtypeStruct((n, cout, out_len), jnp.float32),
        grid=(n,),
        in_specs=[pl.BlockSpec((1, cout, out_len), lambda i: (i, 0, 0)),
                  pl.BlockSpec((cout, 1), lambda i: (0, 0)),
                  pl.BlockSpec((cout, 1), lambda i: (0, 0))],
        out_specs=pl.BlockSpec((1, cout, out_len), lambda i: (i, 0, 0)),
        compiler_params=pltpu.CompilerParams(
            dimension_semantics=("parallel",),
            vmem_limit_bytes=32 * 1024 * 1024),
        cost_estimate=pl.CostEstimate(flops=3 * n * cout * out_len,
                                      transcendentals=0,
                                      bytes_accessed=2 * n * cout * out_len * 4),
    )(conv_out, scale, shift)

    # (N, Cout, D*H*W) -> NCDHW, keep the valid (Do, Ho, Wo) window.
    return y_pad.reshape(n, cout, d, h, w)[:, :, :do, :ho, :wo]


def _reference(x, weight, gamma, beta):
    # Pure-JAX reference: Conv3d(valid) -> BatchNorm3d (training batch stats) -> ReLU.
    dn = jax.lax.conv_dimension_numbers(x.shape, weight.shape,
                                        ("NCDHW", "OIDHW", "NCDHW"))
    conv = jax.lax.conv_general_dilated(x, weight, (1, 1, 1), "VALID",
                                        dimension_numbers=dn,
                                        precision=jax.lax.Precision.HIGHEST)
    mean = conv.mean(axis=(0, 2, 3, 4), keepdims=True)
    var = conv.var(axis=(0, 2, 3, 4), keepdims=True)   # biased
    y = (conv - mean) * jax.lax.rsqrt(var + BN_EPS)
    y = y * gamma.reshape(1, -1, 1, 1, 1) + beta.reshape(1, -1, 1, 1, 1)
    return jnp.maximum(y, 0.0)


if __name__ == "__main__":
    # Module config: ConvUnit(in_size=4, out_size=8, kernel=3)
    in_size, out_size, k = 4, 8, 3
    N, D, H, W = 2, 8, 8, 8

    key = jax.random.PRNGKey(0)
    kx, kw_ = jax.random.split(key)

    x = jax.random.normal(kx, (N, in_size, D, H, W), dtype=jnp.float32)

    # kaiming_normal_ (fan_in, gain=sqrt(2)): std = sqrt(2 / (Cin * k^3))
    fan_in = in_size * k * k * k
    weight = jax.random.normal(kw_, (out_size, in_size, k, k, k),
                               dtype=jnp.float32) * jnp.sqrt(2.0 / fan_in)

    # BatchNorm3d affine params at init: gamma = 1, beta = 0
    gamma = jnp.ones((out_size,), dtype=jnp.float32)
    beta = jnp.zeros((out_size,), dtype=jnp.float32)
    # TODO(synk): BatchNorm3d running_mean/running_var buffer updates (a training-mode
    # side effect) are not modeled; the forward output does not depend on them.

    out = conv_unit_forward(x, weight, gamma, beta, kernel=k)
    jax.block_until_ready(out)
    assert out.shape == (N, out_size, D - k + 1, H - k + 1, W - k + 1)

    ref = _reference(x, weight, gamma, beta)
    assert jnp.allclose(out, ref, rtol=1e-3, atol=1e-3), (
        float(jnp.max(jnp.abs(out - ref))))

    print("KERNEL_OK")
</pallas_src>

<mosaic_0001>
module attributes {stable_mosaic.version = 11 : i64} {
  func.func @_bn_relu_kernel(%arg0: i32, %arg1: memref<1x8x512xf32, #tpu.memory_space<vmem>>, %arg2: memref<8x1xf32, #tpu.memory_space<vmem>>, %arg3: memref<8x1xf32, #tpu.memory_space<vmem>>, %arg4: memref<1x8x512xf32, #tpu.memory_space<vmem>>) attributes {dimension_semantics = [#tpu.dimension_semantics<parallel>], iteration_bounds = array<i64: 2>, scalar_prefetch = 0 : i64, scratch_operands = 0 : i64, tpu.core_type = #tpu.core_type<tc>, window_params = [{transform_indices = @transform_0, window_bounds = array<i64: 1, 8, 512>}, {pipeline_mode = #tpu.pipeline_mode<synchronous>, transform_indices = @transform_1, window_bounds = array<i64: 8, 1>}, {pipeline_mode = #tpu.pipeline_mode<synchronous>, transform_indices = @transform_2, window_bounds = array<i64: 8, 1>}, {transform_indices = @transform_3, window_bounds = array<i64: 1, 8, 512>}]} {
    %c0 = arith.constant 0 : index
    %c0_0 = arith.constant 0 : index
    %c0_1 = arith.constant 0 : index
    %0 = vector.load %arg1[%c0, %c0_0, %c0_1] : memref<1x8x512xf32, #tpu.memory_space<vmem>>, vector<1x8x512xf32>
    %1 = vector.shape_cast %0 : vector<1x8x512xf32> to vector<8x512xf32>
    %c0_2 = arith.constant 0 : index
    %c0_3 = arith.constant 0 : index
    %2 = vector.load %arg2[%c0_2, %c0_3] : memref<8x1xf32, #tpu.memory_space<vmem>>, vector<8x1xf32>
    %3 = vector.broadcast %2 : vector<8x1xf32> to vector<8x512xf32>
    %4 = arith.mulf %1, %3 : vector<8x512xf32>
    %c0_4 = arith.constant 0 : index
    %c0_5 = arith.constant 0 : index
    %5 = vector.load %arg3[%c0_4, %c0_5] : memref<8x1xf32, #tpu.memory_space<vmem>>, vector<8x1xf32>
    %6 = vector.broadcast %5 : vector<8x1xf32> to vector<8x512xf32>
    %7 = arith.addf %4, %6 : vector<8x512xf32>
    %cst = arith.constant 0.000000e+00 : f32
    %8 = vector.broadcast %cst : f32 to vector<8x512xf32>
    %9 = arith.maximumf %7, %8 : vector<8x512xf32>
    %c0_6 = arith.constant 0 : index
    %c0_7 = arith.constant 0 : index
    %c0_8 = arith.constant 0 : index
    %10 = vector.load %arg4[%c0_6, %c0_7, %c0_8] : memref<1x8x512xf32, #tpu.memory_space<vmem>>, vector<1x8x512xf32>
    %11 = vector.shape_cast %10 : vector<1x8x512xf32> to vector<8x512xf32>
    %12 = vector.shape_cast %9 : vector<8x512xf32> to vector<1x8x512xf32>
    tpu.vector_store %arg4[%c0_6, %c0_7, %c0_8], %12 {strides = array<i32>} : memref<1x8x512xf32, #tpu.memory_space<vmem>>, vector<1x8x512xf32>,
    return
  }
  func.func @transform_0(%arg0: i32) -> (i32, i32, i32) {
    %c0_i32 = arith.constant 0 : i32
    %c0_i32_0 = arith.constant 0 : i32
    %c0_i32_1 = arith.constant 0 : i32
    return %arg0, %c0_i32, %c0_i32_0 : i32, i32, i32
  }
  func.func @transform_1(%arg0: i32) -> (i32, i32) {
    %c0_i32 = arith.constant 0 : i32
    %c0_i32_0 = arith.constant 0 : i32
    %c0_i32_1 = arith.constant 0 : i32
    return %c0_i32, %c0_i32_0 : i32, i32
  }
  func.func @transform_2(%arg0: i32) -> (i32, i32) {
    %c0_i32 = arith.constant 0 : i32
    %c0_i32_0 = arith.constant 0 : i32
    %c0_i32_1 = arith.constant 0 : i32
    return %c0_i32, %c0_i32_0 : i32, i32
  }
  func.func @transform_3(%arg0: i32) -> (i32, i32, i32) {
    %c0_i32 = arith.constant 0 : i32
    %c0_i32_0 = arith.constant 0 : i32
    %c0_i32_1 = arith.constant 0 : i32
    return %arg0, %c0_i32, %c0_i32_0 : i32, i32, i32
  }
}

module attributes {stable_mosaic.version = 11 : i64} {
  func.func @_conv_stats_kernel(%arg0: i32, %arg1: memref<1x4x768xf32, #tpu.memory_space<vmem>>, %arg2: memref<27x8x4xf32, #tpu.memory_space<vmem>>, %arg3: memref<512x1xf32, #tpu.memory_space<vmem>>, %arg4: memref<1x8x512xf32, #tpu.memory_space<vmem>>, %arg5: memref<1x8x1xf32, #tpu.memory_space<vmem>>, %arg6: memref<1x8x1xf32, #tpu.memory_space<vmem>>) attributes {dimension_semantics = [#tpu.dimension_semantics<parallel>], iteration_bounds = array<i64: 2>, scalar_prefetch = 0 : i64, scratch_operands = 0 : i64, tpu.core_type = #tpu.core_type<tc>, window_params = [{transform_indices = @transform_0, window_bounds = array<i64: 1, 4, 768>}, {pipeline_mode = #tpu.pipeline_mode<synchronous>, transform_indices = @transform_1, window_bounds = array<i64: 27, 8, 4>}, {pipeline_mode = #tpu.pipeline_mode<synchronous>, transform_indices = @transform_2, window_bounds = array<i64: 512, 1>}, {transform_indices = @transform_3, window_bounds = array<i64: 1, 8, 512>}, {transform_indices = @transform_4, window_bounds = array<i64: 1, 8, 1>}, {transform_indices = @transform_5, window_bounds = array<i64: 1, 8, 1>}]} {
    %c0 = arith.constant 0 : index
    %c0_0 = arith.constant 0 : index
    %c0_1 = arith.constant 0 : index
    %0 = vector.load %arg1[%c0, %c0_0, %c0_1] : memref<1x4x768xf32, #tpu.memory_space<vmem>>, vector<1x4x768xf32>
    %1 = vector.shape_cast %0 : vector<1x4x768xf32> to vector<4x768xf32>
    %c0_2 = arith.constant 0 : index
    %c0_3 = arith.constant 0 : index
    %c0_4 = arith.constant 0 : index
    %2 = vector.load %arg2[%c0_2, %c0_3, %c0_4] : memref<27x8x4xf32, #tpu.memory_space<vmem>>, vector<1x8x4xf32>
    %3 = vector.shape_cast %2 : vector<1x8x4xf32> to vector<8x4xf32>
    %4 = vector.extract_strided_slice %1 {offsets = [0, 0], sizes = [4, 512], strides = [1, 1]} : vector<4x768xf32> to vector<4x512xf32>
    %cst = arith.constant dense<0.000000e+00> : vector<8x512xf32>
    %5 = tpu.matmul %3, %4, %cst {dimension_numbers = #tpu.dot_dimension_numbers<[1], [0], [0], [1], [0, 0, 1, 1], [], []>} : vector<8x4xf32>, vector<4x512xf32>, vector<8x512xf32> -> vector<8x512xf32>
    %c1 = arith.constant 1 : index
    %c0_5 = arith.constant 0 : index
    %c0_6 = arith.constant 0 : index
    %6 = vector.load %arg2[%c1, %c0_5, %c0_6] : memref<27x8x4xf32, #tpu.memory_space<vmem>>, vector<1x8x4xf32>
    %7 = vector.shape_cast %6 : vector<1x8x4xf32> to vector<8x4xf32>
    %8 = vector.extract_strided_slice %1 {offsets = [0, 1], sizes = [4, 512], strides = [1, 1]} : vector<4x768xf32> to vector<4x512xf32>
    %cst_7 = arith.constant dense<0.000000e+00> : vector<8x512xf32>
    %9 = tpu.matmul %7, %8, %cst_7 {dimension_numbers = #tpu.dot_dimension_numbers<[1], [0], [0], [1], [0, 0, 1, 1], [], []>} : vector<8x4xf32>, vector<4x512xf32>, vector<8x512xf32> -> vector<8x512xf32>
    %10 = arith.addf %5, %9 : vector<8x512xf32>
    %c2 = arith.constant 2 : index
    %c0_8 = arith.constant 0 : index
    %c0_9 = arith.constant 0 : index
    %11 = vector.load %arg2[%c2, %c0_8, %c0_9] : memref<27x8x4xf32, #tpu.memory_space<vmem>>, vector<1x8x4xf32>
    %12 = vector.shape_cast %11 : vector<1x8x4xf32> to vector<8x4xf32>
    %13 = vector.extract_strided_slice %1 {offsets = [0, 2], sizes = [4, 512], strides = [1, 1]} : vector<4x768xf32> to vector<4x512xf32>
    %cst_10 = arith.constant dense<0.000000e+00> : vector<8x512xf32>
    %14 = tpu.matmul %12, %13, %cst_10 {dimension_numbers = #tpu.dot_dimension_numbers<[1], [0], [0], [1], [0, 0, 1, 1], [], []>} : vector<8x4xf32>, vector<4x512xf32>, vector<8x512xf32> -> vector<8x512xf32>
    %15 = arith.addf %10, %14 : vector<8x512xf32>
    %c3 = arith.constant 3 : index
    %c0_11 = arith.constant 0 : index
    %c0_12 = arith.constant 0 : index
    %16 = vector.load %arg2[%c3, %c0_11, %c0_12] : memref<27x8x4xf32, #tpu.memory_space<vmem>>, vector<1x8x4xf32>
    %17 = vector.shape_cast %16 : vector<1x8x4xf32> to vector<8x4xf32>
    %18 = vector.extract_strided_slice %1 {offsets = [0, 8], sizes = [4, 512], strides = [1, 1]} : vector<4x768xf32> to vector<4x512xf32>
    %cst_13 = arith.constant dense<0.000000e+00> : vector<8x512xf32>
    %19 = tpu.matmul %17, %18, %cst_13 {dimension_numbers = #tpu.dot_dimension_numbers<[1], [0], [0], [1], [0, 0, 1, 1], [], []>} : vector<8x4xf32>, vector<4x512xf32>, vector<8x512xf32> -> vector<8x512xf32>
    %20 = arith.addf %15, %19 : vector<8x512xf32>
    %c4 = arith.constant 4 : index
    %c0_14 = arith.constant 0 : index
    %c0_15 = arith.constant 0 : index
    %21 = vector.load %arg2[%c4, %c0_14, %c0_15] : memref<27x8x4xf32, #tpu.memory_space<vmem>>, vector<1x8x4xf32>
    %22 = vector.shape_cast %21 : vector<1x8x4xf32> to vector<8x4xf32>
    %23 = vector.extract_strided_slice %1 {offsets = [0, 9], sizes = [4, 512], strides = [1, 1]} : vector<4x768xf32> to vector<4x512xf32>
    %cst_16 = arith.constant dense<0.000000e+00> : vector<8x512xf32>
    %24 = tpu.matmul %22, %23, %cst_16 {dimension_numbers = #tpu.dot_dimension_numbers<[1], [0], [0], [1], [0, 0, 1, 1], [], []>} : vector<8x4xf32>, vector<4x512xf32>, vector<8x512xf32> -> vector<8x512xf32>
    %25 = arith.addf %20, %24 : vector<8x512xf32>
    %c5 = arith.constant 5 : index
    %c0_17 = arith.constant 0 : index
    %c0_18 = arith.constant 0 : index
    %26 = vector.load %arg2[%c5, %c0_17, %c0_18] : memref<27x8x4xf32, #tpu.memory_space<vmem>>, vector<1x8x4xf32>
    %27 = vector.shape_cast %26 : vector<1x8x4xf32> to vector<8x4xf32>
    %28 = vector.extract_strided_slice %1 {offsets = [0, 10], sizes = [4, 512], strides = [1, 1]} : vector<4x768xf32> to vector<4x512xf32>
    %cst_19 = arith.constant dense<0.000000e+00> : vector<8x512xf32>
    %29 = tpu.matmul %27, %28, %cst_19 {dimension_numbers = #tpu.dot_dimension_numbers<[1], [0], [0], [1], [0, 0, 1, 1], [], []>} : vector<8x4xf32>, vector<4x512xf32>, vector<8x512xf32> -> vector<8x512xf32>
    %30 = arith.addf %25, %29 : vector<8x512xf32>
    %c6 = arith.constant 6 : index
    %c0_20 = arith.constant 0 : index
    %c0_21 = arith.constant 0 : index
    %31 = vector.load %arg2[%c6, %c0_20, %c0_21] : memref<27x8x4xf32, #tpu.memory_space<vmem>>, vector<1x8x4xf32>
    %32 = vector.shape_cast %31 : vector<1x8x4xf32> to vector<8x4xf32>
    %33 = vector.extract_strided_slice %1 {offsets = [0, 16], sizes = [4, 512], strides = [1, 1]} : vector<4x768xf32> to vector<4x512xf32>
    %cst_22 = arith.constant dense<0.000000e+00> : vector<8x512xf32>
    %34 = tpu.matmul %32, %33, %cst_22 {dimension_numbers = #tpu.dot_dimension_numbers<[1], [0], [0], [1], [0, 0, 1, 1], [], []>} : vector<8x4xf32>, vector<4x512xf32>, vector<8x512xf32> -> vector<8x512xf32>
    %35 = arith.addf %30, %34 : vector<8x512xf32>
    %c7 = arith.constant 7 : index
    %c0_23 = arith.constant 0 : index
    %c0_24 = arith.constant 0 : index
    %36 = vector.load %arg2[%c7, %c0_23, %c0_24] : memref<27x8x4xf32, #tpu.memory_space<vmem>>, vector<1x8x4xf32>
    %37 = vector.shape_cast %36 : vector<1x8x4xf32> to vector<8x4xf32>
    %38 = vector.extract_strided_slice %1 {offsets = [0, 17], sizes = [4, 512], strides = [1, 1]} : vector<4x768xf32> to vector<4x512xf32>
    %cst_25 = arith.constant dense<0.000000e+00> : vector<8x512xf32>
    %39 = tpu.matmul %37, %38, %cst_25 {dimension_numbers = #tpu.dot_dimension_numbers<[1], [0], [0], [1], [0, 0, 1, 1], [], []>} : vector<8x4xf32>, vector<4x512xf32>, vector<8x512xf32> -> vector<8x512xf32>
    %40 = arith.addf %35, %39 : vector<8x512xf32>
    %c8 = arith.constant 8 : index
    %c0_26 = arith.constant 0 : index
    %c0_27 = arith.constant 0 : index
    %41 = vector.load %arg2[%c8, %c0_26, %c0_27] : memref<27x8x4xf32, #tpu.memory_space<vmem>>, vector<1x8x4xf32>
    %42 = vector.shape_cast %41 : vector<1x8x4xf32> to vector<8x4xf32>
    %43 = vector.extract_strided_slice %1 {offsets = [0, 18], sizes = [4, 512], strides = [1, 1]} : vector<4x768xf32> to vector<4x512xf32>
    %cst_28 = arith.constant dense<0.000000e+00> : vector<8x512xf32>
    %44 = tpu.matmul %42, %43, %cst_28 {dimension_numbers = #tpu.dot_dimension_numbers<[1], [0], [0], [1], [0, 0, 1, 1], [], []>} : vector<8x4xf32>, vector<4x512xf32>, vector<8x512xf32> -> vector<8x512xf32>
    %45 = arith.addf %40, %44 : vector<8x512xf32>
    %c9 = arith.constant 9 : index
    %c0_29 = arith.constant 0 : index
    %c0_30 = arith.constant 0 : index
    %46 = vector.load %arg2[%c9, %c0_29, %c0_30] : memref<27x8x4xf32, #tpu.memory_space<vmem>>, vector<1x8x4xf32>
    %47 = vector.shape_cast %46 : vector<1x8x4xf32> to vector<8x4xf32>
    %48 = vector.extract_strided_slice %1 {offsets = [0, 64], sizes = [4, 512], strides = [1, 1]} : vector<4x768xf32> to vector<4x512xf32>
    %cst_31 = arith.constant dense<0.000000e+00> : vector<8x512xf32>
    %49 = tpu.matmul %47, %48, %cst_31 {dimension_numbers = #tpu.dot_dimension_numbers<[1], [0], [0], [1], [0, 0, 1, 1], [], []>} : vector<8x4xf32>, vector<4x512xf32>, vector<8x512xf32> -> vector<8x512xf32>
    %50 = arith.addf %45, %49 : vector<8x512xf32>
    %c10 = arith.constant 10 : index
    %c0_32 = arith.constant 0 : index
    %c0_33 = arith.constant 0 : index
    %51 = vector.load %arg2[%c10, %c0_32, %c0_33] : memref<27x8x4xf32, #tpu.memory_space<vmem>>, vector<1x8x4xf32>
    %52 = vector.shape_cast %51 : vector<1x8x4xf32> to vector<8x4xf32>
    %53 = vector.extract_strided_slice %1 {offsets = [0, 65], sizes = [4, 512], strides = [1, 1]} : vector<4x768xf32> to vector<4x512xf32>
    %cst_34 = arith.constant dense<0.000000e+00> : vector<8x512xf32>
    %54 = tpu.matmul %52, %53, %cst_34 {dimension_numbers = #tpu.dot_dimension_numbers<[1], [0], [0], [1], [0, 0, 1, 1], [], []>} : vector<8x4xf32>, vector<4x512xf32>, vector<8x512xf32> -> vector<8x512xf32>
    %55 = arith.addf %50, %54 : vector<8x512xf32>
    %c11 = arith.constant 11 : index
    %c0_35 = arith.constant 0 : index
    %c0_36 = arith.constant 0 : index
    %56 = vector.load %arg2[%c11, %c0_35, %c0_36] : memref<27x8x4xf32, #tpu.memory_space<vmem>>, vector<1x8x4xf32>
    %57 = vector.shape_cast %56 : vector<1x8x4xf32> to vector<8x4xf32>
    %58 = vector.extract_strided_slice %1 {offsets = [0, 66], sizes = [4, 512], strides = [1, 1]} : vector<4x768xf32> to vector<4x512xf32>
    %cst_37 = arith.constant dense<0.000000e+00> : vector<8x512xf32>
    %59 = tpu.matmul %57, %58, %cst_37 {dimension_numbers = #tpu.dot_dimension_numbers<[1], [0], [0], [1], [0, 0, 1, 1], [], []>} : vector<8x4xf32>, vector<4x512xf32>, vector<8x512xf32> -> vector<8x512xf32>
    %60 = arith.addf %55, %59 : vector<8x512xf32>
    %c12 = arith.constant 12 : index
    %c0_38 = arith.constant 0 : index
    %c0_39 = arith.constant 0 : index
    %61 = vector.load %arg2[%c12, %c0_38, %c0_39] : memref<27x8x4xf32, #tpu.memory_space<vmem>>, vector<1x8x4xf32>
    %62 = vector.shape_cast %61 : vector<1x8x4xf32> to vector<8x4xf32>
    %63 = vector.extract_strided_slice %1 {offsets = [0, 72], sizes = [4, 512], strides = [1, 1]} : vector<4x768xf32> to vector<4x512xf32>
    %cst_40 = arith.constant dense<0.000000e+00> : vector<8x512xf32>
    %64 = tpu.matmul %62, %63, %cst_40 {dimension_numbers = #tpu.dot_dimension_numbers<[1], [0], [0], [1], [0, 0, 1, 1], [], []>} : vector<8x4xf32>, vector<4x512xf32>, vector<8x512xf32> -> vector<8x512xf32>
    %65 = arith.addf %60, %64 : vector<8x512xf32>
    %c13 = arith.constant 13 : index
    %c0_41 = arith.constant 0 : index
    %c0_42 = arith.constant 0 : index
    %66 = vector.load %arg2[%c13, %c0_41, %c0_42] : memref<27x8x4xf32, #tpu.memory_space<vmem>>, vector<1x8x4xf32>
    %67 = vector.shape_cast %66 : vector<1x8x4xf32> to vector<8x4xf32>
    %68 = vector.extract_strided_slice %1 {offsets = [0, 73], sizes = [4, 512], strides = [1, 1]} : vector<4x768xf32> to vector<4x512xf32>
    %cst_43 = arith.constant dense<0.000000e+00> : vector<8x512xf32>
    %69 = tpu.matmul %67, %68, %cst_43 {dimension_numbers = #tpu.dot_dimension_numbers<[1], [0], [0], [1], [0, 0, 1, 1], [], []>} : vector<8x4xf32>, vector<4x512xf32>, vector<8x512xf32> -> vector<8x512xf32>
    %70 = arith.addf %65, %69 : vector<8x512xf32>
    %c14 = arith.constant 14 : index
    %c0_44 = arith.constant 0 : index
    %c0_45 = arith.constant 0 : index
    %71 = vector.load %arg2[%c14, %c0_44, %c0_45] : memref<27x8x4xf32, #tpu.memory_space<vmem>>, vector<1x8x4xf32>
    %72 = vector.shape_cast %71 : vector<1x8x4xf32> to vector<8x4xf32>
    %73 = vector.extract_strided_slice %1 {offsets = [0, 74], sizes = [4, 512], strides = [1, 1]} : vector<4x768xf32> to vector<4x512xf32>
    %cst_46 = arith.constant dense<0.000000e+00> : vector<8x512xf32>
    %74 = tpu.matmul %72, %73, %cst_46 {dimension_numbers = #tpu.dot_dimension_numbers<[1], [0], [0], [1], [0, 0, 1, 1], [], []>} : vector<8x4xf32>, vector<4x512xf32>, vector<8x512xf32> -> vector<8x512xf32>
    %75 = arith.addf %70, %74 : vector<8x512xf32>
    %c15 = arith.constant 15 : index
    %c0_47 = arith.constant 0 : index
    %c0_48 = arith.constant 0 : index
    %76 = vector.load %arg2[%c15, %c0_47, %c0_48] : memref<27x8x4xf32, #tpu.memory_space<vmem>>, vector<1x8x4xf32>
    %77 = vector.shape_cast %76 : vector<1x8x4xf32> to vector<8x4xf32>
    %78 = vector.extract_strided_slice %1 {offsets = [0, 80], sizes = [4, 512], strides = [1, 1]} : vector<4x768xf32> to vector<4x512xf32>
    %cst_49 = arith.constant dense<0.000000e+00> : vector<8x512xf32>
    %79 = tpu.matmul %77, %78, %cst_49 {dimension_numbers = #tpu.dot_dimension_numbers<[1], [0], [0], [1], [0, 0, 1, 1], [], []>} : vector<8x4xf32>, vector<4x512xf32>, vector<8x512xf32> -> vector<8x512xf32>
    %80 = arith.addf %75, %79 : vector<8x512xf32>
    %c16 = arith.constant 16 : index
    %c0_50 = arith.constant 0 : index
    %c0_51 = arith.constant 0 : index
    %81 = vector.load %arg2[%c16, %c0_50, %c0_51] : memref<27x8x4xf32, #tpu.memory_space<vmem>>, vector<1x8x4xf32>
    %82 = vector.shape_cast %81 : vector<1x8x4xf32> to vector<8x4xf32>
    %83 = vector.extract_strided_slice %1 {offsets = [0, 81], sizes = [4, 512], strides = [1, 1]} : vector<4x768xf32> to vector<4x512xf32>
    %cst_52 = arith.constant dense<0.000000e+00> : vector<8x512xf32>
    %84 = tpu.matmul %82, %83, %cst_52 {dimension_numbers = #tpu.dot_dimension_numbers<[1], [0], [0], [1], [0, 0, 1, 1], [], []>} : vector<8x4xf32>, vector<4x512xf32>, vector<8x512xf32> -> vector<8x512xf32>
    %85 = arith.addf %80, %84 : vector<8x512xf32>
    %c17 = arith.constant 17 : index
    %c0_53 = arith.constant 0 : index
    %c0_54 = arith.constant 0 : index
    %86 = vector.load %arg2[%c17, %c0_53, %c0_54] : memref<27x8x4xf32, #tpu.memory_space<vmem>>, vector<1x8x4xf32>
    %87 = vector.shape_cast %86 : vector<1x8x4xf32> to vector<8x4xf32>
    %88 = vector.extract_strided_slice %1 {offsets = [0, 82], sizes = [4, 512], strides = [1, 1]} : vector<4x768xf32> to vector<4x512xf32>
    %cst_55 = arith.constant dense<0.000000e+00> : vector<8x512xf32>
    %89 = tpu.matmul %87, %88, %cst_55 {dimension_numbers = #tpu.dot_dimension_numbers<[1], [0], [0], [1], [0, 0, 1, 1], [], []>} : vector<8x4xf32>, vector<4x512xf32>, vector<8x512xf32> -> vector<8x512xf32>
    %90 = arith.addf %85, %89 : vector<8x512xf32>
    %c18 = arith.constant 18 : index
    %c0_56 = arith.constant 0 : index
    %c0_57 = arith.constant 0 : index
    %91 = vector.load %arg2[%c18, %c0_56, %c0_57] : memref<27x8x4xf32, #tpu.memory_space<vmem>>, vector<1x8x4xf32>
    %92 = vector.shape_cast %91 : vector<1x8x4xf32> to vector<8x4xf32>
    %93 = vector.extract_strided_slice %1 {offsets = [0, 128], sizes = [4, 512], strides = [1, 1]} : vector<4x768xf32> to vector<4x512xf32>
    %cst_58 = arith.constant dense<0.000000e+00> : vector<8x512xf32>
    %94 = tpu.matmul %92, %93, %cst_58 {dimension_numbers = #tpu.dot_dimension_numbers<[1], [0], [0], [1], [0, 0, 1, 1], [], []>} : vector<8x4xf32>, vector<4x512xf32>, vector<8x512xf32> -> vector<8x512xf32>
    %95 = arith.addf %90, %94 : vector<8x512xf32>
    %c19 = arith.constant 19 : index
    %c0_59 = arith.constant 0 : index
    %c0_60 = arith.constant 0 : index
    %96 = vector.load %arg2[%c19, %c0_59, %c0_60] : memref<27x8x4xf32, #tpu.memory_space<vmem>>, vector<1x8x4xf32>
    %97 = vector.shape_cast %96 : vector<1x8x4xf32> to vector<8x4xf32>
    %98 = vector.extract_strided_slice %1 {offsets = [0, 129], sizes = [4, 512], strides = [1, 1]} : vector<4x768xf32> to vector<4x512xf32>
    %cst_61 = arith.constant dense<0.000000e+00> : vector<8x512xf32>
    %99 = tpu.matmul %97, %98, %cst_61 {dimension_numbers = #tpu.dot_dimension_numbers<[1], [0], [0], [1], [0, 0, 1, 1], [], []>} : vector<8x4xf32>, vector<4x512xf32>, vector<8x512xf32> -> vector<8x512xf32>
    %100 = arith.addf %95, %99 : vector<8x512xf32>
    %c20 = arith.constant 20 : index
    %c0_62 = arith.constant 0 : index
    %c0_63 = arith.constant 0 : index
    %101 = vector.load %arg2[%c20, %c0_62, %c0_63] : memref<27x8x4xf32, #tpu.memory_space<vmem>>, vector<1x8x4xf32>
    %102 = vector.shape_cast %101 : vector<1x8x4xf32> to vector<8x4xf32>
    %103 = vector.extract_strided_slice %1 {offsets = [0, 130], sizes = [4, 512], strides = [1, 1]} : vector<4x768xf32> to vector<4x512xf32>
    %cst_64 = arith.constant dense<0.000000e+00> : vector<8x512xf32>
    %104 = tpu.matmul %102, %103, %cst_64 {dimension_numbers = #tpu.dot_dimension_numbers<[1], [0], [0], [1], [0, 0, 1, 1], [], []>} : vector<8x4xf32>, vector<4x512xf32>, vector<8x512xf32> -> vector<8x512xf32>
    %105 = arith.addf %100, %104 : vector<8x512xf32>
    %c21 = arith.constant 21 : index
    %c0_65 = arith.constant 0 : index
    %c0_66 = arith.constant 0 : index
    %106 = vector.load %arg2[%c21, %c0_65, %c0_66] : memref<27x8x4xf32, #tpu.memory_space<vmem>>, vector<1x8x4xf32>
    %107 = vector.shape_cast %106 : vector<1x8x4xf32> to vector<8x4xf32>
    %108 = vector.extract_strided_slice %1 {offsets = [0, 136], sizes = [4, 512], strides = [1, 1]} : vector<4x768xf32> to vector<4x512xf32>
    %cst_67 = arith.constant dense<0.000000e+00> : vector<8x512xf32>
    %109 = tpu.matmul %107, %108, %cst_67 {dimension_numbers = #tpu.dot_dimension_numbers<[1], [0], [0], [1], [0, 0, 1, 1], [], []>} : vector<8x4xf32>, vector<4x512xf32>, vector<8x512xf32> -> vector<8x512xf32>
    %110 = arith.addf %105, %109 : vector<8x512xf32>
    %c22 = arith.constant 22 : index
    %c0_68 = arith.constant 0 : index
    %c0_69 = arith.constant 0 : index
    %111 = vector.load %arg2[%c22, %c0_68, %c0_69] : memref<27x8x4xf32, #tpu.memory_space<vmem>>, vector<1x8x4xf32>
    %112 = vector.shape_cast %111 : vector<1x8x4xf32> to vector<8x4xf32>
    %113 = vector.extract_strided_slice %1 {offsets = [0, 137], sizes = [4, 512], strides = [1, 1]} : vector<4x768xf32> to vector<4x512xf32>
    %cst_70 = arith.constant dense<0.000000e+00> : vector<8x512xf32>
    %114 = tpu.matmul %112, %113, %cst_70 {dimension_numbers = #tpu.dot_dimension_numbers<[1], [0], [0], [1], [0, 0, 1, 1], [], []>} : vector<8x4xf32>, vector<4x512xf32>, vector<8x512xf32> -> vector<8x512xf32>
    %115 = arith.addf %110, %114 : vector<8x512xf32>
    %c23 = arith.constant 23 : index
    %c0_71 = arith.constant 0 : index
    %c0_72 = arith.constant 0 : index
    %116 = vector.load %arg2[%c23, %c0_71, %c0_72] : memref<27x8x4xf32, #tpu.memory_space<vmem>>, vector<1x8x4xf32>
    %117 = vector.shape_cast %116 : vector<1x8x4xf32> to vector<8x4xf32>
    %118 = vector.extract_strided_slice %1 {offsets = [0, 138], sizes = [4, 512], strides = [1, 1]} : vector<4x768xf32> to vector<4x512xf32>
    %cst_73 = arith.constant dense<0.000000e+00> : vector<8x512xf32>
    %119 = tpu.matmul %117, %118, %cst_73 {dimension_numbers = #tpu.dot_dimension_numbers<[1], [0], [0], [1], [0, 0, 1, 1], [], []>} : vector<8x4xf32>, vector<4x512xf32>, vector<8x512xf32> -> vector<8x512xf32>
    %120 = arith.addf %115, %119 : vector<8x512xf32>
    %c24 = arith.constant 24 : index
    %c0_74 = arith.constant 0 : index
    %c0_75 = arith.constant 0 : index
    %121 = vector.load %arg2[%c24, %c0_74, %c0_75] : memref<27x8x4xf32, #tpu.memory_space<vmem>>, vector<1x8x4xf32>
    %122 = vector.shape_cast %121 : vector<1x8x4xf32> to vector<8x4xf32>
    %123 = vector.extract_strided_slice %1 {offsets = [0, 144], sizes = [4, 512], strides = [1, 1]} : vector<4x768xf32> to vector<4x512xf32>
    %cst_76 = arith.constant dense<0.000000e+00> : vector<8x512xf32>
    %124 = tpu.matmul %122, %123, %cst_76 {dimension_numbers = #tpu.dot_dimension_numbers<[1], [0], [0], [1], [0, 0, 1, 1], [], []>} : vector<8x4xf32>, vector<4x512xf32>, vector<8x512xf32> -> vector<8x512xf32>
    %125 = arith.addf %120, %124 : vector<8x512xf32>
    %c25 = arith.constant 25 : index
    %c0_77 = arith.constant 0 : index
    %c0_78 = arith.constant 0 : index
    %126 = vector.load %arg2[%c25, %c0_77, %c0_78] : memref<27x8x4xf32, #tpu.memory_space<vmem>>, vector<1x8x4xf32>
    %127 = vector.shape_cast %126 : vector<1x8x4xf32> to vector<8x4xf32>
    %128 = vector.extract_strided_slice %1 {offsets = [0, 145], sizes = [4, 512], strides = [1, 1]} : vector<4x768xf32> to vector<4x512xf32>
    %cst_79 = arith.constant dense<0.000000e+00> : vector<8x512xf32>
    %129 = tpu.matmul %127, %128, %cst_79 {dimension_numbers = #tpu.dot_dimension_numbers<[1], [0], [0], [1], [0, 0, 1, 1], [], []>} : vector<8x4xf32>, vector<4x512xf32>, vector<8x512xf32> -> vector<8x512xf32>
    %130 = arith.addf %125, %129 : vector<8x512xf32>
    %c26 = arith.constant 26 : index
    %c0_80 = arith.constant 0 : index
    %c0_81 = arith.constant 0 : index
    %131 = vector.load %arg2[%c26, %c0_80, %c0_81] : memref<27x8x4xf32, #tpu.memory_space<vmem>>, vector<1x8x4xf32>
    %132 = vector.shape_cast %131 : vector<1x8x4xf32> to vector<8x4xf32>
    %133 = vector.extract_strided_slice %1 {offsets = [0, 146], sizes = [4, 512], strides = [1, 1]} : vector<4x768xf32> to vector<4x512xf32>
    %cst_82 = arith.constant dense<0.000000e+00> : vector<8x512xf32>
    %134 = tpu.matmul %132, %133, %cst_82 {dimension_numbers = #tpu.dot_dimension_numbers<[1], [0], [0], [1], [0, 0, 1, 1], [], []>} : vector<8x4xf32>, vector<4x512xf32>, vector<8x512xf32> -> vector<8x512xf32>
    %135 = arith.addf %130, %134 : vector<8x512xf32>
    %c0_83 = arith.constant 0 : index
    %c0_84 = arith.constant 0 : index
    %c0_85 = arith.constant 0 : index
    %136 = vector.load %arg4[%c0_83, %c0_84, %c0_85] : memref<1x8x512xf32, #tpu.memory_space<vmem>>, vector<1x8x512xf32>
    %137 = vector.shape_cast %136 : vector<1x8x512xf32> to vector<8x512xf32>
    %138 = vector.shape_cast %135 : vector<8x512xf32> to vector<1x8x512xf32>
    tpu.vector_store %arg4[%c0_83, %c0_84, %c0_85], %138 {strides = array<i32>} : memref<1x8x512xf32, #tpu.memory_space<vmem>>, vector<1x8x512xf32>,
    %c0_86 = arith.constant 0 : index
    %c0_87 = arith.constant 0 : index
    %139 = vector.load %arg3[%c0_86, %c0_87] : memref<512x1xf32, #tpu.memory_space<vmem>>, vector<512x1xf32>
    %cst_88 = arith.constant dense<0.000000e+00> : vector<8x1xf32>
    %140 = tpu.matmul %135, %139, %cst_88 {dimension_numbers = #tpu.dot_dimension_numbers<[1], [0], [0], [1], [0, 0, 1, 1], [], []>} : vector<8x512xf32>, vector<512x1xf32>, vector<8x1xf32> -> vector<8x1xf32>
    %c0_89 = arith.constant 0 : index
    %c0_90 = arith.constant 0 : index
    %c0_91 = arith.constant 0 : index
    %141 = vector.load %arg5[%c0_89, %c0_90, %c0_91] : memref<1x8x1xf32, #tpu.memory_space<vmem>>, vector<1x8x1xf32>
    %142 = vector.shape_cast %141 : vector<1x8x1xf32> to vector<8x1xf32>
    %143 = vector.shape_cast %140 : vector<8x1xf32> to vector<1x8x1xf32>
    tpu.vector_store %arg5[%c0_89, %c0_90, %c0_91], %143 {strides = array<i32>} : memref<1x8x1xf32, #tpu.memory_space<vmem>>, vector<1x8x1xf32>,
    %144 = arith.mulf %135, %135 : vector<8x512xf32>
    %cst_92 = arith.constant dense<0.000000e+00> : vector<8x1xf32>
    %145 = tpu.matmul %144, %139, %cst_92 {dimension_numbers = #tpu.dot_dimension_numbers<[1], [0], [0], [1], [0, 0, 1, 1], [], []>} : vector<8x512xf32>, vector<512x1xf32>, vector<8x1xf32> -> vector<8x1xf32>
    %c0_93 = arith.constant 0 : index
    %c0_94 = arith.constant 0 : index
    %c0_95 = arith.constant 0 : index
    %146 = vector.load %arg6[%c0_93, %c0_94, %c0_95] : memref<1x8x1xf32, #tpu.memory_space<vmem>>, vector<1x8x1xf32>
    %147 = vector.shape_cast %146 : vector<1x8x1xf32> to vector<8x1xf32>
    %148 = vector.shape_cast %145 : vector<8x1xf32> to vector<1x8x1xf32>
    tpu.vector_store %arg6[%c0_93, %c0_94, %c0_95], %148 {strides = array<i32>} : memref<1x8x1xf32, #tpu.memory_space<vmem>>, vector<1x8x1xf32>,
    return
  }
  func.func @transform_0(%arg0: i32) -> (i32, i32, i32) {
    %c0_i32 = arith.constant 0 : i32
    %c0_i32_0 = arith.constant 0 : i32
    %c0_i32_1 = arith.constant 0 : i32
    return %arg0, %c0_i32, %c0_i32_0 : i32, i32, i32
  }
  func.func @transform_1(%arg0: i32) -> (i32, i32, i32) {
    %c0_i32 = arith.constant 0 : i32
    %c0_i32_0 = arith.constant 0 : i32
    %c0_i32_1 = arith.constant 0 : i32
    %c0_i32_2 = arith.constant 0 : i32
    return %c0_i32, %c0_i32_0, %c0_i32_1 : i32, i32, i32
  }
  func.func @transform_2(%arg0: i32) -> (i32, i32) {
    %c0_i32 = arith.constant 0 : i32
    %c0_i32_0 = arith.constant 0 : i32
    %c0_i32_1 = arith.constant 0 : i32
    return %c0_i32, %c0_i32_0 : i32, i32
  }
  func.func @transform_3(%arg0: i32) -> (i32, i32, i32) {
    %c0_i32 = arith.constant 0 : i32
    %c0_i32_0 = arith.constant 0 : i32
    %c0_i32_1 = arith.constant 0 : i32
    return %arg0, %c0_i32, %c0_i32_0 : i32, i32, i32
  }
  func.func @transform_4(%arg0: i32) -> (i32, i32, i32) {
    %c0_i32 = arith.constant 0 : i32
    %c0_i32_0 = arith.constant 0 : i32
    %c0_i32_1 = arith.constant 0 : i32
    return %arg0, %c0_i32, %c0_i32_0 : i32, i32, i32
  }
  func.func @transform_5(%arg0: i32) -> (i32, i32, i32) {
    %c0_i32 = arith.constant 0 : i32
    %c0_i32_0 = arith.constant 0 : i32
    %c0_i32_1 = arith.constant 0 : i32
    return %arg0, %c0_i32, %c0_i32_0 : i32, i32, i32
  }
}

</mosaic_0001>

<llo_original>
// kernel: conv_unit_forward.3
$region0: #{conv_unit_forward.3}
  #allocation0 [shape = 'u32[]', space=smem, size = 0x4, offset = 0x4, fixed_abs, tag = 'smem constant byte address 0x4 - core index']
  #allocation1 [shape = 'u32[144,128]{1,0:T(1,128)}', space=vmem, size = 0x12000, scoped, tag = 'internal scratch']
  %s0 = inlined_call_operand.vmem [shape: f32[2,8,512], index: 0, kind: input, shape index: {}]
  %s1 = inlined_call_operand.vmem [shape: f32[8,1], index: 1, kind: input, shape index: {}]
  %s2 = inlined_call_operand.vmem [shape: f32[8,1], index: 2, kind: input, shape index: {}]
  %s3 = inlined_call_operand.vmem [shape: f32[2,8,512], index: 3, kind: output, shape index: {}]
  %s4 = sld [smem:[#allocation0]]
  $region45: #{conv_unit_forward.3} parent=0
    _
  %s6 = ssub.s32 1, %s4
  %s7 = scalar_select 0, %s6, %s4
  loop: start=0, step=1, limit=4
  $region2: #{conv_unit_forward.3} parent=0 // loop_pre_header
    _
  $region3: #{conv_unit_forward.3} parent=0 // loop_header
    %s9 = sphi 0, %s13
    %p10 = scmp.ge.s32.totalorder %s9, 4
    %s19 = sphi 0, %s21
    %s22 = sphi 0, %s19
    %s23 = sphi 0, %s22
    %s39 = sphi 0, %s23
    %s43 = sphi 0, %s43
    %s45 = sphi 0, %s43
    %s46 = sphi 0, %s45
    %s60 = sphi 0, %s46
    %s64 = sphi 0, %s64
    %s66 = sphi 0, %s64
    %s67 = sphi 0, %s66
    %s81 = sphi 0, %s67
    %s87 = sphi 0, %s89
    %s90 = sphi 0, %s87
    %s91 = sphi 0, %s90
    %s107 = sphi 0, %s91
  $region4: #{conv_unit_forward.3} parent=0 // loop_header_branch
    %12 = sbr.rel (%p10) target = $region8
  $region5: #{conv_unit_forward.3} parent=0 // loop_body
    %s14 = ssub.s32 %s9, 1
    %s15 = ssub.s32 %s9, 2
    %s16 = sadd.s32 %s9, 1
    %s17 = ssub.s32 %s9, %s16
    %p18 = scmp.eq.s32.totalorder %s17, 0
    %s20 = sadd.s32 %s19, 1
    %s21 = scalar_select %p18, %s19, %s20
    %p24 = pneg %p18
    %p25 = scmp.eq.s32.totalorder %s9, 1
    %p26 = por %p24, %p25
    %p27 = scmp.ne.s32.totalorder %s19, %s22
    %p28 = scmp.eq.s32.totalorder %s9, 0
    %p29 = por %p27, %p28
    %p30 = scmp.ne.s32.totalorder %s19, %s22
    %p31 = scmp.eq.s32.totalorder %s14, 1
    %p32 = por %p30, %p31
    %p33 = scmp.ne.s32.totalorder %s22, %s23
    %p34 = scmp.eq.s32.totalorder %s14, 0
    %p35 = por %p33, %p34
    %p36 = scmp.ne.s32.totalorder %s22, %s23
    %p37 = scmp.eq.s32.totalorder %s15, 1
    %p38 = por %p36, %p37
    %p40 = scmp.ne.s32.totalorder %s23, %s39
    %p41 = scmp.eq.s32.totalorder %s15, 0
    %p42 = por %p40, %p41
    %s44 = sadd.s32 %s43, 1
    %p47 = scmp.eq.s32.totalorder %s9, 1
    %p48 = scmp.ne.s32.totalorder %s43, %s45
    %p49 = scmp.eq.s32.totalorder %s9, 0
    %p50 = por %p48, %p49
    %p51 = scmp.ne.s32.totalorder %s43, %s45
    %p52 = scmp.eq.s32.totalorder %s14, 1
    %p53 = por %p51, %p52
    %p54 = scmp.ne.s32.totalorder %s45, %s46
    %p55 = scmp.eq.s32.totalorder %s14, 0
    %p56 = por %p54, %p55
    %p57 = scmp.ne.s32.totalorder %s45, %s46
    %p58 = scmp.eq.s32.totalorder %s15, 1
    %p59 = por %p57, %p58
    %p61 = scmp.ne.s32.totalorder %s46, %s60
    %p62 = scmp.eq.s32.totalorder %s15, 0
    %p63 = por %p61, %p62
    %s65 = sadd.s32 %s64, 1
    %p68 = scmp.eq.s32.totalorder %s9, 1
    %p69 = scmp.ne.s32.totalorder %s64, %s66
    %p70 = scmp.eq.s32.totalorder %s9, 0
    %p71 = por %p69, %p70
    %p72 = scmp.ne.s32.totalorder %s64, %s66
    %p73 = scmp.eq.s32.totalorder %s14, 1
    %p74 = por %p72, %p73
    %p75 = scmp.ne.s32.totalorder %s66, %s67
    %p76 = scmp.eq.s32.totalorder %s14, 0
    %p77 = por %p75, %p76
    %p78 = scmp.ne.s32.totalorder %s66, %s67
    %p79 = scmp.eq.s32.totalorder %s15, 1
    %p80 = por %p78, %p79
    %p82 = scmp.ne.s32.totalorder %s67, %s81
    %p83 = scmp.eq.s32.totalorder %s15, 0
    %p84 = por %p82, %p83
    %s85 = ssub.s32 %s9, %s16
    %p86 = scmp.eq.s32.totalorder %s85, 0
    %s88 = sadd.s32 %s87, 1
    %s89 = scalar_select %p86, %s87, %s88
    %p92 = pneg %p86
    %p93 = scmp.eq.s32.totalorder %s9, 1
    %p94 = por %p92, %p93
    %p95 = scmp.ne.s32.totalorder %s87, %s90
    %p96 = scmp.eq.s32.totalorder %s9, 0
    %p97 = por %p95, %p96
    %p98 = scmp.ne.s32.totalorder %s87, %s90
    %p99 = scmp.eq.s32.totalorder %s14, 1
    %p100 = por %p98, %p99
    %p101 = scmp.ne.s32.totalorder %s90, %s91
    %p102 = scmp.eq.s32.totalorder %s14, 0
    %p103 = por %p101, %p102
    %p104 = scmp.ne.s32.totalorder %s90, %s91
    %p105 = scmp.eq.s32.totalorder %s15, 1
    %p106 = por %p104, %p105
    %p108 = scmp.ne.s32.totalorder %s91, %s107
    %p109 = scmp.eq.s32.totalorder %s15, 0
    %p110 = por %p108, %p109
    %p111 = scmp.le.s32.totalorder 1, %s9
    %p112 = scmp.lt.s32.totalorder %s9, 3
    %p113 = pnand %p111, %p112
    %p114 = pneg %p113
    // Predicated region
    $region9: #{conv_unit_forward.3} parent=5 // pred_check
      _
    $region10: #{conv_unit_forward.3} parent=5 // pred_check_branch
      %116 = sbr.rel (%p113) target = $region12
    $region11: #{conv_unit_forward.3} parent=5 // pred_region
      %s117 = ssub.s32 %s9, 1
      // Predicated region
      $region13: #{conv_unit_forward.3} parent=11 // pred_check
        %p118 = pneg %p56
      $region14: #{conv_unit_forward.3} parent=11 // pred_check_branch
        %120 = sbr.rel (%p118) target = $region16
      $region15: #{conv_unit_forward.3} parent=11 // pred_region
        _
      $region16: #{conv_unit_forward.3} parent=11 // pred_fallthru
        _
      // Predicated region
      $region17: #{conv_unit_forward.3} parent=11 // pred_check
        %p121 = pneg %p77
      $region18: #{conv_unit_forward.3} parent=11 // pred_check_branch
        %123 = sbr.rel (%p121) target = $region20
      $region19: #{conv_unit_forward.3} parent=11 // pred_region
        _
      $region20: #{conv_unit_forward.3} parent=11 // pred_fallthru
        _
    $region12: #{conv_unit_forward.3} parent=5 // pred_fallthru
      _
    %p124 = scmp.lt.s32.totalorder %s9, 2
    // Predicated region
    $region21: #{conv_unit_forward.3} parent=5 // pred_check
      %p125 = pneg %p124
    $region22: #{conv_unit_forward.3} parent=5 // pred_check_branch
      %127 = sbr.rel (%p125) target = $region24
    $region23: #{conv_unit_forward.3} parent=5 // pred_region
      // Predicated region
      $region25: #{conv_unit_forward.3} parent=23 // pred_check
        %p128 = pneg %p29
      $region26: #{conv_unit_forward.3} parent=23 // pred_check_branch
        %130 = sbr.rel (%p128) target = $region28
      $region27: #{conv_unit_forward.3} parent=23 // pred_region
        %p131 = scmp.lt.s32.totalorder %s9, 1
        %s132 = scalar_select %p131, %s9, 1
        %s133 = smul.addr %s132, 4
        %s134 = smul.addr %s133, 8
        %s135 = scalar_lea.vmem %s0, %s134
      $region28: #{conv_unit_forward.3} parent=23 // pred_fallthru
        _
    $region24: #{conv_unit_forward.3} parent=5 // pred_fallthru
      _
    %p136 = scmp.le.s32.totalorder 1, %s9
    %p137 = scmp.lt.s32.totalorder %s9, 3
    %p138 = pnand %p136, %p137
    %p139 = pneg %p138
    // Predicated region
    $region29: #{conv_unit_forward.3} parent=5 // pred_check
      _
    $region30: #{conv_unit_forward.3} parent=5 // pred_check_branch
      %141 = sbr.rel (%p138) target = $region32
    $region31: #{conv_unit_forward.3} parent=5 // pred_region
      %s142 = ssub.s32 %s9, 1
      %p143 = scmp.lt.s32.totalorder %s14, 1
      %s144 = scalar_select %p143, %s14, 1
      %s145 = smul.addr %s144, 4
      %s146 = smul.addr %s145, 8
      %s147 = scalar_lea.vmem %s0, %s146
      %p148 = pneg %p35
      %p149 = pneg %p32
      %p150 = pneg %p56
      %p151 = pneg %p53
      %p152 = pneg %p77
      %p153 = pneg %p74
      %p154 = pneg %p103
      %p155 = pneg %p100
      %p156 = scmp.lt.s32.totalorder %s14, 1
      %s157 = scalar_select %p156, %s14, 1
      %s158 = smul.addr %s157, 4
      %s159 = smul.addr %s158, 8
      %s160 = scalar_lea.vmem %s3, %s159
      %p161 = scmp.lt.s32.totalorder %s14, 1
      %s162 = scalar_select %p161, %s14, 1
      %s163 = smul.addr %s162, 4
      %s164 = smul.addr %s163, 8
      %s165 = scalar_lea.vmem %s0, %s164
      %p166 = scmp.lt.s32.totalorder %s14, 1
      %s167 = scalar_select %p166, %s14, 1
      %s168 = smul.addr %s167, 4
      %s169 = smul.addr %s168, 8
      %s170 = scalar_lea.vmem %s3, %s169
      %v171 = vld [vmem:[%s165] sm:$0xff]
      %v172 = vld [vmem:[%s165 + $0x8] sm:$0xff]
      %v173 = vld [vmem:[%s165 + $0x10] sm:$0xff]
      %v174 = vld [vmem:[%s165 + $0x18] sm:$0xff]
      %v175 = vld [vmem:[%s1] sm:$0xff]
      %177 = vset.pattern.permute.xlu0 0
      %178 = vperm.xlu0 %177, %v175
      %v179 = vpop.permute.xlu0 %178
      %v181 = vmul.f32 %v171, %v179
      %v182 = vmul.f32 %v172, %v179
      %v183 = vmul.f32 %v173, %v179
      %v184 = vmul.f32 %v174, %v179
      %v185 = vld [vmem:[%s2] sm:$0xff]
      %187 = vset.pattern.permute.xlu0 0
      %188 = vperm.xlu0 %187, %v185
      %v189 = vpop.permute.xlu0 %188
      %v191 = vadd.f32 %v181, %v189
      %v192 = vadd.f32 %v182, %v189
      %v193 = vadd.f32 %v183, %v189
      %v194 = vadd.f32 %v184, %v189
      %v195 = vmax.f32 %v191, 0.0
      %v196 = vmax.f32 %v192, 0.0
      %v197 = vmax.f32 %v193, 0.0
      %v198 = vmax.f32 %v194, 0.0
      %199 = vst [vmem:[%s170] sm:$0xff] %v195
      %200 = vst [vmem:[%s170 + $0x8] sm:$0xff] %v196
      %201 = vst [vmem:[%s170 + $0x10] sm:$0xff] %v197
      %202 = vst [vmem:[%s170 + $0x18] sm:$0xff] %v198
      %p203 = scmp.lt.s32.totalorder %s14, 1
      %s204 = scalar_select %p203, %s14, 1
      %s205 = smul.addr %s204, 4
      %s206 = smul.addr %s205, 8
      %s207 = scalar_lea.vmem %s3, %s206
      // Predicated region
      $region33: #{conv_unit_forward.3} parent=31 // pred_check
        %p208 = pneg %p100
      $region34: #{conv_unit_forward.3} parent=31 // pred_check_branch
        %210 = sbr.rel (%p208) target = $region36
      $region35: #{conv_unit_forward.3} parent=31 // pred_region
        _
      $region36: #{conv_unit_forward.3} parent=31 // pred_fallthru
        _
    $region32: #{conv_unit_forward.3} parent=5 // pred_fallthru
      _
    %p211 = scmp.le.s32.totalorder 2, %s9
    // Predicated region
    $region37: #{conv_unit_forward.3} parent=5 // pred_check
      %p212 = pneg %p211
    $region38: #{conv_unit_forward.3} parent=5 // pred_check_branch
      %214 = sbr.rel (%p212) target = $region40
    $region39: #{conv_unit_forward.3} parent=5 // pred_region
      %s215 = ssub.s32 %s9, 2
      // Predicated region
      $region41: #{conv_unit_forward.3} parent=39 // pred_check
        %p216 = pneg %p106
      $region42: #{conv_unit_forward.3} parent=39 // pred_check_branch
        %218 = sbr.rel (%p216) target = $region44
      $region43: #{conv_unit_forward.3} parent=39 // pred_region
        %p219 = scmp.lt.s32.totalorder %s15, 1
        %s220 = scalar_select %p219, %s15, 1
        %s221 = smul.addr %s220, 4
        %s222 = smul.addr %s221, 8
        %s223 = scalar_lea.vmem %s3, %s222
      $region44: #{conv_unit_forward.3} parent=39 // pred_fallthru
        _
    $region40: #{conv_unit_forward.3} parent=5 // pred_fallthru
      _
  $region6: #{conv_unit_forward.3} parent=0 // loop_footer
    %s13 = sadd.s32 1, %s9
  $region7: #{conv_unit_forward.3} parent=0 // loop_footer_branch
    %8 = sbr.rel target = $region3
  $region8: #{conv_unit_forward.3} parent=0 // loop_exit
    _

// kernel: conv_unit_forward.2
$region0: #{conv_unit_forward.2}
  #allocation0 [shape = 'u32[]', space=smem, size = 0x4, offset = 0x4, fixed_abs, tag = 'smem constant byte address 0x4 - core index']
  #allocation1 [shape = 'u32[144,128]{1,0:T(1,128)}', space=vmem, size = 0x12000, scoped, tag = 'internal scratch']
  %s0 = inlined_call_operand.vmem [shape: f32[2,4,768], index: 0, kind: input, shape index: {}]
  %s1 = inlined_call_operand.vmem [shape: f32[27,8,4], index: 1, kind: input, shape index: {}]
  %s2 = inlined_call_operand.vmem [shape: f32[512,1], index: 2, kind: input, shape index: {}]
  %s3 = inlined_call_operand.vmem [shape: f32[2,8,512], index: 3, kind: output, shape index: {0}]
  %s4 = inlined_call_operand.vmem [shape: f32[2,8,1], index: 4, kind: output, shape index: {1}]
  %s5 = inlined_call_operand.vmem [shape: f32[2,8,1], index: 5, kind: output, shape index: {2}]
  %6 = xla_tuple %s3, %s4, %s5
  %s7 = sld [smem:[#allocation0]]
  $region61: #{conv_unit_forward.2} parent=0
    _
  %s9 = ssub.s32 1, %s7
  %s10 = scalar_select 0, %s9, %s7
  loop: start=0, step=1, limit=4
  $region2: #{conv_unit_forward.2} parent=0 // loop_pre_header
    _
  $region3: #{conv_unit_forward.2} parent=0 // loop_header
    %s12 = sphi 0, %s16
    %p13 = scmp.ge.s32.totalorder %s12, 4
    %s22 = sphi 0, %s24
    %s25 = sphi 0, %s22
    %s26 = sphi 0, %s25
    %s42 = sphi 0, %s26
    %s46 = sphi 0, %s46
    %s48 = sphi 0, %s46
    %s49 = sphi 0, %s48
    %s63 = sphi 0, %s49
    %s67 = sphi 0, %s67
    %s69 = sphi 0, %s67
    %s70 = sphi 0, %s69
    %s84 = sphi 0, %s70
    %s90 = sphi 0, %s92
    %s93 = sphi 0, %s90
    %s94 = sphi 0, %s93
    %s110 = sphi 0, %s94
    %s116 = sphi 0, %s118
    %s119 = sphi 0, %s116
    %s120 = sphi 0, %s119
    %s136 = sphi 0, %s120
    %s142 = sphi 0, %s144
    %s145 = sphi 0, %s142
    %s146 = sphi 0, %s145
    %s162 = sphi 0, %s146
  $region4: #{conv_unit_forward.2} parent=0 // loop_header_branch
    %15 = sbr.rel (%p13) target = $region8
  $region5: #{conv_unit_forward.2} parent=0 // loop_body
    %s17 = ssub.s32 %s12, 1
    %s18 = ssub.s32 %s12, 2
    %s19 = sadd.s32 %s12, 1
    %s20 = ssub.s32 %s12, %s19
    %p21 = scmp.eq.s32.totalorder %s20, 0
    %s23 = sadd.s32 %s22, 1
    %s24 = scalar_select %p21, %s22, %s23
    %p27 = pneg %p21
    %p28 = scmp.eq.s32.totalorder %s12, 1
    %p29 = por %p27, %p28
    %p30 = scmp.ne.s32.totalorder %s22, %s25
    %p31 = scmp.eq.s32.totalorder %s12, 0
    %p32 = por %p30, %p31
    %p33 = scmp.ne.s32.totalorder %s22, %s25
    %p34 = scmp.eq.s32.totalorder %s17, 1
    %p35 = por %p33, %p34
    %p36 = scmp.ne.s32.totalorder %s25, %s26
    %p37 = scmp.eq.s32.totalorder %s17, 0
    %p38 = por %p36, %p37
    %p39 = scmp.ne.s32.totalorder %s25, %s26
    %p40 = scmp.eq.s32.totalorder %s18, 1
    %p41 = por %p39, %p40
    %p43 = scmp.ne.s32.totalorder %s26, %s42
    %p44 = scmp.eq.s32.totalorder %s18, 0
    %p45 = por %p43, %p44
    %s47 = sadd.s32 %s46, 1
    %p50 = scmp.eq.s32.totalorder %s12, 1
    %p51 = scmp.ne.s32.totalorder %s46, %s48
    %p52 = scmp.eq.s32.totalorder %s12, 0
    %p53 = por %p51, %p52
    %p54 = scmp.ne.s32.totalorder %s46, %s48
    %p55 = scmp.eq.s32.totalorder %s17, 1
    %p56 = por %p54, %p55
    %p57 = scmp.ne.s32.totalorder %s48, %s49
    %p58 = scmp.eq.s32.totalorder %s17, 0
    %p59 = por %p57, %p58
    %p60 = scmp.ne.s32.totalorder %s48, %s49
    %p61 = scmp.eq.s32.totalorder %s18, 1
    %p62 = por %p60, %p61
    %p64 = scmp.ne.s32.totalorder %s49, %s63
    %p65 = scmp.eq.s32.totalorder %s18, 0
    %p66 = por %p64, %p65
    %s68 = sadd.s32 %s67, 1
    %p71 = scmp.eq.s32.totalorder %s12, 1
    %p72 = scmp.ne.s32.totalorder %s67, %s69
    %p73 = scmp.eq.s32.totalorder %s12, 0
    %p74 = por %p72, %p73
    %p75 = scmp.ne.s32.totalorder %s67, %s69
    %p76 = scmp.eq.s32.totalorder %s17, 1
    %p77 = por %p75, %p76
    %p78 = scmp.ne.s32.totalorder %s69, %s70
    %p79 = scmp.eq.s32.totalorder %s17, 0
    %p80 = por %p78, %p79
    %p81 = scmp.ne.s32.totalorder %s69, %s70
    %p82 = scmp.eq.s32.totalorder %s18, 1
    %p83 = por %p81, %p82
    %p85 = scmp.ne.s32.totalorder %s70, %s84
    %p86 = scmp.eq.s32.totalorder %s18, 0
    %p87 = por %p85, %p86
    %s88 = ssub.s32 %s12, %s19
    %p89 = scmp.eq.s32.totalorder %s88, 0
    %s91 = sadd.s32 %s90, 1
    %s92 = scalar_select %p89, %s90, %s91
    %p95 = pneg %p89
    %p96 = scmp.eq.s32.totalorder %s12, 1
    %p97 = por %p95, %p96
    %p98 = scmp.ne.s32.totalorder %s90, %s93
    %p99 = scmp.eq.s32.totalorder %s12, 0
    %p100 = por %p98, %p99
    %p101 = scmp.ne.s32.totalorder %s90, %s93
    %p102 = scmp.eq.s32.totalorder %s17, 1
    %p103 = por %p101, %p102
    %p104 = scmp.ne.s32.totalorder %s93, %s94
    %p105 = scmp.eq.s32.totalorder %s17, 0
    %p106 = por %p104, %p105
    %p107 = scmp.ne.s32.totalorder %s93, %s94
    %p108 = scmp.eq.s32.totalorder %s18, 1
    %p109 = por %p107, %p108
    %p111 = scmp.ne.s32.totalorder %s94, %s110
    %p112 = scmp.eq.s32.totalorder %s18, 0
    %p113 = por %p111, %p112
    %s114 = ssub.s32 %s12, %s19
    %p115 = scmp.eq.s32.totalorder %s114, 0
    %s117 = sadd.s32 %s116, 1
    %s118 = scalar_select %p115, %s116, %s117
    %p121 = pneg %p115
    %p122 = scmp.eq.s32.totalorder %s12, 1
    %p123 = por %p121, %p122
    %p124 = scmp.ne.s32.totalorder %s116, %s119
    %p125 = scmp.eq.s32.totalorder %s12, 0
    %p126 = por %p124, %p125
    %p127 = scmp.ne.s32.totalorder %s116, %s119
    %p128 = scmp.eq.s32.totalorder %s17, 1
    %p129 = por %p127, %p128
    %p130 = scmp.ne.s32.totalorder %s119, %s120
    %p131 = scmp.eq.s32.totalorder %s17, 0
    %p132 = por %p130, %p131
    %p133 = scmp.ne.s32.totalorder %s119, %s120
    %p134 = scmp.eq.s32.totalorder %s18, 1
    %p135 = por %p133, %p134
    %p137 = scmp.ne.s32.totalorder %s120, %s136
    %p138 = scmp.eq.s32.totalorder %s18, 0
    %p139 = por %p137, %p138
    %s140 = ssub.s32 %s12, %s19
    %p141 = scmp.eq.s32.totalorder %s140, 0
    %s143 = sadd.s32 %s142, 1
    %s144 = scalar_select %p141, %s142, %s143
    %p147 = pneg %p141
    %p148 = scmp.eq.s32.totalorder %s12, 1
    %p149 = por %p147, %p148
    %p150 = scmp.ne.s32.totalorder %s142, %s145
    %p151 = scmp.eq.s32.totalorder %s12, 0
    %p152 = por %p150, %p151
    %p153 = scmp.ne.s32.totalorder %s142, %s145
    %p154 = scmp.eq.s32.totalorder %s17, 1
    %p155 = por %p153, %p154
    %p156 = scmp.ne.s32.totalorder %s145, %s146
    %p157 = scmp.eq.s32.totalorder %s17, 0
    %p158 = por %p156, %p157
    %p159 = scmp.ne.s32.totalorder %s145, %s146
    %p160 = scmp.eq.s32.totalorder %s18, 1
    %p161 = por %p159, %p160
    %p163 = scmp.ne.s32.totalorder %s146, %s162
    %p164 = scmp.eq.s32.totalorder %s18, 0
    %p165 = por %p163, %p164
    %p166 = scmp.le.s32.totalorder 1, %s12
    %p167 = scmp.lt.s32.totalorder %s12, 3
    %p168 = pnand %p166, %p167
    %p169 = pneg %p168
    // Predicated region
    $region9: #{conv_unit_forward.2} parent=5 // pred_check
      _
    $region10: #{conv_unit_forward.2} parent=5 // pred_check_branch
      %171 = sbr.rel (%p168) target = $region12
    $region11: #{conv_unit_forward.2} parent=5 // pred_region
      %s172 = ssub.s32 %s12, 1
      // Predicated region
      $region13: #{conv_unit_forward.2} parent=11 // pred_check
        %p173 = pneg %p59
      $region14: #{conv_unit_forward.2} parent=11 // pred_check_branch
        %175 = sbr.rel (%p173) target = $region16
      $region15: #{conv_unit_forward.2} parent=11 // pred_region
        _
      $region16: #{conv_unit_forward.2} parent=11 // pred_fallthru
        _
      // Predicated region
      $region17: #{conv_unit_forward.2} parent=11 // pred_check
        %p176 = pneg %p80
      $region18: #{conv_unit_forward.2} parent=11 // pred_check_branch
        %178 = sbr.rel (%p176) target = $region20
      $region19: #{conv_unit_forward.2} parent=11 // pred_region
        _
      $region20: #{conv_unit_forward.2} parent=11 // pred_fallthru
        _
    $region12: #{conv_unit_forward.2} parent=5 // pred_fallthru
      _
    %p179 = scmp.lt.s32.totalorder %s12, 2
    // Predicated region
    $region21: #{conv_unit_forward.2} parent=5 // pred_check
      %p180 = pneg %p179
    $region22: #{conv_unit_forward.2} parent=5 // pred_check_branch
      %182 = sbr.rel (%p180) target = $region24
    $region23: #{conv_unit_forward.2} parent=5 // pred_region
      // Predicated region
      $region25: #{conv_unit_forward.2} parent=23 // pred_check
        %p183 = pneg %p32
      $region26: #{conv_unit_forward.2} parent=23 // pred_check_branch
        %185 = sbr.rel (%p183) target = $region28
      $region27: #{conv_unit_forward.2} parent=23 // pred_region
        %p186 = scmp.lt.s32.totalorder %s12, 1
        %s187 = scalar_select %p186, %s12, 1
        %s188 = smul.addr %s187, 6
        %s189 = smul.addr %s188, 4
        %s190 = scalar_lea.vmem %s0, %s189
      $region28: #{conv_unit_forward.2} parent=23 // pred_fallthru
        _
    $region24: #{conv_unit_forward.2} parent=5 // pred_fallthru
      _
    %p191 = scmp.le.s32.totalorder 1, %s12
    %p192 = scmp.lt.s32.totalorder %s12, 3
    %p193 = pnand %p191, %p192
    %p194 = pneg %p193
    // Predicated region
    $region29: #{conv_unit_forward.2} parent=5 // pred_check
      _
    $region30: #{conv_unit_forward.2} parent=5 // pred_check_branch
      %196 = sbr.rel (%p193) target = $region32
    $region31: #{conv_unit_forward.2} parent=5 // pred_region
      %s197 = ssub.s32 %s12, 1
      %p198 = scmp.lt.s32.totalorder %s17, 1
      %s199 = scalar_select %p198, %s17, 1
      %s200 = smul.addr %s199, 6
      %s201 = smul.addr %s200, 4
      %s202 = scalar_lea.vmem %s0, %s201
      %p203 = pneg %p38
      %p204 = pneg %p35
      %p205 = pneg %p59
      %p206 = pneg %p56
      %p207 = pneg %p80
      %p208 = pneg %p77
      %p209 = pneg %p106
      %p210 = pneg %p103
      %p211 = scmp.lt.s32.totalorder %s17, 1
      %s212 = scalar_select %p211, %s17, 1
      %s213 = smul.addr %s212, 4
      %s214 = smul.addr %s213, 8
      %s215 = scalar_lea.vmem %s3, %s214
      %p216 = pneg %p132
      %p217 = pneg %p129
      %p218 = scmp.lt.s32.totalorder %s17, 1
      %s219 = scalar_select %p218, %s17, 1
      %s220 = smul.addr %s219, 8
      %s221 = scalar_lea.vmem %s4, %s220
      %p222 = pneg %p158
      %p223 = pneg %p155
      %p224 = scmp.lt.s32.totalorder %s17, 1
      %s225 = scalar_select %p224, %s17, 1
      %s226 = smul.addr %s225, 8
      %s227 = scalar_lea.vmem %s5, %s226
      %p228 = scmp.lt.s32.totalorder %s17, 1
      %s229 = scalar_select %p228, %s17, 1
      %s230 = smul.addr %s229, 6
      %s231 = smul.addr %s230, 4
      %s232 = scalar_lea.vmem %s0, %s231
      %p233 = scmp.lt.s32.totalorder %s17, 1
      %s234 = scalar_select %p233, %s17, 1
      %s235 = smul.addr %s234, 4
      %s236 = smul.addr %s235, 8
      %s237 = scalar_lea.vmem %s3, %s236
      %p238 = scmp.lt.s32.totalorder %s17, 1
      %s239 = scalar_select %p238, %s17, 1
      %s240 = smul.addr %s239, 8
      %s241 = scalar_lea.vmem %s4, %s240
      %p242 = scmp.lt.s32.totalorder %s17, 1
      %s243 = scalar_select %p242, %s17, 1
      %s244 = smul.addr %s243, 8
      %s245 = scalar_lea.vmem %s5, %s244
      %v246 = vld [vmem:[%s232] sm:$0xff]
      %v247 = vld [vmem:[%s232 + $0x8] sm:$0xff]
      %v248 = vld [vmem:[%s232 + $0x10] sm:$0xff]
      %v249 = vld [vmem:[%s1] sm:$0xff]
      %s250 = scalar_lea.vmem %s1, 8
      %v251 = vld [vmem:[%s250] sm:$0xff]
      %v255 = vcombine.high %v246, %v246
      %v256 = vcombine.high %v247, %v247
      %257 = vrot.lane.b32.xlu0 %v246, 127
      %v258 = vpop.permute.xlu0 %257
      %259 = vrot.lane.b32.xlu0 %v255, 127
      %v260 = vpop.permute.xlu0 %259
      %261 = vrot.lane.b32.xlu0 %v247, 127
      %v262 = vpop.permute.xlu0 %261
      %263 = vrot.lane.b32.xlu0 %v256, 127
      %v264 = vpop.permute.xlu0 %263
      %265 = vrot.lane.b32.xlu0 %v248, 127
      %v266 = vpop.permute.xlu0 %265
      %vm267 = vcmask 1039360
      %v268 = vsel %vm267, %v258, %v260
      %v269 = vsel %vm267, %v260, %v262
      %v270 = vsel %vm267, %v262, %v264
      %v271 = vsel %vm267, %v264, %v266
      %vm272 = vcmask 31744
      %v274 = vsel %vm272, %v251, 0
      %vm276 = vcmask 1043456
      %v277 = vsel %vm276, %v268, 0
      %v279 = vsel %vm276, %v269, 0
      %v281 = vsel %vm276, %v270, 0
      %v283 = vsel %vm276, %v271, 0
      %285 = vmatprep.subr.mxu0 %v279
      %286 = vmatpush1.msra.mxu0 %v277
      %287 = vmatprep.subr.mxu0 0.0
      %288 = vmatpush1.msra.mxu0 0.0
      %289 = vmatprep.subr.mxu0 0.0
      %290 = vmatpush1.msra.mxu0 0.0
      %291 = vmatprep.subr.mxu0 0.0
      %292 = vmatpush1.msra.mxu0 0.0
      %293 = vmatprep.subr.mxu0 0.0
      %294 = vmatpush1.msra.mxu0 0.0
      %295 = vmatprep.subr.mxu0 0.0
      %296 = vmatpush1.msra.mxu0 0.0
      %297 = vmatprep.subr.mxu0 0.0
      %298 = vmatpush1.msra.mxu0 0.0
      %299 = vmatprep.subr.mxu0 0.0
      %300 = vmatpush1.msra.mxu0 0.0
      %301 = vmatprep.subr.mxu0 0.0
      %302 = vmatpush1.msra.mxu0 0.0
      %303 = vmatprep.subr.mxu0 0.0
      %304 = vmatpush1.msra.mxu0 0.0
      %305 = vmatprep.subr.mxu0 0.0
      %306 = vmatpush1.msra.mxu0 0.0
      %307 = vmatprep.subr.mxu0 0.0
      %308 = vmatpush1.msra.mxu0 0.0
      %309 = vmatprep.subr.mxu0 0.0
      %310 = vmatpush1.msra.mxu0 0.0
      %311 = vmatprep.subr.mxu0 0.0
      %312 = vmatpush1.msra.mxu0 0.0
      %313 = vmatprep.subr.mxu0 0.0
      %314 = vmatpush1.msra.mxu0 0.0
      %315 = vmatprep.subr.mxu0 0.0
      %316 = vmatpush1.msra.mxu0 0.0
      %317 = vmatprep.subr.mxu0 0.0
      %318 = vmatpush1.msra.mxu0 0.0
      %319 = vmatprep.subr.mxu0 0.0
      %320 = vmatpush1.msra.mxu0 0.0
      %321 = vmatprep.subr.mxu0 0.0
      %322 = vmatpush1.msra.mxu0 0.0
      %323 = vmatprep.subr.mxu0 0.0
      %324 = vmatpush1.msra.mxu0 0.0
      %325 = vmatprep.subr.mxu0 0.0
      %326 = vmatpush1.msra.mxu0 0.0
      %327 = vmatprep.subr.mxu0 0.0
      %328 = vmatpush1.msra.mxu0 0.0
      %329 = vmatprep.subr.mxu0 0.0
      %330 = vmatpush1.msra.mxu0 0.0
      %331 = vmatprep.subr.mxu0 0.0
      %332 = vmatpush1.msra.mxu0 0.0
      %333 = vmatprep.subr.mxu0 0.0
      %334 = vmatpush1.msra.mxu0 0.0
      %335 = vmatprep.subr.mxu0 0.0
      %336 = vmatpush1.msra.mxu0 0.0
      %337 = vmatprep.subr.mxu0 0.0
      %338 = vmatpush1.msra.mxu0 0.0
      %339 = vmatprep.subr.mxu0 0.0
      %340 = vmatpush1.msra.mxu0 0.0
      %341 = vmatprep.subr.mxu0 0.0
      %342 = vmatpush1.msra.mxu0 0.0
      %343 = vmatprep.subr.mxu0 0.0
      %344 = vmatpush1.msra.mxu0 0.0
      %345 = vmatprep.subr.mxu0 0.0
      %346 = vmatpush1.msra.mxu0 0.0
      %347 = vmatprep.subr.mxu0 0.0
      %348 = vmatpush1.msra.mxu0 0.0
      %349 = vmatprep.mubr.f32.mxu0 0.0
      %350 = vmatmul.mubr.f32.gmra.mrb[0].mxu0 %v274
      %v351 = vpop.f32.mrb[0].mxu0
      %v352 = vadd.f32 0.0, %v351
      %v353 = vpop.f32.mrb[0].mxu0
      %v354 = vadd.f32 0.0, %v353
      %355 = vdwg.mxu0
      %356 = vmatprep.subr.mxu0 %v283
      %357 = vmatpush1.msra.mxu0 %v281
      %358 = vmatprep.subr.mxu0 0.0
      %359 = vmatpush1.msra.mxu0 0.0
      %360 = vmatprep.subr.mxu0 0.0
      %361 = vmatpush1.msra.mxu0 0.0
      %362 = vmatprep.subr.mxu0 0.0
      %363 = vmatpush1.msra.mxu0 0.0
      %364 = vmatprep.subr.mxu0 0.0
      %365 = vmatpush1.msra.mxu0 0.0
      %366 = vmatprep.subr.mxu0 0.0
      %367 = vmatpush1.msra.mxu0 0.0
      %368 = vmatprep.subr.mxu0 0.0
      %369 = vmatpush1.msra.mxu0 0.0
      %370 = vmatprep.subr.mxu0 0.0
      %371 = vmatpush1.msra.mxu0 0.0
      %372 = vmatprep.subr.mxu0 0.0
      %373 = vmatpush1.msra.mxu0 0.0
      %374 = vmatprep.subr.mxu0 0.0
      %375 = vmatpush1.msra.mxu0 0.0
      %376 = vmatprep.subr.mxu0 0.0
      %377 = vmatpush1.msra.mxu0 0.0
      %378 = vmatprep.subr.mxu0 0.0
      %379 = vmatpush1.msra.mxu0 0.0
      %380 = vmatprep.subr.mxu0 0.0
      %381 = vmatpush1.msra.mxu0 0.0
      %382 = vmatprep.subr.mxu0 0.0
      %383 = vmatpush1.msra.mxu0 0.0
      %384 = vmatprep.subr.mxu0 0.0
      %385 = vmatpush1.msra.mxu0 0.0
      %386 = vmatprep.subr.mxu0 0.0
      %387 = vmatpush1.msra.mxu0 0.0
      %388 = vmatprep.subr.mxu0 0.0
      %389 = vmatpush1.msra.mxu0 0.0
      %390 = vmatprep.subr.mxu0 0.0
      %391 = vmatpush1.msra.mxu0 0.0
      %392 = vmatprep.subr.mxu0 0.0
      %393 = vmatpush1.msra.mxu0 0.0
      %394 = vmatprep.subr.mxu0 0.0
      %395 = vmatpush1.msra.mxu0 0.0
      %396 = vmatprep.subr.mxu0 0.0
      %397 = vmatpush1.msra.mxu0 0.0
      %398 = vmatprep.subr.mxu0 0.0
      %399 = vmatpush1.msra.mxu0 0.0
      %400 = vmatprep.subr.mxu0 0.0
      %401 = vmatpush1.msra.mxu0 0.0
      %402 = vmatprep.subr.mxu0 0.0
      %403 = vmatpush1.msra.mxu0 0.0
      %404 = vmatprep.subr.mxu0 0.0
      %405 = vmatpush1.msra.mxu0 0.0
      %406 = vmatprep.subr.mxu0 0.0
      %407 = vmatpush1.msra.mxu0 0.0
      %408 = vmatprep.subr.mxu0 0.0
      %409 = vmatpush1.msra.mxu0 0.0
      %410 = vmatprep.subr.mxu0 0.0
      %411 = vmatpush1.msra.mxu0 0.0
      %412 = vmatprep.subr.mxu0 0.0
      %413 = vmatpush1.msra.mxu0 0.0
      %414 = vmatprep.subr.mxu0 0.0
      %415 = vmatpush1.msra.mxu0 0.0
      %416 = vmatprep.subr.mxu0 0.0
      %417 = vmatpush1.msra.mxu0 0.0
      %418 = vmatprep.subr.mxu0 0.0
      %419 = vmatpush1.msra.mxu0 0.0
      %420 = vmatprep.mubr.f32.mxu0 0.0
      %421 = vmatmul.mubr.f32.gmra.mrb[0].mxu0 %v274
      %v422 = vpop.f32.mrb[0].mxu0
      %v423 = vadd.f32 0.0, %v422
      %v424 = vpop.f32.mrb[0].mxu0
      %v425 = vadd.f32 0.0, %v424
      %426 = vdwg.mxu0
      %v428 = vsel %vm272, %v249, 0
      %v430 = vsel %vm276, %v246, 0
      %v432 = vsel %vm276, %v255, 0
      %v434 = vsel %vm276, %v247, 0
      %v436 = vsel %vm276, %v256, 0
      %438 = vmatprep.subr.mxu0 %v432
      %439 = vmatpush1.msra.mxu0 %v430
      %440 = vmatprep.subr.mxu0 0.0
      %441 = vmatpush1.msra.mxu0 0.0
      %442 = vmatprep.subr.mxu0 0.0
      %443 = vmatpush1.msra.mxu0 0.0
      %444 = vmatprep.subr.mxu0 0.0
      %445 = vmatpush1.msra.mxu0 0.0
      %446 = vmatprep.subr.mxu0 0.0
      %447 = vmatpush1.msra.mxu0 0.0
      %448 = vmatprep.subr.mxu0 0.0
      %449 = vmatpush1.msra.mxu0 0.0
      %450 = vmatprep.subr.mxu0 0.0
      %451 = vmatpush1.msra.mxu0 0.0
      %452 = vmatprep.subr.mxu0 0.0
      %453 = vmatpush1.msra.mxu0 0.0
      %454 = vmatprep.subr.mxu0 0.0
      %455 = vmatpush1.msra.mxu0 0.0
      %456 = vmatprep.subr.mxu0 0.0
      %457 = vmatpush1.msra.mxu0 0.0
      %458 = vmatprep.subr.mxu0 0.0
      %459 = vmatpush1.msra.mxu0 0.0
      %460 = vmatprep.subr.mxu0 0.0
      %461 = vmatpush1.msra.mxu0 0.0
      %462 = vmatprep.subr.mxu0 0.0
      %463 = vmatpush1.msra.mxu0 0.0
      %464 = vmatprep.subr.mxu0 0.0
      %465 = vmatpush1.msra.mxu0 0.0
      %466 = vmatprep.subr.mxu0 0.0
      %467 = vmatpush1.msra.mxu0 0.0
      %468 = vmatprep.subr.mxu0 0.0
      %469 = vmatpush1.msra.mxu0 0.0
      %470 = vmatprep.subr.mxu0 0.0
      %471 = vmatpush1.msra.mxu0 0.0
      %472 = vmatprep.subr.mxu0 0.0
      %473 = vmatpush1.msra.mxu0 0.0
      %474 = vmatprep.subr.mxu0 0.0
      %475 = vmatpush1.msra.mxu0 0.0
      %476 = vmatprep.subr.mxu0 0.0
      %477 = vmatpush1.msra.mxu0 0.0
      %478 = vmatprep.subr.mxu0 0.0
      %479 = vmatpush1.msra.mxu0 0.0
      %480 = vmatprep.subr.mxu0 0.0
      %481 = vmatpush1.msra.mxu0 0.0
      %482 = vmatprep.subr.mxu0 0.0
      %483 = vmatpush1.msra.mxu0 0.0
      %484 = vmatprep.subr.mxu0 0.0
      %485 = vmatpush1.msra.mxu0 0.0
      %486 = vmatprep.subr.mxu0 0.0
      %487 = vmatpush1.msra.mxu0 0.0
      %488 = vmatprep.subr.mxu0 0.0
      %489 = vmatpush1.msra.mxu0 0.0
      %490 = vmatprep.subr.mxu0 0.0
      %491 = vmatpush1.msra.mxu0 0.0
      %492 = vmatprep.subr.mxu0 0.0
      %493 = vmatpush1.msra.mxu0 0.0
      %494 = vmatprep.subr.mxu0 0.0
      %495 = vmatpush1.msra.mxu0 0.0
      %496 = vmatprep.subr.mxu0 0.0
      %497 = vmatpush1.msra.mxu0 0.0
      %498 = vmatprep.subr.mxu0 0.0
      %499 = vmatpush1.msra.mxu0 0.0
      %500 = vmatprep.subr.mxu0 0.0
      %501 = vmatpush1.msra.mxu0 0.0
      %502 = vmatprep.mubr.f32.mxu0 0.0
      %503 = vmatmul.mubr.f32.gmra.mrb[0].mxu0 %v428
      %v504 = vpop.f32.mrb[0].mxu0
      %v505 = vadd.f32 %v352, %v504
      %v506 = vpop.f32.mrb[0].mxu0
      %v507 = vadd.f32 %v354, %v506
      %508 = vdwg.mxu0
      %509 = vmatprep.subr.mxu0 %v436
      %510 = vmatpush1.msra.mxu0 %v434
      %511 = vmatprep.subr.mxu0 0.0
      %512 = vmatpush1.msra.mxu0 0.0
      %513 = vmatprep.subr.mxu0 0.0
      %514 = vmatpush1.msra.mxu0 0.0
      %515 = vmatprep.subr.mxu0 0.0
      %516 = vmatpush1.msra.mxu0 0.0
      %517 = vmatprep.subr.mxu0 0.0
      %518 = vmatpush1.msra.mxu0 0.0
      %519 = vmatprep.subr.mxu0 0.0
      %520 = vmatpush1.msra.mxu0 0.0
      %521 = vmatprep.subr.mxu0 0.0
      %522 = vmatpush1.msra.mxu0 0.0
      %523 = vmatprep.subr.mxu0 0.0
      %524 = vmatpush1.msra.mxu0 0.0
      %525 = vmatprep.subr.mxu0 0.0
      %526 = vmatpush1.msra.mxu0 0.0
      %527 = vmatprep.subr.mxu0 0.0
      %528 = vmatpush1.msra.mxu0 0.0
      %529 = vmatprep.subr.mxu0 0.0
      %530 = vmatpush1.msra.mxu0 0.0
      %531 = vmatprep.subr.mxu0 0.0
      %532 = vmatpush1.msra.mxu0 0.0
      %533 = vmatprep.subr.mxu0 0.0
      %534 = vmatpush1.msra.mxu0 0.0
      %535 = vmatprep.subr.mxu0 0.0
      %536 = vmatpush1.msra.mxu0 0.0
      %537 = vmatprep.subr.mxu0 0.0
      %538 = vmatpush1.msra.mxu0 0.0
      %539 = vmatprep.subr.mxu0 0.0
      %540 = vmatpush1.msra.mxu0 0.0
      %541 = vmatprep.subr.mxu0 0.0
      %542 = vmatpush1.msra.mxu0 0.0
      %543 = vmatprep.subr.mxu0 0.0
      %544 = vmatpush1.msra.mxu0 0.0
      %545 = vmatprep.subr.mxu0 0.0
      %546 = vmatpush1.msra.mxu0 0.0
      %547 = vmatprep.subr.mxu0 0.0
      %548 = vmatpush1.msra.mxu0 0.0
      %549 = vmatprep.subr.mxu0 0.0
      %550 = vmatpush1.msra.mxu0 0.0
      %551 = vmatprep.subr.mxu0 0.0
      %552 = vmatpush1.msra.mxu0 0.0
      %553 = vmatprep.subr.mxu0 0.0
      %554 = vmatpush1.msra.mxu0 0.0
      %555 = vmatprep.subr.mxu0 0.0
      %556 = vmatpush1.msra.mxu0 0.0
      %557 = vmatprep.subr.mxu0 0.0
      %558 = vmatpush1.msra.mxu0 0.0
      %559 = vmatprep.subr.mxu0 0.0
      %560 = vmatpush1.msra.mxu0 0.0
      %561 = vmatprep.subr.mxu0 0.0
      %562 = vmatpush1.msra.mxu0 0.0
      %563 = vmatprep.subr.mxu0 0.0
      %564 = vmatpush1.msra.mxu0 0.0
      %565 = vmatprep.subr.mxu0 0.0
      %566 = vmatpush1.msra.mxu0 0.0
      %567 = vmatprep.subr.mxu0 0.0
      %568 = vmatpush1.msra.mxu0 0.0
      %569 = vmatprep.subr.mxu0 0.0
      %570 = vmatpush1.msra.mxu0 0.0
      %571 = vmatprep.subr.mxu0 0.0
      %572 = vmatpush1.msra.mxu0 0.0
      %573 = vmatprep.mubr.f32.mxu0 0.0
      %574 = vmatmul.mubr.f32.gmra.mrb[0].mxu0 %v428
      %v575 = vpop.f32.mrb[0].mxu0
      %v576 = vadd.f32 %v423, %v575
      %v577 = vpop.f32.mrb[0].mxu0
      %v578 = vadd.f32 %v425, %v577
      %579 = vdwg.mxu0
      %s580 = scalar_lea.vmem %s1, 16
      %v581 = vld [vmem:[%s580] sm:$0xff]
      %582 = vrot.lane.b32.xlu0 %v246, 126
      %v583 = vpop.permute.xlu0 %582
      %584 = vrot.lane.b32.xlu0 %v255, 126
      %v585 = vpop.permute.xlu0 %584
      %586 = vrot.lane.b32.xlu0 %v247, 126
      %v587 = vpop.permute.xlu0 %586
      %588 = vrot.lane.b32.xlu0 %v256, 126
      %v589 = vpop.permute.xlu0 %588
      %590 = vrot.lane.b32.xlu0 %v248, 126
      %v591 = vpop.permute.xlu0 %590
      %vm592 = vcmask 1031168
      %v593 = vsel %vm592, %v583, %v585
      %v594 = vsel %vm592, %v585, %v587
      %v595 = vsel %vm592, %v587, %v589
      %v596 = vsel %vm592, %v589, %v591
      %v598 = vsel %vm272, %v581, 0
      %v600 = vsel %vm276, %v593, 0
      %v602 = vsel %vm276, %v594, 0
      %v604 = vsel %vm276, %v595, 0
      %v606 = vsel %vm276, %v596, 0
      %608 = vmatprep.subr.mxu0 %v602
      %609 = vmatpush1.msra.mxu0 %v600
      %610 = vmatprep.subr.mxu0 0.0
      %611 = vmatpush1.msra.mxu0 0.0
      %612 = vmatprep.subr.mxu0 0.0
      %613 = vmatpush1.msra.mxu0 0.0
      %614 = vmatprep.subr.mxu0 0.0
      %615 = vmatpush1.msra.mxu0 0.0
      %616 = vmatprep.subr.mxu0 0.0
      %617 = vmatpush1.msra.mxu0 0.0
      %618 = vmatprep.subr.mxu0 0.0
      %619 = vmatpush1.msra.mxu0 0.0
      %620 = vmatprep.subr.mxu0 0.0
      %621 = vmatpush1.msra.mxu0 0.0
      %622 = vmatprep.subr.mxu0 0.0
      %623 = vmatpush1.msra.mxu0 0.0
      %624 = vmatprep.subr.mxu0 0.0
      %625 = vmatpush1.msra.mxu0 0.0
      %626 = vmatprep.subr.mxu0 0.0
      %627 = vmatpush1.msra.mxu0 0.0
      %628 = vmatprep.subr.mxu0 0.0
      %629 = vmatpush1.msra.mxu0 0.0
      %630 = vmatprep.subr.mxu0 0.0
      %631 = vmatpush1.msra.mxu0 0.0
      %632 = vmatprep.subr.mxu0 0.0
      %633 = vmatpush1.msra.mxu0 0.0
      %634 = vmatprep.subr.mxu0 0.0
      %635 = vmatpush1.msra.mxu0 0.0
      %636 = vmatprep.subr.mxu0 0.0
      %637 = vmatpush1.msra.mxu0 0.0
      %638 = vmatprep.subr.mxu0 0.0
      %639 = vmatpush1.msra.mxu0 0.0
      %640 = vmatprep.subr.mxu0 0.0
      %641 = vmatpush1.msra.mxu0 0.0
      %642 = vmatprep.subr.mxu0 0.0
      %643 = vmatpush1.msra.mxu0 0.0
      %644 = vmatprep.subr.mxu0 0.0
      %645 = vmatpush1.msra.mxu0 0.0
      %646 = vmatprep.subr.mxu0 0.0
      %647 = vmatpush1.msra.mxu0 0.0
      %648 = vmatprep.subr.mxu0 0.0
      %649 = vmatpush1.msra.mxu0 0.0
      %650 = vmatprep.subr.mxu0 0.0
      %651 = vmatpush1.msra.mxu0 0.0
      %652 = vmatprep.subr.mxu0 0.0
      %653 = vmatpush1.msra.mxu0 0.0
      %654 = vmatprep.subr.mxu0 0.0
      %655 = vmatpush1.msra.mxu0 0.0
      %656 = vmatprep.subr.mxu0 0.0
      %657 = vmatpush1.msra.mxu0 0.0
      %658 = vmatprep.subr.mxu0 0.0
      %659 = vmatpush1.msra.mxu0 0.0
      %660 = vmatprep.subr.mxu0 0.0
      %661 = vmatpush1.msra.mxu0 0.0
      %662 = vmatprep.subr.mxu0 0.0
      %663 = vmatpush1.msra.mxu0 0.0
      %664 = vmatprep.subr.mxu0 0.0
      %665 = vmatpush1.msra.mxu0 0.0
      %666 = vmatprep.subr.mxu0 0.0
      %667 = vmatpush1.msra.mxu0 0.0
      %668 = vmatprep.subr.mxu0 0.0
      %669 = vmatpush1.msra.mxu0 0.0
      %670 = vmatprep.subr.mxu0 0.0
      %671 = vmatpush1.msra.mxu0 0.0
      %672 = vmatprep.mubr.f32.mxu0 0.0
      %673 = vmatmul.mubr.f32.gmra.mrb[0].mxu0 %v598
      %v674 = vpop.f32.mrb[0].mxu0
      %v675 = vadd.f32 0.0, %v674
      %v676 = vpop.f32.mrb[0].mxu0
      %v677 = vadd.f32 0.0, %v676
      %678 = vdwg.mxu0
      %679 = vmatprep.subr.mxu0 %v606
      %680 = vmatpush1.msra.mxu0 %v604
      %681 = vmatprep.subr.mxu0 0.0
      %682 = vmatpush1.msra.mxu0 0.0
      %683 = vmatprep.subr.mxu0 0.0
      %684 = vmatpush1.msra.mxu0 0.0
      %685 = vmatprep.subr.mxu0 0.0
      %686 = vmatpush1.msra.mxu0 0.0
      %687 = vmatprep.subr.mxu0 0.0
      %688 = vmatpush1.msra.mxu0 0.0
      %689 = vmatprep.subr.mxu0 0.0
      %690 = vmatpush1.msra.mxu0 0.0
      %691 = vmatprep.subr.mxu0 0.0
      %692 = vmatpush1.msra.mxu0 0.0
      %693 = vmatprep.subr.mxu0 0.0
      %694 = vmatpush1.msra.mxu0 0.0
      %695 = vmatprep.subr.mxu0 0.0
      %696 = vmatpush1.msra.mxu0 0.0
      %697 = vmatprep.subr.mxu0 0.0
      %698 = vmatpush1.msra.mxu0 0.0
      %699 = vmatprep.subr.mxu0 0.0
      %700 = vmatpush1.msra.mxu0 0.0
      %701 = vmatprep.subr.mxu0 0.0
      %702 = vmatpush1.msra.mxu0 0.0
      %703 = vmatprep.subr.mxu0 0.0
      %704 = vmatpush1.msra.mxu0 0.0
      %705 = vmatprep.subr.mxu0 0.0
      %706 = vmatpush1.msra.mxu0 0.0
      %707 = vmatprep.subr.mxu0 0.0
      %708 = vmatpush1.msra.mxu0 0.0
      %709 = vmatprep.subr.mxu0 0.0
      %710 = vmatpush1.msra.mxu0 0.0
      %711 = vmatprep.subr.mxu0 0.0
      %712 = vmatpush1.msra.mxu0 0.0
      %713 = vmatprep.subr.mxu0 0.0
      %714 = vmatpush1.msra.mxu0 0.0
      %715 = vmatprep.subr.mxu0 0.0
      %716 = vmatpush1.msra.mxu0 0.0
      %717 = vmatprep.subr.mxu0 0.0
      %718 = vmatpush1.msra.mxu0 0.0
      %719 = vmatprep.subr.mxu0 0.0
      %720 = vmatpush1.msra.mxu0 0.0
      %721 = vmatprep.subr.mxu0 0.0
      %722 = vmatpush1.msra.mxu0 0.0
      %723 = vmatprep.subr.mxu0 0.0
      %724 = vmatpush1.msra.mxu0 0.0
      %725 = vmatprep.subr.mxu0 0.0
      %726 = vmatpush1.msra.mxu0 0.0
      %727 = vmatprep.subr.mxu0 0.0
      %728 = vmatpush1.msra.mxu0 0.0
      %729 = vmatprep.subr.mxu0 0.0
      %730 = vmatpush1.msra.mxu0 0.0
      %731 = vmatprep.subr.mxu0 0.0
      %732 = vmatpush1.msra.mxu0 0.0
      %733 = vmatprep.subr.mxu0 0.0
      %734 = vmatpush1.msra.mxu0 0.0
      %735 = vmatprep.subr.mxu0 0.0
      %736 = vmatpush1.msra.mxu0 0.0
      %737 = vmatprep.subr.mxu0 0.0
      %738 = vmatpush1.msra.mxu0 0.0
      %739 = vmatprep.subr.mxu0 0.0
      %740 = vmatpush1.msra.mxu0 0.0
      %741 = vmatprep.subr.mxu0 0.0
      %742 = vmatpush1.msra.mxu0 0.0
      %743 = vmatprep.mubr.f32.mxu0 0.0
      %744 = vmatmul.mubr.f32.gmra.mrb[0].mxu0 %v598
      %v745 = vpop.f32.mrb[0].mxu0
      %v746 = vadd.f32 0.0, %v745
      %v747 = vpop.f32.mrb[0].mxu0
      %v748 = vadd.f32 0.0, %v747
      %749 = vdwg.mxu0
      %v750 = vadd.f32 %v505, %v675
      %v751 = vadd.f32 %v507, %v677
      %v752 = vadd.f32 %v576, %v746
      %v753 = vadd.f32 %v578, %v748
      %s754 = scalar_lea.vmem %s1, 24
      %v755 = vld [vmem:[%s754] sm:$0xff]
      %756 = vrot.lane.b32.xlu0 %v246, 120
      %v757 = vpop.permute.xlu0 %756
      %758 = vrot.lane.b32.xlu0 %v255, 120
      %v759 = vpop.permute.xlu0 %758
      %760 = vrot.lane.b32.xlu0 %v247, 120
      %v761 = vpop.permute.xlu0 %760
      %762 = vrot.lane.b32.xlu0 %v256, 120
      %v763 = vpop.permute.xlu0 %762
      %764 = vrot.lane.b32.xlu0 %v248, 120
      %v765 = vpop.permute.xlu0 %764
      %vm766 = vcmask 982016
      %v767 = vsel %vm766, %v757, %v759
      %v768 = vsel %vm766, %v759, %v761
      %v769 = vsel %vm766, %v761, %v763
      %v770 = vsel %vm766, %v763, %v765
      %v772 = vsel %vm272, %v755, 0
      %v774 = vsel %vm276, %v767, 0
      %v776 = vsel %vm276, %v768, 0
      %v778 = vsel %vm276, %v769, 0
      %v780 = vsel %vm276, %v770, 0
      %782 = vmatprep.subr.mxu0 %v776
      %783 = vmatpush1.msra.mxu0 %v774
      %784 = vmatprep.subr.mxu0 0.0
      %785 = vmatpush1.msra.mxu0 0.0
      %786 = vmatprep.subr.mxu0 0.0
      %787 = vmatpush1.msra.mxu0 0.0
      %788 = vmatprep.subr.mxu0 0.0
      %789 = vmatpush1.msra.mxu0 0.0
      %790 = vmatprep.subr.mxu0 0.0
      %791 = vmatpush1.msra.mxu0 0.0
      %792 = vmatprep.subr.mxu0 0.0
      %793 = vmatpush1.msra.mxu0 0.0
      %794 = vmatprep.subr.mxu0 0.0
      %795 = vmatpush1.msra.mxu0 0.0
      %796 = vmatprep.subr.mxu0 0.0
      %797 = vmatpush1.msra.mxu0 0.0
      %798 = vmatprep.subr.mxu0 0.0
      %799 = vmatpush1.msra.mxu0 0.0
      %800 = vmatprep.subr.mxu0 0.0
      %801 = vmatpush1.msra.mxu0 0.0
      %802 = vmatprep.subr.mxu0 0.0
      %803 = vmatpush1.msra.mxu0 0.0
      %804 = vmatprep.subr.mxu0 0.0
      %805 = vmatpush1.msra.mxu0 0.0
      %806 = vmatprep.subr.mxu0 0.0
      %807 = vmatpush1.msra.mxu0 0.0
      %808 = vmatprep.subr.mxu0 0.0
      %809 = vmatpush1.msra.mxu0 0.0
      %810 = vmatprep.subr.mxu0 0.0
      %811 = vmatpush1.msra.mxu0 0.0
      %812 = vmatprep.subr.mxu0 0.0
      %813 = vmatpush1.msra.mxu0 0.0
      %814 = vmatprep.subr.mxu0 0.0
      %815 = vmatpush1.msra.mxu0 0.0
      %816 = vmatprep.subr.mxu0 0.0
      %817 = vmatpush1.msra.mxu0 0.0
      %818 = vmatprep.subr.mxu0 0.0
      %819 = vmatpush1.msra.mxu0 0.0
      %820 = vmatprep.subr.mxu0 0.0
      %821 = vmatpush1.msra.mxu0 0.0
      %822 = vmatprep.subr.mxu0 0.0
      %823 = vmatpush1.msra.mxu0 0.0
      %824 = vmatprep.subr.mxu0 0.0
      %825 = vmatpush1.msra.mxu0 0.0
      %826 = vmatprep.subr.mxu0 0.0
      %827 = vmatpush1.msra.mxu0 0.0
      %828 = vmatprep.subr.mxu0 0.0
      %829 = vmatpush1.msra.mxu0 0.0
      %830 = vmatprep.subr.mxu0 0.0
      %831 = vmatpush1.msra.mxu0 0.0
      %832 = vmatprep.subr.mxu0 0.0
      %833 = vmatpush1.msra.mxu0 0.0
      %834 = vmatprep.subr.mxu0 0.0
      %835 = vmatpush1.msra.mxu0 0.0
      %836 = vmatprep.subr.mxu0 0.0
      %837 = vmatpush1.msra.mxu0 0.0
      %838 = vmatprep.subr.mxu0 0.0
      %839 = vmatpush1.msra.mxu0 0.0
      %840 = vmatprep.subr.mxu0 0.0
      %841 = vmatpush1.msra.mxu0 0.0
      %842 = vmatprep.subr.mxu0 0.0
      %843 = vmatpush1.msra.mxu0 0.0
      %844 = vmatprep.subr.mxu0 0.0
      %845 = vmatpush1.msra.mxu0 0.0
      %846 = vmatprep.mubr.f32.mxu0 0.0
      %847 = vmatmul.mubr.f32.gmra.mrb[0].mxu0 %v772
      %v848 = vpop.f32.mrb[0].mxu0
      %v849 = vadd.f32 0.0, %v848
      %v850 = vpop.f32.mrb[0].mxu0
      %v851 = vadd.f32 0.0, %v850
      %852 = vdwg.mxu0
      %853 = vmatprep.subr.mxu0 %v780
      %854 = vmatpush1.msra.mxu0 %v778
      %855 = vmatprep.subr.mxu0 0.0
      %856 = vmatpush1.msra.mxu0 0.0
      %857 = vmatprep.subr.mxu0 0.0
      %858 = vmatpush1.msra.mxu0 0.0
      %859 = vmatprep.subr.mxu0 0.0
      %860 = vmatpush1.msra.mxu0 0.0
      %861 = vmatprep.subr.mxu0 0.0
      %862 = vmatpush1.msra.mxu0 0.0
      %863 = vmatprep.subr.mxu0 0.0
      %864 = vmatpush1.msra.mxu0 0.0
      %865 = vmatprep.subr.mxu0 0.0
      %866 = vmatpush1.msra.mxu0 0.0
      %867 = vmatprep.subr.mxu0 0.0
      %868 = vmatpush1.msra.mxu0 0.0
      %869 = vmatprep.subr.mxu0 0.0
      %870 = vmatpush1.msra.mxu0 0.0
      %871 = vmatprep.subr.mxu0 0.0
      %872 = vmatpush1.msra.mxu0 0.0
      %873 = vmatprep.subr.mxu0 0.0
      %874 = vmatpush1.msra.mxu0 0.0
      %875 = vmatprep.subr.mxu0 0.0
      %876 = vmatpush1.msra.mxu0 0.0
      %877 = vmatprep.subr.mxu0 0.0
      %878 = vmatpush1.msra.mxu0 0.0
      %879 = vmatprep.subr.mxu0 0.0
      %880 = vmatpush1.msra.mxu0 0.0
      %881 = vmatprep.subr.mxu0 0.0
      %882 = vmatpush1.msra.mxu0 0.0
      %883 = vmatprep.subr.mxu0 0.0
      %884 = vmatpush1.msra.mxu0 0.0
      %885 = vmatprep.subr.mxu0 0.0
      %886 = vmatpush1.msra.mxu0 0.0
      %887 = vmatprep.subr.mxu0 0.0
      %888 = vmatpush1.msra.mxu0 0.0
      %889 = vmatprep.subr.mxu0 0.0
      %890 = vmatpush1.msra.mxu0 0.0
      %891 = vmatprep.subr.mxu0 0.0
      %892 = vmatpush1.msra.mxu0 0.0
      %893 = vmatprep.subr.mxu0 0.0
      %894 = vmatpush1.msra.mxu0 0.0
      %895 = vmatprep.subr.mxu0 0.0
      %896 = vmatpush1.msra.mxu0 0.0
      %897 = vmatprep.subr.mxu0 0.0
      %898 = vmatpush1.msra.mxu0 0.0
      %899 = vmatprep.subr.mxu0 0.0
      %900 = vmatpush1.msra.mxu0 0.0
      %901 = vmatprep.subr.mxu0 0.0
      %902 = vmatpush1.msra.mxu0 0.0
      %903 = vmatprep.subr.mxu0 0.0
      %904 = vmatpush1.msra.mxu0 0.0
      %905 = vmatprep.subr.mxu0 0.0
      %906 = vmatpush1.msra.mxu0 0.0
      %907 = vmatprep.subr.mxu0 0.0
      %908 = vmatpush1.msra.mxu0 0.0
      %909 = vmatprep.subr.mxu0 0.0
      %910 = vmatpush1.msra.mxu0 0.0
      %911 = vmatprep.subr.mxu0 0.0
      %912 = vmatpush1.msra.mxu0 0.0
      %913 = vmatprep.subr.mxu0 0.0
      %914 = vmatpush1.msra.mxu0 0.0
      %915 = vmatprep.subr.mxu0 0.0
      %916 = vmatpush1.msra.mxu0 0.0
      %917 = vmatprep.mubr.f32.mxu0 0.0
      %918 = vmatmul.mubr.f32.gmra.mrb[0].mxu0 %v772
      %v919 = vpop.f32.mrb[0].mxu0
      %v920 = vadd.f32 0.0, %v919
      %v921 = vpop.f32.mrb[0].mxu0
      %v922 = vadd.f32 0.0, %v921
      %923 = vdwg.mxu0
      %v924 = vadd.f32 %v750, %v849
      %v925 = vadd.f32 %v751, %v851
      %v926 = vadd.f32 %v752, %v920
      %v927 = vadd.f32 %v753, %v922
      %s928 = scalar_lea.vmem %s1, 32
      %v929 = vld [vmem:[%s928] sm:$0xff]
      %930 = vrot.lane.b32.xlu0 %v246, 119
      %v931 = vpop.permute.xlu0 %930
      %932 = vrot.lane.b32.xlu0 %v255, 119
      %v933 = vpop.permute.xlu0 %932
      %934 = vrot.lane.b32.xlu0 %v247, 119
      %v935 = vpop.permute.xlu0 %934
      %936 = vrot.lane.b32.xlu0 %v256, 119
      %v937 = vpop.permute.xlu0 %936
      %938 = vrot.lane.b32.xlu0 %v248, 119
      %v939 = vpop.permute.xlu0 %938
      %vm940 = vcmask 973824
      %v941 = vsel %vm940, %v931, %v933
      %v942 = vsel %vm940, %v933, %v935
      %v943 = vsel %vm940, %v935, %v937
      %v944 = vsel %vm940, %v937, %v939
      %v946 = vsel %vm272, %v929, 0
      %v948 = vsel %vm276, %v941, 0
      %v950 = vsel %vm276, %v942, 0
      %v952 = vsel %vm276, %v943, 0
      %v954 = vsel %vm276, %v944, 0
      %956 = vmatprep.subr.mxu0 %v950
      %957 = vmatpush1.msra.mxu0 %v948
      %958 = vmatprep.subr.mxu0 0.0
      %959 = vmatpush1.msra.mxu0 0.0
      %960 = vmatprep.subr.mxu0 0.0
      %961 = vmatpush1.msra.mxu0 0.0
      %962 = vmatprep.subr.mxu0 0.0
      %963 = vmatpush1.msra.mxu0 0.0
      %964 = vmatprep.subr.mxu0 0.0
      %965 = vmatpush1.msra.mxu0 0.0
      %966 = vmatprep.subr.mxu0 0.0
      %967 = vmatpush1.msra.mxu0 0.0
      %968 = vmatprep.subr.mxu0 0.0
      %969 = vmatpush1.msra.mxu0 0.0
      %970 = vmatprep.subr.mxu0 0.0
      %971 = vmatpush1.msra.mxu0 0.0
      %972 = vmatprep.subr.mxu0 0.0
      %973 = vmatpush1.msra.mxu0 0.0
      %974 = vmatprep.subr.mxu0 0.0
      %975 = vmatpush1.msra.mxu0 0.0
      %976 = vmatprep.subr.mxu0 0.0
      %977 = vmatpush1.msra.mxu0 0.0
      %978 = vmatprep.subr.mxu0 0.0
      %979 = vmatpush1.msra.mxu0 0.0
      %980 = vmatprep.subr.mxu0 0.0
      %981 = vmatpush1.msra.mxu0 0.0
      %982 = vmatprep.subr.mxu0 0.0
      %983 = vmatpush1.msra.mxu0 0.0
      %984 = vmatprep.subr.mxu0 0.0
      %985 = vmatpush1.msra.mxu0 0.0
      %986 = vmatprep.subr.mxu0 0.0
      %987 = vmatpush1.msra.mxu0 0.0
      %988 = vmatprep.subr.mxu0 0.0
      %989 = vmatpush1.msra.mxu0 0.0
      %990 = vmatprep.subr.mxu0 0.0
      %991 = vmatpush1.msra.mxu0 0.0
      %992 = vmatprep.subr.mxu0 0.0
      %993 = vmatpush1.msra.mxu0 0.0
      %994 = vmatprep.subr.mxu0 0.0
      %995 = vmatpush1.msra.mxu0 0.0
      %996 = vmatprep.subr.mxu0 0.0
      %997 = vmatpush1.msra.mxu0 0.0
      %998 = vmatprep.subr.mxu0 0.0
      %999 = vmatpush1.msra.mxu0 0.0
      %1000 = vmatprep.subr.mxu0 0.0
      %1001 = vmatpush1.msra.mxu0 0.0
      %1002 = vmatprep.subr.mxu0 0.0
      %1003 = vmatpush1.msra.mxu0 0.0
      %1004 = vmatprep.subr.mxu0 0.0
      %1005 = vmatpush1.msra.mxu0 0.0
      %1006 = vmatprep.subr.mxu0 0.0
      %1007 = vmatpush1.msra.mxu0 0.0
      %1008 = vmatprep.subr.mxu0 0.0
      %1009 = vmatpush1.msra.mxu0 0.0
      %1010 = vmatprep.subr.mxu0 0.0
      %1011 = vmatpush1.msra.mxu0 0.0
      %1012 = vmatprep.subr.mxu0 0.0
      %1013 = vmatpush1.msra.mxu0 0.0
      %1014 = vmatprep.subr.mxu0 0.0
      %1015 = vmatpush1.msra.mxu0 0.0
      %1016 = vmatprep.subr.mxu0 0.0
      %1017 = vmatpush1.msra.mxu0 0.0
      %1018 = vmatprep.subr.mxu0 0.0
      %1019 = vmatpush1.msra.mxu0 0.0
      %1020 = vmatprep.mubr.f32.mxu0 0.0
      %1021 = vmatmul.mubr.f32.gmra.mrb[0].mxu0 %v946
      %v1022 = vpop.f32.mrb[0].mxu0
      %v1023 = vadd.f32 0.0, %v1022
      %v1024 = vpop.f32.mrb[0].mxu0
      %v1025 = vadd.f32 0.0, %v1024
      %1026 = vdwg.mxu0
      %1027 = vmatprep.subr.mxu0 %v954
      %1028 = vmatpush1.msra.mxu0 %v952
      %1029 = vmatprep.subr.mxu0 0.0
      %1030 = vmatpush1.msra.mxu0 0.0
      %1031 = vmatprep.subr.mxu0 0.0
      %1032 = vmatpush1.msra.mxu0 0.0
      %1033 = vmatprep.subr.mxu0 0.0
      %1034 = vmatpush1.msra.mxu0 0.0
      %1035 = vmatprep.subr.mxu0 0.0
      %1036 = vmatpush1.msra.mxu0 0.0
      %1037 = vmatprep.subr.mxu0 0.0
      %1038 = vmatpush1.msra.mxu0 0.0
      %1039 = vmatprep.subr.mxu0 0.0
      %1040 = vmatpush1.msra.mxu0 0.0
      %1041 = vmatprep.subr.mxu0 0.0
      %1042 = vmatpush1.msra.mxu0 0.0
      %1043 = vmatprep.subr.mxu0 0.0
      %1044 = vmatpush1.msra.mxu0 0.0
      %1045 = vmatprep.subr.mxu0 0.0
      %1046 = vmatpush1.msra.mxu0 0.0
      %1047 = vmatprep.subr.mxu0 0.0
      %1048 = vmatpush1.msra.mxu0 0.0
      %1049 = vmatprep.subr.mxu0 0.0
      %1050 = vmatpush1.msra.mxu0 0.0
      %1051 = vmatprep.subr.mxu0 0.0
      %1052 = vmatpush1.msra.mxu0 0.0
      %1053 = vmatprep.subr.mxu0 0.0
      %1054 = vmatpush1.msra.mxu0 0.0
      %1055 = vmatprep.subr.mxu0 0.0
      %1056 = vmatpush1.msra.mxu0 0.0
      %1057 = vmatprep.subr.mxu0 0.0
      %1058 = vmatpush1.msra.mxu0 0.0
      %1059 = vmatprep.subr.mxu0 0.0
      %1060 = vmatpush1.msra.mxu0 0.0
      %1061 = vmatprep.subr.mxu0 0.0
      %1062 = vmatpush1.msra.mxu0 0.0
      %1063 = vmatprep.subr.mxu0 0.0
      %1064 = vmatpush1.msra.mxu0 0.0
      %1065 = vmatprep.subr.mxu0 0.0
      %1066 = vmatpush1.msra.mxu0 0.0
      %1067 = vmatprep.subr.mxu0 0.0
      %1068 = vmatpush1.msra.mxu0 0.0
      %1069 = vmatprep.subr.mxu0 0.0
      %1070 = vmatpush1.msra.mxu0 0.0
      %1071 = vmatprep.subr.mxu0 0.0
      %1072 = vmatpush1.msra.mxu0 0.0
      %1073 = vmatprep.subr.mxu0 0.0
      %1074 = vmatpush1.msra.mxu0 0.0
      %1075 = vmatprep.subr.mxu0 0.0
      %1076 = vmatpush1.msra.mxu0 0.0
      %1077 = vmatprep.subr.mxu0 0.0
      %1078 = vmatpush1.msra.mxu0 0.0
      %1079 = vmatprep.subr.mxu0 0.0
      %1080 = vmatpush1.msra.mxu0 0.0
      %1081 = vmatprep.subr.mxu0 0.0
      %1082 = vmatpush1.msra.mxu0 0.0
      %1083 = vmatprep.subr.mxu0 0.0
      %1084 = vmatpush1.msra.mxu0 0.0
      %1085 = vmatprep.subr.mxu0 0.0
      %1086 = vmatpush1.msra.mxu0 0.0
      %1087 = vmatprep.subr.mxu0 0.0
      %1088 = vmatpush1.msra.mxu0 0.0
      %1089 = vmatprep.subr.mxu0 0.0
      %1090 = vmatpush1.msra.mxu0 0.0
      %1091 = vmatprep.mubr.f32.mxu0 0.0
      %1092 = vmatmul.mubr.f32.gmra.mrb[0].mxu0 %v946
      %v1093 = vpop.f32.mrb[0].mxu0
      %v1094 = vadd.f32 0.0, %v1093
      %v1095 = vpop.f32.mrb[0].mxu0
      %v1096 = vadd.f32 0.0, %v1095
      %1097 = vdwg.mxu0
      %v1098 = vadd.f32 %v924, %v1023
      %v1099 = vadd.f32 %v925, %v1025
      %v1100 = vadd.f32 %v926, %v1094
      %v1101 = vadd.f32 %v927, %v1096
      %s1102 = scalar_lea.vmem %s1, 40
      %v1103 = vld [vmem:[%s1102] sm:$0xff]
      %1104 = vrot.lane.b32.xlu0 %v246, 118
      %v1105 = vpop.permute.xlu0 %1104
      %1106 = vrot.lane.b32.xlu0 %v255, 118
      %v1107 = vpop.permute.xlu0 %1106
      %1108 = vrot.lane.b32.xlu0 %v247, 118
      %v1109 = vpop.permute.xlu0 %1108
      %1110 = vrot.lane.b32.xlu0 %v256, 118
      %v1111 = vpop.permute.xlu0 %1110
      %1112 = vrot.lane.b32.xlu0 %v248, 118
      %v1113 = vpop.permute.xlu0 %1112
      %vm1114 = vcmask 965632
      %v1115 = vsel %vm1114, %v1105, %v1107
      %v1116 = vsel %vm1114, %v1107, %v1109
      %v1117 = vsel %vm1114, %v1109, %v1111
      %v1118 = vsel %vm1114, %v1111, %v1113
      %v1120 = vsel %vm272, %v1103, 0
      %v1122 = vsel %vm276, %v1115, 0
      %v1124 = vsel %vm276, %v1116, 0
      %v1126 = vsel %vm276, %v1117, 0
      %v1128 = vsel %vm276, %v1118, 0
      %1130 = vmatprep.subr.mxu0 %v1124
      %1131 = vmatpush1.msra.mxu0 %v1122
      %1132 = vmatprep.subr.mxu0 0.0
      %1133 = vmatpush1.msra.mxu0 0.0
      %1134 = vmatprep.subr.mxu0 0.0
      %1135 = vmatpush1.msra.mxu0 0.0
      %1136 = vmatprep.subr.mxu0 0.0
      %1137 = vmatpush1.msra.mxu0 0.0
      %1138 = vmatprep.subr.mxu0 0.0
      %1139 = vmatpush1.msra.mxu0 0.0
      %1140 = vmatprep.subr.mxu0 0.0
      %1141 = vmatpush1.msra.mxu0 0.0
      %1142 = vmatprep.subr.mxu0 0.0
      %1143 = vmatpush1.msra.mxu0 0.0
      %1144 = vmatprep.subr.mxu0 0.0
      %1145 = vmatpush1.msra.mxu0 0.0
      %1146 = vmatprep.subr.mxu0 0.0
      %1147 = vmatpush1.msra.mxu0 0.0
      %1148 = vmatprep.subr.mxu0 0.0
      %1149 = vmatpush1.msra.mxu0 0.0
      %1150 = vmatprep.subr.mxu0 0.0
      %1151 = vmatpush1.msra.mxu0 0.0
      %1152 = vmatprep.subr.mxu0 0.0
      %1153 = vmatpush1.msra.mxu0 0.0
      %1154 = vmatprep.subr.mxu0 0.0
      %1155 = vmatpush1.msra.mxu0 0.0
      %1156 = vmatprep.subr.mxu0 0.0
      %1157 = vmatpush1.msra.mxu0 0.0
      %1158 = vmatprep.subr.mxu0 0.0
      %1159 = vmatpush1.msra.mxu0 0.0
      %1160 = vmatprep.subr.mxu0 0.0
      %1161 = vmatpush1.msra.mxu0 0.0
      %1162 = vmatprep.subr.mxu0 0.0
      %1163 = vmatpush1.msra.mxu0 0.0
      %1164 = vmatprep.subr.mxu0 0.0
      %1165 = vmatpush1.msra.mxu0 0.0
      %1166 = vmatprep.subr.mxu0 0.0
      %1167 = vmatpush1.msra.mxu0 0.0
      %1168 = vmatprep.subr.mxu0 0.0
      %1169 = vmatpush1.msra.mxu0 0.0
      %1170 = vmatprep.subr.mxu0 0.0
      %1171 = vmatpush1.msra.mxu0 0.0
      %1172 = vmatprep.subr.mxu0 0.0
      %1173 = vmatpush1.msra.mxu0 0.0
      %1174 = vmatprep.subr.mxu0 0.0
      %1175 = vmatpush1.msra.mxu0 0.0
      %1176 = vmatprep.subr.mxu0 0.0
      %1177 = vmatpush1.msra.mxu0 0.0
      %1178 = vmatprep.subr.mxu0 0.0
      %1179 = vmatpush1.msra.mxu0 0.0
      %1180 = vmatprep.subr.mxu0 0.0
      %1181 = vmatpush1.msra.mxu0 0.0
      %1182 = vmatprep.subr.mxu0 0.0
      %1183 = vmatpush1.msra.mxu0 0.0
      %1184 = vmatprep.subr.mxu0 0.0
      %1185 = vmatpush1.msra.mxu0 0.0
      %1186 = vmatprep.subr.mxu0 0.0
      %1187 = vmatpush1.msra.mxu0 0.0
      %1188 = vmatprep.subr.mxu0 0.0
      %1189 = vmatpush1.msra.mxu0 0.0
      %1190 = vmatprep.subr.mxu0 0.0
      %1191 = vmatpush1.msra.mxu0 0.0
      %1192 = vmatprep.subr.mxu0 0.0
      %1193 = vmatpush1.msra.mxu0 0.0
      %1194 = vmatprep.mubr.f32.mxu0 0.0
      %1195 = vmatmul.mubr.f32.gmra.mrb[0].mxu0 %v1120
      %v1196 = vpop.f32.mrb[0].mxu0
      %v1197 = vadd.f32 0.0, %v1196
      %v1198 = vpop.f32.mrb[0].mxu0
      %v1199 = vadd.f32 0.0, %v1198
      %1200 = vdwg.mxu0
      %1201 = vmatprep.subr.mxu0 %v1128
      %1202 = vmatpush1.msra.mxu0 %v1126
      %1203 = vmatprep.subr.mxu0 0.0
      %1204 = vmatpush1.msra.mxu0 0.0
      %1205 = vmatprep.subr.mxu0 0.0
      %1206 = vmatpush1.msra.mxu0 0.0
      %1207 = vmatprep.subr.mxu0 0.0
      %1208 = vmatpush1.msra.mxu0 0.0
      %1209 = vmatprep.subr.mxu0 0.0
      %1210 = vmatpush1.msra.mxu0 0.0
      %1211 = vmatprep.subr.mxu0 0.0
      %1212 = vmatpush1.msra.mxu0 0.0
      %1213 = vmatprep.subr.mxu0 0.0
      %1214 = vmatpush1.msra.mxu0 0.0
      %1215 = vmatprep.subr.mxu0 0.0
      %1216 = vmatpush1.msra.mxu0 0.0
      %1217 = vmatprep.subr.mxu0 0.0
      %1218 = vmatpush1.msra.mxu0 0.0
      %1219 = vmatprep.subr.mxu0 0.0
      %1220 = vmatpush1.msra.mxu0 0.0
      %1221 = vmatprep.subr.mxu0 0.0
      %1222 = vmatpush1.msra.mxu0 0.0
      %1223 = vmatprep.subr.mxu0 0.0
      %1224 = vmatpush1.msra.mxu0 0.0
      %1225 = vmatprep.subr.mxu0 0.0
      %1226 = vmatpush1.msra.mxu0 0.0
      %1227 = vmatprep.subr.mxu0 0.0
      %1228 = vmatpush1.msra.mxu0 0.0
      %1229 = vmatprep.subr.mxu0 0.0
      %1230 = vmatpush1.msra.mxu0 0.0
      %1231 = vmatprep.subr.mxu0 0.0
      %1232 = vmatpush1.msra.mxu0 0.0
      %1233 = vmatprep.subr.mxu0 0.0
      %1234 = vmatpush1.msra.mxu0 0.0
      %1235 = vmatprep.subr.mxu0 0.0
      %1236 = vmatpush1.msra.mxu0 0.0
      %1237 = vmatprep.subr.mxu0 0.0
      %1238 = vmatpush1.msra.mxu0 0.0
      %1239 = vmatprep.subr.mxu0 0.0
      %1240 = vmatpush1.msra.mxu0 0.0
      %1241 = vmatprep.subr.mxu0 0.0
      %1242 = vmatpush1.msra.mxu0 0.0
      %1243 = vmatprep.subr.mxu0 0.0
      %1244 = vmatpush1.msra.mxu0 0.0
      %1245 = vmatprep.subr.mxu0 0.0
      %1246 = vmatpush1.msra.mxu0 0.0
      %1247 = vmatprep.subr.mxu0 0.0
      %1248 = vmatpush1.msra.mxu0 0.0
      %1249 = vmatprep.subr.mxu0 0.0
      %1250 = vmatpush1.msra.mxu0 0.0
      %1251 = vmatprep.subr.mxu0 0.0
      %1252 = vmatpush1.msra.mxu0 0.0
      %1253 = vmatprep.subr.mxu0 0.0
      %1254 = vmatpush1.msra.mxu0 0.0
      %1255 = vmatprep.subr.mxu0 0.0
      %1256 = vmatpush1.msra.mxu0 0.0
      %1257 = vmatprep.subr.mxu0 0.0
      %1258 = vmatpush1.msra.mxu0 0.0
      %1259 = vmatprep.subr.mxu0 0.0
      %1260 = vmatpush1.msra.mxu0 0.0
      %1261 = vmatprep.subr.mxu0 0.0
      %1262 = vmatpush1.msra.mxu0 0.0
      %1263 = vmatprep.subr.mxu0 0.0
      %1264 = vmatpush1.msra.mxu0 0.0
      %1265 = vmatprep.mubr.f32.mxu0 0.0
      %1266 = vmatmul.mubr.f32.gmra.mrb[0].mxu0 %v1120
      %v1267 = vpop.f32.mrb[0].mxu0
      %v1268 = vadd.f32 0.0, %v1267
      %v1269 = vpop.f32.mrb[0].mxu0
      %v1270 = vadd.f32 0.0, %v1269
      %1271 = vdwg.mxu0
      %v1272 = vadd.f32 %v1098, %v1197
      %v1273 = vadd.f32 %v1099, %v1199
      %v1274 = vadd.f32 %v1100, %v1268
      %v1275 = vadd.f32 %v1101, %v1270
      %s1276 = scalar_lea.vmem %s1, 48
      %v1277 = vld [vmem:[%s1276] sm:$0xff]
      %1278 = vrot.lane.b32.xlu0 %v246, 112
      %v1279 = vpop.permute.xlu0 %1278
      %1280 = vrot.lane.b32.xlu0 %v255, 112
      %v1281 = vpop.permute.xlu0 %1280
      %1282 = vrot.lane.b32.xlu0 %v247, 112
      %v1283 = vpop.permute.xlu0 %1282
      %1284 = vrot.lane.b32.xlu0 %v256, 112
      %v1285 = vpop.permute.xlu0 %1284
      %1286 = vrot.lane.b32.xlu0 %v248, 112
      %v1287 = vpop.permute.xlu0 %1286
      %vm1288 = vcmask 916480
      %v1289 = vsel %vm1288, %v1279, %v1281
      %v1290 = vsel %vm1288, %v1281, %v1283
      %v1291 = vsel %vm1288, %v1283, %v1285
      %v1292 = vsel %vm1288, %v1285, %v1287
      %v1294 = vsel %vm272, %v1277, 0
      %v1296 = vsel %vm276, %v1289, 0
      %v1298 = vsel %vm276, %v1290, 0
      %v1300 = vsel %vm276, %v1291, 0
      %v1302 = vsel %vm276, %v1292, 0
      %1304 = vmatprep.subr.mxu0 %v1298
      %1305 = vmatpush1.msra.mxu0 %v1296
      %1306 = vmatprep.subr.mxu0 0.0
      %1307 = vmatpush1.msra.mxu0 0.0
      %1308 = vmatprep.subr.mxu0 0.0
      %1309 = vmatpush1.msra.mxu0 0.0
      %1310 = vmatprep.subr.mxu0 0.0
      %1311 = vmatpush1.msra.mxu0 0.0
      %1312 = vmatprep.subr.mxu0 0.0
      %1313 = vmatpush1.msra.mxu0 0.0
      %1314 = vmatprep.subr.mxu0 0.0
      %1315 = vmatpush1.msra.mxu0 0.0
      %1316 = vmatprep.subr.mxu0 0.0
      %1317 = vmatpush1.msra.mxu0 0.0
      %1318 = vmatprep.subr.mxu0 0.0
      %1319 = vmatpush1.msra.mxu0 0.0
      %1320 = vmatprep.subr.mxu0 0.0
      %1321 = vmatpush1.msra.mxu0 0.0
      %1322 = vmatprep.subr.mxu0 0.0
      %1323 = vmatpush1.msra.mxu0 0.0
      %1324 = vmatprep.subr.mxu0 0.0
      %1325 = vmatpush1.msra.mxu0 0.0
      %1326 = vmatprep.subr.mxu0 0.0
      %1327 = vmatpush1.msra.mxu0 0.0
      %1328 = vmatprep.subr.mxu0 0.0
      %1329 = vmatpush1.msra.mxu0 0.0
      %1330 = vmatprep.subr.mxu0 0.0
      %1331 = vmatpush1.msra.mxu0 0.0
      %1332 = vmatprep.subr.mxu0 0.0
      %1333 = vmatpush1.msra.mxu0 0.0
      %1334 = vmatprep.subr.mxu0 0.0
      %1335 = vmatpush1.msra.mxu0 0.0
      %1336 = vmatprep.subr.mxu0 0.0
      %1337 = vmatpush1.msra.mxu0 0.0
      %1338 = vmatprep.subr.mxu0 0.0
      %1339 = vmatpush1.msra.mxu0 0.0
      %1340 = vmatprep.subr.mxu0 0.0
      %1341 = vmatpush1.msra.mxu0 0.0
      %1342 = vmatprep.subr.mxu0 0.0
      %1343 = vmatpush1.msra.mxu0 0.0
      %1344 = vmatprep.subr.mxu0 0.0
      %1345 = vmatpush1.msra.mxu0 0.0
      %1346 = vmatprep.subr.mxu0 0.0
      %1347 = vmatpush1.msra.mxu0 0.0
      %1348 = vmatprep.subr.mxu0 0.0
      %1349 = vmatpush1.msra.mxu0 0.0
      %1350 = vmatprep.subr.mxu0 0.0
      %1351 = vmatpush1.msra.mxu0 0.0
      %1352 = vmatprep.subr.mxu0 0.0
      %1353 = vmatpush1.msra.mxu0 0.0
      %1354 = vmatprep.subr.mxu0 0.0
      %1355 = vmatpush1.msra.mxu0 0.0
      %1356 = vmatprep.subr.mxu0 0.0
      %1357 = vmatpush1.msra.mxu0 0.0
      %1358 = vmatprep.subr.mxu0 0.0
      %1359 = vmatpush1.msra.mxu0 0.0
      %1360 = vmatprep.subr.mxu0 0.0
      %1361 = vmatpush1.msra.mxu0 0.0
      %1362 = vmatprep.subr.mxu0 0.0
      %1363 = vmatpush1.msra.mxu0 0.0
      %1364 = vmatprep.subr.mxu0 0.0
      %1365 = vmatpush1.msra.mxu0 0.0
      %1366 = vmatprep.subr.mxu0 0.0
      %1367 = vmatpush1.msra.mxu0 0.0
      %1368 = vmatprep.mubr.f32.mxu0 0.0
      %1369 = vmatmul.mubr.f32.gmra.mrb[0].mxu0 %v1294
      %v1370 = vpop.f32.mrb[0].mxu0
      %v1371 = vadd.f32 0.0, %v1370
      %v1372 = vpop.f32.mrb[0].mxu0
      %v1373 = vadd.f32 0.0, %v1372
      %1374 = vdwg.mxu0
      %1375 = vmatprep.subr.mxu0 %v1302
      %1376 = vmatpush1.msra.mxu0 %v1300
      %1377 = vmatprep.subr.mxu0 0.0
      %1378 = vmatpush1.msra.mxu0 0.0
      %1379 = vmatprep.subr.mxu0 0.0
      %1380 = vmatpush1.msra.mxu0 0.0
      %1381 = vmatprep.subr.mxu0 0.0
      %1382 = vmatpush1.msra.mxu0 0.0
      %1383 = vmatprep.subr.mxu0 0.0
      %1384 = vmatpush1.msra.mxu0 0.0
      %1385 = vmatprep.subr.mxu0 0.0
      %1386 = vmatpush1.msra.mxu0 0.0
      %1387 = vmatprep.subr.mxu0 0.0
      %1388 = vmatpush1.msra.mxu0 0.0
      %1389 = vmatprep.subr.mxu0 0.0
      %1390 = vmatpush1.msra.mxu0 0.0
      %1391 = vmatprep.subr.mxu0 0.0
      %1392 = vmatpush1.msra.mxu0 0.0
      %1393 = vmatprep.subr.mxu0 0.0
      %1394 = vmatpush1.msra.mxu0 0.0
      %1395 = vmatprep.subr.mxu0 0.0
      %1396 = vmatpush1.msra.mxu0 0.0
      %1397 = vmatprep.subr.mxu0 0.0
      %1398 = vmatpush1.msra.mxu0 0.0
      %1399 = vmatprep.subr.mxu0 0.0
      %1400 = vmatpush1.msra.mxu0 0.0
      %1401 = vmatprep.subr.mxu0 0.0
      %1402 = vmatpush1.msra.mxu0 0.0
      %1403 = vmatprep.subr.mxu0 0.0
      %1404 = vmatpush1.msra.mxu0 0.0
      %1405 = vmatprep.subr.mxu0 0.0
      %1406 = vmatpush1.msra.mxu0 0.0
      %1407 = vmatprep.subr.mxu0 0.0
      %1408 = vmatpush1.msra.mxu0 0.0
      %1409 = vmatprep.subr.mxu0 0.0
      %1410 = vmatpush1.msra.mxu0 0.0
      %1411 = vmatprep.subr.mxu0 0.0
      %1412 = vmatpush1.msra.mxu0 0.0
      %1413 = vmatprep.subr.mxu0 0.0
      %1414 = vmatpush1.msra.mxu0 0.0
      %1415 = vmatprep.subr.mxu0 0.0
      %1416 = vmatpush1.msra.mxu0 0.0
      %1417 = vmatprep.subr.mxu0 0.0
      %1418 = vmatpush1.msra.mxu0 0.0
      %1419 = vmatprep.subr.mxu0 0.0
      %1420 = vmatpush1.msra.mxu0 0.0
      %1421 = vmatprep.subr.mxu0 0.0
      %1422 = vmatpush1.msra.mxu0 0.0
      %1423 = vmatprep.subr.mxu0 0.0
      %1424 = vmatpush1.msra.mxu0 0.0
      %1425 = vmatprep.subr.mxu0 0.0
      %1426 = vmatpush1.msra.mxu0 0.0
      %1427 = vmatprep.subr.mxu0 0.0
      %1428 = vmatpush1.msra.mxu0 0.0
      %1429 = vmatprep.subr.mxu0 0.0
      %1430 = vmatpush1.msra.mxu0 0.0
      %1431 = vmatprep.subr.mxu0 0.0
      %1432 = vmatpush1.msra.mxu0 0.0
      %1433 = vmatprep.subr.mxu0 0.0
      %1434 = vmatpush1.msra.mxu0 0.0
      %1435 = vmatprep.subr.mxu0 0.0
      %1436 = vmatpush1.msra.mxu0 0.0
      %1437 = vmatprep.subr.mxu0 0.0
      %1438 = vmatpush1.msra.mxu0 0.0
      %1439 = vmatprep.mubr.f32.mxu0 0.0
      %1440 = vmatmul.mubr.f32.gmra.mrb[0].mxu0 %v1294
      %v1441 = vpop.f32.mrb[0].mxu0
      %v1442 = vadd.f32 0.0, %v1441
      %v1443 = vpop.f32.mrb[0].mxu0
      %v1444 = vadd.f32 0.0, %v1443
      %1445 = vdwg.mxu0
      %v1446 = vadd.f32 %v1272, %v1371
      %v1447 = vadd.f32 %v1273, %v1373
      %v1448 = vadd.f32 %v1274, %v1442
      %v1449 = vadd.f32 %v1275, %v1444
      %s1450 = scalar_lea.vmem %s1, 56
      %v1451 = vld [vmem:[%s1450] sm:$0xff]
      %1452 = vrot.lane.b32.xlu0 %v246, 111
      %v1453 = vpop.permute.xlu0 %1452
      %1454 = vrot.lane.b32.xlu0 %v255, 111
      %v1455 = vpop.permute.xlu0 %1454
      %1456 = vrot.lane.b32.xlu0 %v247, 111
      %v1457 = vpop.permute.xlu0 %1456
      %1458 = vrot.lane.b32.xlu0 %v256, 111
      %v1459 = vpop.permute.xlu0 %1458
      %1460 = vrot.lane.b32.xlu0 %v248, 111
      %v1461 = vpop.permute.xlu0 %1460
      %vm1462 = vcmask 908288
      %v1463 = vsel %vm1462, %v1453, %v1455
      %v1464 = vsel %vm1462, %v1455, %v1457
      %v1465 = vsel %vm1462, %v1457, %v1459
      %v1466 = vsel %vm1462, %v1459, %v1461
      %v1468 = vsel %vm272, %v1451, 0
      %v1470 = vsel %vm276, %v1463, 0
      %v1472 = vsel %vm276, %v1464, 0
      %v1474 = vsel %vm276, %v1465, 0
      %v1476 = vsel %vm276, %v1466, 0
      %1478 = vmatprep.subr.mxu0 %v1472
      %1479 = vmatpush1.msra.mxu0 %v1470
      %1480 = vmatprep.subr.mxu0 0.0
      %1481 = vmatpush1.msra.mxu0 0.0
      %1482 = vmatprep.subr.mxu0 0.0
      %1483 = vmatpush1.msra.mxu0 0.0
      %1484 = vmatprep.subr.mxu0 0.0
      %1485 = vmatpush1.msra.mxu0 0.0
      %1486 = vmatprep.subr.mxu0 0.0
      %1487 = vmatpush1.msra.mxu0 0.0
      %1488 = vmatprep.subr.mxu0 0.0
      %1489 = vmatpush1.msra.mxu0 0.0
      %1490 = vmatprep.subr.mxu0 0.0
      %1491 = vmatpush1.msra.mxu0 0.0
      %1492 = vmatprep.subr.mxu0 0.0
      %1493 = vmatpush1.msra.mxu0 0.0
      %1494 = vmatprep.subr.mxu0 0.0
      %1495 = vmatpush1.msra.mxu0 0.0
      %1496 = vmatprep.subr.mxu0 0.0
      %1497 = vmatpush1.msra.mxu0 0.0
      %1498 = vmatprep.subr.mxu0 0.0
      %1499 = vmatpush1.msra.mxu0 0.0
      %1500 = vmatprep.subr.mxu0 0.0
      %1501 = vmatpush1.msra.mxu0 0.0
      %1502 = vmatprep.subr.mxu0 0.0
      %1503 = vmatpush1.msra.mxu0 0.0
      %1504 = vmatprep.subr.mxu0 0.0
      %1505 = vmatpush1.msra.mxu0 0.0
      %1506 = vmatprep.subr.mxu0 0.0
      %1507 = vmatpush1.msra.mxu0 0.0
      %1508 = vmatprep.subr.mxu0 0.0
      %1509 = vmatpush1.msra.mxu0 0.0
      %1510 = vmatprep.subr.mxu0 0.0
      %1511 = vmatpush1.msra.mxu0 0.0
      %1512 = vmatprep.subr.mxu0 0.0
      %1513 = vmatpush1.msra.mxu0 0.0
      %1514 = vmatprep.subr.mxu0 0.0
      %1515 = vmatpush1.msra.mxu0 0.0
      %1516 = vmatprep.subr.mxu0 0.0
      %1517 = vmatpush1.msra.mxu0 0.0
      %1518 = vmatprep.subr.mxu0 0.0
      %1519 = vmatpush1.msra.mxu0 0.0
      %1520 = vmatprep.subr.mxu0 0.0
      %1521 = vmatpush1.msra.mxu0 0.0
      %1522 = vmatprep.subr.mxu0 0.0
      %1523 = vmatpush1.msra.mxu0 0.0
      %1524 = vmatprep.subr.mxu0 0.0
      %1525 = vmatpush1.msra.mxu0 0.0
      %1526 = vmatprep.subr.mxu0 0.0
      %1527 = vmatpush1.msra.mxu0 0.0
      %1528 = vmatprep.subr.mxu0 0.0
      %1529 = vmatpush1.msra.mxu0 0.0
      %1530 = vmatprep.subr.mxu0 0.0
      %1531 = vmatpush1.msra.mxu0 0.0
      %1532 = vmatprep.subr.mxu0 0.0
      %1533 = vmatpush1.msra.mxu0 0.0
      %1534 = vmatprep.subr.mxu0 0.0
      %1535 = vmatpush1.msra.mxu0 0.0
      %1536 = vmatprep.subr.mxu0 0.0
      %1537 = vmatpush1.msra.mxu0 0.0
      %1538 = vmatprep.subr.mxu0 0.0
      %1539 = vmatpush1.msra.mxu0 0.0
      %1540 = vmatprep.subr.mxu0 0.0
      %1541 = vmatpush1.msra.mxu0 0.0
      %1542 = vmatprep.mubr.f32.mxu0 0.0
      %1543 = vmatmul.mubr.f32.gmra.mrb[0].mxu0 %v1468
      %v1544 = vpop.f32.mrb[0].mxu0
      %v1545 = vadd.f32 0.0, %v1544
      %v1546 = vpop.f32.mrb[0].mxu0
      %v1547 = vadd.f32 0.0, %v1546
      %1548 = vdwg.mxu0
      %1549 = vmatprep.subr.mxu0 %v1476
      %1550 = vmatpush1.msra.mxu0 %v1474
      %1551 = vmatprep.subr.mxu0 0.0
      %1552 = vmatpush1.msra.mxu0 0.0
      %1553 = vmatprep.subr.mxu0 0.0
      %1554 = vmatpush1.msra.mxu0 0.0
      %1555 = vmatprep.subr.mxu0 0.0
      %1556 = vmatpush1.msra.mxu0 0.0
      %1557 = vmatprep.subr.mxu0 0.0
      %1558 = vmatpush1.msra.mxu0 0.0
      %1559 = vmatprep.subr.mxu0 0.0
      %1560 = vmatpush1.msra.mxu0 0.0
      %1561 = vmatprep.subr.mxu0 0.0
      %1562 = vmatpush1.msra.mxu0 0.0
      %1563 = vmatprep.subr.mxu0 0.0
      %1564 = vmatpush1.msra.mxu0 0.0
      %1565 = vmatprep.subr.mxu0 0.0
      %1566 = vmatpush1.msra.mxu0 0.0
      %1567 = vmatprep.subr.mxu0 0.0
      %1568 = vmatpush1.msra.mxu0 0.0
      %1569 = vmatprep.subr.mxu0 0.0
      %1570 = vmatpush1.msra.mxu0 0.0
      %1571 = vmatprep.subr.mxu0 0.0
      %1572 = vmatpush1.msra.mxu0 0.0
      %1573 = vmatprep.subr.mxu0 0.0
      %1574 = vmatpush1.msra.mxu0 0.0
      %1575 = vmatprep.subr.mxu0 0.0
      %1576 = vmatpush1.msra.mxu0 0.0
      %1577 = vmatprep.subr.mxu0 0.0
      %1578 = vmatpush1.msra.mxu0 0.0
      %1579 = vmatprep.subr.mxu0 0.0
      %1580 = vmatpush1.msra.mxu0 0.0
      %1581 = vmatprep.subr.mxu0 0.0
      %1582 = vmatpush1.msra.mxu0 0.0
      %1583 = vmatprep.subr.mxu0 0.0
      %1584 = vmatpush1.msra.mxu0 0.0
      %1585 = vmatprep.subr.mxu0 0.0
      %1586 = vmatpush1.msra.mxu0 0.0
      %1587 = vmatprep.subr.mxu0 0.0
      %1588 = vmatpush1.msra.mxu0 0.0
      %1589 = vmatprep.subr.mxu0 0.0
      %1590 = vmatpush1.msra.mxu0 0.0
      %1591 = vmatprep.subr.mxu0 0.0
      %1592 = vmatpush1.msra.mxu0 0.0
      %1593 = vmatprep.subr.mxu0 0.0
      %1594 = vmatpush1.msra.mxu0 0.0
      %1595 = vmatprep.subr.mxu0 0.0
      %1596 = vmatpush1.msra.mxu0 0.0
      %1597 = vmatprep.subr.mxu0 0.0
      %1598 = vmatpush1.msra.mxu0 0.0
      %1599 = vmatprep.subr.mxu0 0.0
      %1600 = vmatpush1.msra.mxu0 0.0
      %1601 = vmatprep.subr.mxu0 0.0
      %1602 = vmatpush1.msra.mxu0 0.0
      %1603 = vmatprep.subr.mxu0 0.0
      %1604 = vmatpush1.msra.mxu0 0.0
      %1605 = vmatprep.subr.mxu0 0.0
      %1606 = vmatpush1.msra.mxu0 0.0
      %1607 = vmatprep.subr.mxu0 0.0
      %1608 = vmatpush1.msra.mxu0 0.0
      %1609 = vmatprep.subr.mxu0 0.0
      %1610 = vmatpush1.msra.mxu0 0.0
      %1611 = vmatprep.subr.mxu0 0.0
      %1612 = vmatpush1.msra.mxu0 0.0
      %1613 = vmatprep.mubr.f32.mxu0 0.0
      %1614 = vmatmul.mubr.f32.gmra.mrb[0].mxu0 %v1468
      %v1615 = vpop.f32.mrb[0].mxu0
      %v1616 = vadd.f32 0.0, %v1615
      %v1617 = vpop.f32.mrb[0].mxu0
      %v1618 = vadd.f32 0.0, %v1617
      %1619 = vdwg.mxu0
      %v1620 = vadd.f32 %v1446, %v1545
      %v1621 = vadd.f32 %v1447, %v1547
      %v1622 = vadd.f32 %v1448, %v1616
      %v1623 = vadd.f32 %v1449, %v1618
      %s1624 = scalar_lea.vmem %s1, 64
      %v1625 = vld [vmem:[%s1624] sm:$0xff]
      %1626 = vrot.lane.b32.xlu0 %v246, 110
      %v1627 = vpop.permute.xlu0 %1626
      %1628 = vrot.lane.b32.xlu0 %v255, 110
      %v1629 = vpop.permute.xlu0 %1628
      %1630 = vrot.lane.b32.xlu0 %v247, 110
      %v1631 = vpop.permute.xlu0 %1630
      %1632 = vrot.lane.b32.xlu0 %v256, 110
      %v1633 = vpop.permute.xlu0 %1632
      %1634 = vrot.lane.b32.xlu0 %v248, 110
      %v1635 = vpop.permute.xlu0 %1634
      %vm1636 = vcmask 900096
      %v1637 = vsel %vm1636, %v1627, %v1629
      %v1638 = vsel %vm1636, %v1629, %v1631
      %v1639 = vsel %vm1636, %v1631, %v1633
      %v1640 = vsel %vm1636, %v1633, %v1635
      %v1642 = vsel %vm272, %v1625, 0
      %v1644 = vsel %vm276, %v1637, 0
      %v1646 = vsel %vm276, %v1638, 0
      %v1648 = vsel %vm276, %v1639, 0
      %v1650 = vsel %vm276, %v1640, 0
      %1652 = vmatprep.subr.mxu0 %v1646
      %1653 = vmatpush1.msra.mxu0 %v1644
      %1654 = vmatprep.subr.mxu0 0.0
      %1655 = vmatpush1.msra.mxu0 0.0
      %1656 = vmatprep.subr.mxu0 0.0
      %1657 = vmatpush1.msra.mxu0 0.0
      %1658 = vmatprep.subr.mxu0 0.0
      %1659 = vmatpush1.msra.mxu0 0.0
      %1660 = vmatprep.subr.mxu0 0.0
      %1661 = vmatpush1.msra.mxu0 0.0
      %1662 = vmatprep.subr.mxu0 0.0
      %1663 = vmatpush1.msra.mxu0 0.0
      %1664 = vmatprep.subr.mxu0 0.0
      %1665 = vmatpush1.msra.mxu0 0.0
      %1666 = vmatprep.subr.mxu0 0.0
      %1667 = vmatpush1.msra.mxu0 0.0
      %1668 = vmatprep.subr.mxu0 0.0
      %1669 = vmatpush1.msra.mxu0 0.0
      %1670 = vmatprep.subr.mxu0 0.0
      %1671 = vmatpush1.msra.mxu0 0.0
      %1672 = vmatprep.subr.mxu0 0.0
      %1673 = vmatpush1.msra.mxu0 0.0
      %1674 = vmatprep.subr.mxu0 0.0
      %1675 = vmatpush1.msra.mxu0 0.0
      %1676 = vmatprep.subr.mxu0 0.0
      %1677 = vmatpush1.msra.mxu0 0.0
      %1678 = vmatprep.subr.mxu0 0.0
      %1679 = vmatpush1.msra.mxu0 0.0
      %1680 = vmatprep.subr.mxu0 0.0
      %1681 = vmatpush1.msra.mxu0 0.0
      %1682 = vmatprep.subr.mxu0 0.0
      %1683 = vmatpush1.msra.mxu0 0.0
      %1684 = vmatprep.subr.mxu0 0.0
      %1685 = vmatpush1.msra.mxu0 0.0
      %1686 = vmatprep.subr.mxu0 0.0
      %1687 = vmatpush1.msra.mxu0 0.0
      %1688 = vmatprep.subr.mxu0 0.0
      %1689 = vmatpush1.msra.mxu0 0.0
      %1690 = vmatprep.subr.mxu0 0.0
      %1691 = vmatpush1.msra.mxu0 0.0
      %1692 = vmatprep.subr.mxu0 0.0
      %1693 = vmatpush1.msra.mxu0 0.0
      %1694 = vmatprep.subr.mxu0 0.0
      %1695 = vmatpush1.msra.mxu0 0.0
      %1696 = vmatprep.subr.mxu0 0.0
      %1697 = vmatpush1.msra.mxu0 0.0
      %1698 = vmatprep.subr.mxu0 0.0
      %1699 = vmatpush1.msra.mxu0 0.0
      %1700 = vmatprep.subr.mxu0 0.0
      %1701 = vmatpush1.msra.mxu0 0.0
      %1702 = vmatprep.subr.mxu0 0.0
      %1703 = vmatpush1.msra.mxu0 0.0
      %1704 = vmatprep.subr.mxu0 0.0
      %1705 = vmatpush1.msra.mxu0 0.0
      %1706 = vmatprep.subr.mxu0 0.0
      %1707 = vmatpush1.msra.mxu0 0.0
      %1708 = vmatprep.subr.mxu0 0.0
      %1709 = vmatpush1.msra.mxu0 0.0
      %1710 = vmatprep.subr.mxu0 0.0
      %1711 = vmatpush1.msra.mxu0 0.0
      %1712 = vmatprep.subr.mxu0 0.0
      %1713 = vmatpush1.msra.mxu0 0.0
      %1714 = vmatprep.subr.mxu0 0.0
      %1715 = vmatpush1.msra.mxu0 0.0
      %1716 = vmatprep.mubr.f32.mxu0 0.0
      %1717 = vmatmul.mubr.f32.gmra.mrb[0].mxu0 %v1642
      %v1718 = vpop.f32.mrb[0].mxu0
      %v1719 = vadd.f32 0.0, %v1718
      %v1720 = vpop.f32.mrb[0].mxu0
      %v1721 = vadd.f32 0.0, %v1720
      %1722 = vdwg.mxu0
      %1723 = vmatprep.subr.mxu0 %v1650
      %1724 = vmatpush1.msra.mxu0 %v1648
      %1725 = vmatprep.subr.mxu0 0.0
      %1726 = vmatpush1.msra.mxu0 0.0
      %1727 = vmatprep.subr.mxu0 0.0
      %1728 = vmatpush1.msra.mxu0 0.0
      %1729 = vmatprep.subr.mxu0 0.0
      %1730 = vmatpush1.msra.mxu0 0.0
      %1731 = vmatprep.subr.mxu0 0.0
      %1732 = vmatpush1.msra.mxu0 0.0
      %1733 = vmatprep.subr.mxu0 0.0
      %1734 = vmatpush1.msra.mxu0 0.0
      %1735 = vmatprep.subr.mxu0 0.0
      %1736 = vmatpush1.msra.mxu0 0.0
      %1737 = vmatprep.subr.mxu0 0.0
      %1738 = vmatpush1.msra.mxu0 0.0
      %1739 = vmatprep.subr.mxu0 0.0
      %1740 = vmatpush1.msra.mxu0 0.0
      %1741 = vmatprep.subr.mxu0 0.0
      %1742 = vmatpush1.msra.mxu0 0.0
      %1743 = vmatprep.subr.mxu0 0.0
      %1744 = vmatpush1.msra.mxu0 0.0
      %1745 = vmatprep.subr.mxu0 0.0
      %1746 = vmatpush1.msra.mxu0 0.0
      %1747 = vmatprep.subr.mxu0 0.0
      %1748 = vmatpush1.msra.mxu0 0.0
      %1749 = vmatprep.subr.mxu0 0.0
      %1750 = vmatpush1.msra.mxu0 0.0
      %1751 = vmatprep.subr.mxu0 0.0
      %1752 = vmatpush1.msra.mxu0 0.0
      %1753 = vmatprep.subr.mxu0 0.0
      %1754 = vmatpush1.msra.mxu0 0.0
      %1755 = vmatprep.subr.mxu0 0.0
      %1756 = vmatpush1.msra.mxu0 0.0
      %1757 = vmatprep.subr.mxu0 0.0
      %1758 = vmatpush1.msra.mxu0 0.0
      %1759 = vmatprep.subr.mxu0 0.0
      %1760 = vmatpush1.msra.mxu0 0.0
      %1761 = vmatprep.subr.mxu0 0.0
      %1762 = vmatpush1.msra.mxu0 0.0
      %1763 = vmatprep.subr.mxu0 0.0
      %1764 = vmatpush1.msra.mxu0 0.0
      %1765 = vmatprep.subr.mxu0 0.0
      %1766 = vmatpush1.msra.mxu0 0.0
      %1767 = vmatprep.subr.mxu0 0.0
      %1768 = vmatpush1.msra.mxu0 0.0
      %1769 = vmatprep.subr.mxu0 0.0
      %1770 = vmatpush1.msra.mxu0 0.0
      %1771 = vmatprep.subr.mxu0 0.0
      %1772 = vmatpush1.msra.mxu0 0.0
      %1773 = vmatprep.subr.mxu0 0.0
      %1774 = vmatpush1.msra.mxu0 0.0
      %1775 = vmatprep.subr.mxu0 0.0
      %1776 = vmatpush1.msra.mxu0 0.0
      %1777 = vmatprep.subr.mxu0 0.0
      %1778 = vmatpush1.msra.mxu0 0.0
      %1779 = vmatprep.subr.mxu0 0.0
      %1780 = vmatpush1.msra.mxu0 0.0
      %1781 = vmatprep.subr.mxu0 0.0
      %1782 = vmatpush1.msra.mxu0 0.0
      %1783 = vmatprep.subr.mxu0 0.0
      %1784 = vmatpush1.msra.mxu0 0.0
      %1785 = vmatprep.subr.mxu0 0.0
      %1786 = vmatpush1.msra.mxu0 0.0
      %1787 = vmatprep.mubr.f32.mxu0 0.0
      %1788 = vmatmul.mubr.f32.gmra.mrb[0].mxu0 %v1642
      %v1789 = vpop.f32.mrb[0].mxu0
      %v1790 = vadd.f32 0.0, %v1789
      %v1791 = vpop.f32.mrb[0].mxu0
      %v1792 = vadd.f32 0.0, %v1791
      %1793 = vdwg.mxu0
      %v1794 = vadd.f32 %v1620, %v1719
      %v1795 = vadd.f32 %v1621, %v1721
      %v1796 = vadd.f32 %v1622, %v1790
      %v1797 = vadd.f32 %v1623, %v1792
      %s1798 = scalar_lea.vmem %s1, 72
      %v1799 = vld [vmem:[%s1798] sm:$0xff]
      %1800 = vrot.lane.b32.xlu0 %v246, 64
      %v1801 = vpop.permute.xlu0 %1800
      %1802 = vrot.lane.b32.xlu0 %v255, 64
      %v1803 = vpop.permute.xlu0 %1802
      %1804 = vrot.lane.b32.xlu0 %v247, 64
      %v1805 = vpop.permute.xlu0 %1804
      %1806 = vrot.lane.b32.xlu0 %v256, 64
      %v1807 = vpop.permute.xlu0 %1806
      %1808 = vrot.lane.b32.xlu0 %v248, 64
      %v1809 = vpop.permute.xlu0 %1808
      %vm1810 = vcmask 523264
      %v1811 = vsel %vm1810, %v1801, %v1803
      %v1812 = vsel %vm1810, %v1803, %v1805
      %v1813 = vsel %vm1810, %v1805, %v1807
      %v1814 = vsel %vm1810, %v1807, %v1809
      %v1816 = vsel %vm272, %v1799, 0
      %v1818 = vsel %vm276, %v1811, 0
      %v1820 = vsel %vm276, %v1812, 0
      %v1822 = vsel %vm276, %v1813, 0
      %v1824 = vsel %vm276, %v1814, 0
      %1826 = vmatprep.subr.mxu0 %v1820
      %1827 = vmatpush1.msra.mxu0 %v1818
      %1828 = vmatprep.subr.mxu0 0.0
      %1829 = vmatpush1.msra.mxu0 0.0
      %1830 = vmatprep.subr.mxu0 0.0
      %1831 = vmatpush1.msra.mxu0 0.0
      %1832 = vmatprep.subr.mxu0 0.0
      %1833 = vmatpush1.msra.mxu0 0.0
      %1834 = vmatprep.subr.mxu0 0.0
      %1835 = vmatpush1.msra.mxu0 0.0
      %1836 = vmatprep.subr.mxu0 0.0
      %1837 = vmatpush1.msra.mxu0 0.0
      %1838 = vmatprep.subr.mxu0 0.0
      %1839 = vmatpush1.msra.mxu0 0.0
      %1840 = vmatprep.subr.mxu0 0.0
      %1841 = vmatpush1.msra.mxu0 0.0
      %1842 = vmatprep.subr.mxu0 0.0
      %1843 = vmatpush1.msra.mxu0 0.0
      %1844 = vmatprep.subr.mxu0 0.0
      %1845 = vmatpush1.msra.mxu0 0.0
      %1846 = vmatprep.subr.mxu0 0.0
      %1847 = vmatpush1.msra.mxu0 0.0
      %1848 = vmatprep.subr.mxu0 0.0
      %1849 = vmatpush1.msra.mxu0 0.0
      %1850 = vmatprep.subr.mxu0 0.0
      %1851 = vmatpush1.msra.mxu0 0.0
      %1852 = vmatprep.subr.mxu0 0.0
      %1853 = vmatpush1.msra.mxu0 0.0
      %1854 = vmatprep.subr.mxu0 0.0
      %1855 = vmatpush1.msra.mxu0 0.0
      %1856 = vmatprep.subr.mxu0 0.0
      %1857 = vmatpush1.msra.mxu0 0.0
      %1858 = vmatprep.subr.mxu0 0.0
      %1859 = vmatpush1.msra.mxu0 0.0
      %1860 = vmatprep.subr.mxu0 0.0
      %1861 = vmatpush1.msra.mxu0 0.0
      %1862 = vmatprep.subr.mxu0 0.0
      %1863 = vmatpush1.msra.mxu0 0.0
      %1864 = vmatprep.subr.mxu0 0.0
      %1865 = vmatpush1.msra.mxu0 0.0
      %1866 = vmatprep.subr.mxu0 0.0
      %1867 = vmatpush1.msra.mxu0 0.0
      %1868 = vmatprep.subr.mxu0 0.0
      %1869 = vmatpush1.msra.mxu0 0.0
      %1870 = vmatprep.subr.mxu0 0.0
      %1871 = vmatpush1.msra.mxu0 0.0
      %1872 = vmatprep.subr.mxu0 0.0
      %1873 = vmatpush1.msra.mxu0 0.0
      %1874 = vmatprep.subr.mxu0 0.0
      %1875 = vmatpush1.msra.mxu0 0.0
      %1876 = vmatprep.subr.mxu0 0.0
      %1877 = vmatpush1.msra.mxu0 0.0
      %1878 = vmatprep.subr.mxu0 0.0
      %1879 = vmatpush1.msra.mxu0 0.0
      %1880 = vmatprep.subr.mxu0 0.0
      %1881 = vmatpush1.msra.mxu0 0.0
      %1882 = vmatprep.subr.mxu0 0.0
      %1883 = vmatpush1.msra.mxu0 0.0
      %1884 = vmatprep.subr.mxu0 0.0
      %1885 = vmatpush1.msra.mxu0 0.0
      %1886 = vmatprep.subr.mxu0 0.0
      %1887 = vmatpush1.msra.mxu0 0.0
      %1888 = vmatprep.subr.mxu0 0.0
      %1889 = vmatpush1.msra.mxu0 0.0
      %1890 = vmatprep.mubr.f32.mxu0 0.0
      %1891 = vmatmul.mubr.f32.gmra.mrb[0].mxu0 %v1816
      %v1892 = vpop.f32.mrb[0].mxu0
      %v1893 = vadd.f32 0.0, %v1892
      %v1894 = vpop.f32.mrb[0].mxu0
      %v1895 = vadd.f32 0.0, %v1894
      %1896 = vdwg.mxu0
      %1897 = vmatprep.subr.mxu0 %v1824
      %1898 = vmatpush1.msra.mxu0 %v1822
      %1899 = vmatprep.subr.mxu0 0.0
      %1900 = vmatpush1.msra.mxu0 0.0
      %1901 = vmatprep.subr.mxu0 0.0
      %1902 = vmatpush1.msra.mxu0 0.0
      %1903 = vmatprep.subr.mxu0 0.0
      %1904 = vmatpush1.msra.mxu0 0.0
      %1905 = vmatprep.subr.mxu0 0.0
      %1906 = vmatpush1.msra.mxu0 0.0
      %1907 = vmatprep.subr.mxu0 0.0
      %1908 = vmatpush1.msra.mxu0 0.0
      %1909 = vmatprep.subr.mxu0 0.0
      %1910 = vmatpush1.msra.mxu0 0.0
      %1911 = vmatprep.subr.mxu0 0.0
      %1912 = vmatpush1.msra.mxu0 0.0
      %1913 = vmatprep.subr.mxu0 0.0
      %1914 = vmatpush1.msra.mxu0 0.0
      %1915 = vmatprep.subr.mxu0 0.0
      %1916 = vmatpush1.msra.mxu0 0.0
      %1917 = vmatprep.subr.mxu0 0.0
      %1918 = vmatpush1.msra.mxu0 0.0
      %1919 = vmatprep.subr.mxu0 0.0
      %1920 = vmatpush1.msra.mxu0 0.0
      %1921 = vmatprep.subr.mxu0 0.0
      %1922 = vmatpush1.msra.mxu0 0.0
      %1923 = vmatprep.subr.mxu0 0.0
      %1924 = vmatpush1.msra.mxu0 0.0
      %1925 = vmatprep.subr.mxu0 0.0
      %1926 = vmatpush1.msra.mxu0 0.0
      %1927 = vmatprep.subr.mxu0 0.0
      %1928 = vmatpush1.msra.mxu0 0.0
      %1929 = vmatprep.subr.mxu0 0.0
      %1930 = vmatpush1.msra.mxu0 0.0
      %1931 = vmatprep.subr.mxu0 0.0
      %1932 = vmatpush1.msra.mxu0 0.0
      %1933 = vmatprep.subr.mxu0 0.0
      %1934 = vmatpush1.msra.mxu0 0.0
      %1935 = vmatprep.subr.mxu0 0.0
      %1936 = vmatpush1.msra.mxu0 0.0
      %1937 = vmatprep.subr.mxu0 0.0
      %1938 = vmatpush1.msra.mxu0 0.0
      %1939 = vmatprep.subr.mxu0 0.0
      %1940 = vmatpush1.msra.mxu0 0.0
      %1941 = vmatprep.subr.mxu0 0.0
      %1942 = vmatpush1.msra.mxu0 0.0
      %1943 = vmatprep.subr.mxu0 0.0
      %1944 = vmatpush1.msra.mxu0 0.0
      %1945 = vmatprep.subr.mxu0 0.0
      %1946 = vmatpush1.msra.mxu0 0.0
      %1947 = vmatprep.subr.mxu0 0.0
      %1948 = vmatpush1.msra.mxu0 0.0
      %1949 = vmatprep.subr.mxu0 0.0
      %1950 = vmatpush1.msra.mxu0 0.0
      %1951 = vmatprep.subr.mxu0 0.0
      %1952 = vmatpush1.msra.mxu0 0.0
      %1953 = vmatprep.subr.mxu0 0.0
      %1954 = vmatpush1.msra.mxu0 0.0
      %1955 = vmatprep.subr.mxu0 0.0
      %1956 = vmatpush1.msra.mxu0 0.0
      %1957 = vmatprep.subr.mxu0 0.0
      %1958 = vmatpush1.msra.mxu0 0.0
      %1959 = vmatprep.subr.mxu0 0.0
      %1960 = vmatpush1.msra.mxu0 0.0
      %1961 = vmatprep.mubr.f32.mxu0 0.0
      %1962 = vmatmul.mubr.f32.gmra.mrb[0].mxu0 %v1816
      %v1963 = vpop.f32.mrb[0].mxu0
      %v1964 = vadd.f32 0.0, %v1963
      %v1965 = vpop.f32.mrb[0].mxu0
      %v1966 = vadd.f32 0.0, %v1965
      %1967 = vdwg.mxu0
      %v1968 = vadd.f32 %v1794, %v1893
      %v1969 = vadd.f32 %v1795, %v1895
      %v1970 = vadd.f32 %v1796, %v1964
      %v1971 = vadd.f32 %v1797, %v1966
      %s1972 = scalar_lea.vmem %s1, 80
      %v1973 = vld [vmem:[%s1972] sm:$0xff]
      %1974 = vrot.lane.b32.xlu0 %v246, 63
      %v1975 = vpop.permute.xlu0 %1974
      %1976 = vrot.lane.b32.xlu0 %v255, 63
      %v1977 = vpop.permute.xlu0 %1976
      %1978 = vrot.lane.b32.xlu0 %v247, 63
      %v1979 = vpop.permute.xlu0 %1978
      %1980 = vrot.lane.b32.xlu0 %v256, 63
      %v1981 = vpop.permute.xlu0 %1980
      %1982 = vrot.lane.b32.xlu0 %v248, 63
      %v1983 = vpop.permute.xlu0 %1982
      %vm1984 = vcmask 515072
      %v1985 = vsel %vm1984, %v1975, %v1977
      %v1986 = vsel %vm1984, %v1977, %v1979
      %v1987 = vsel %vm1984, %v1979, %v1981
      %v1988 = vsel %vm1984, %v1981, %v1983
      %v1990 = vsel %vm272, %v1973, 0
      %v1992 = vsel %vm276, %v1985, 0
      %v1994 = vsel %vm276, %v1986, 0
      %v1996 = vsel %vm276, %v1987, 0
      %v1998 = vsel %vm276, %v1988, 0
      %2000 = vmatprep.subr.mxu0 %v1994
      %2001 = vmatpush1.msra.mxu0 %v1992
      %2002 = vmatprep.subr.mxu0 0.0
      %2003 = vmatpush1.msra.mxu0 0.0
      %2004 = vmatprep.subr.mxu0 0.0
      %2005 = vmatpush1.msra.mxu0 0.0
      %2006 = vmatprep.subr.mxu0 0.0
      %2007 = vmatpush1.msra.mxu0 0.0
      %2008 = vmatprep.subr.mxu0 0.0
      %2009 = vmatpush1.msra.mxu0 0.0
      %2010 = vmatprep.subr.mxu0 0.0
      %2011 = vmatpush1.msra.mxu0 0.0
      %2012 = vmatprep.subr.mxu0 0.0
      %2013 = vmatpush1.msra.mxu0 0.0
      %2014 = vmatprep.subr.mxu0 0.0
      %2015 = vmatpush1.msra.mxu0 0.0
      %2016 = vmatprep.subr.mxu0 0.0
      %2017 = vmatpush1.msra.mxu0 0.0
      %2018 = vmatprep.subr.mxu0 0.0
      %2019 = vmatpush1.msra.mxu0 0.0
      %2020 = vmatprep.subr.mxu0 0.0
      %2021 = vmatpush1.msra.mxu0 0.0
      %2022 = vmatprep.subr.mxu0 0.0
      %2023 = vmatpush1.msra.mxu0 0.0
      %2024 = vmatprep.subr.mxu0 0.0
      %2025 = vmatpush1.msra.mxu0 0.0
      %2026 = vmatprep.subr.mxu0 0.0
      %2027 = vmatpush1.msra.mxu0 0.0
      %2028 = vmatprep.subr.mxu0 0.0
      %2029 = vmatpush1.msra.mxu0 0.0
      %2030 = vmatprep.subr.mxu0 0.0
      %2031 = vmatpush1.msra.mxu0 0.0
      %2032 = vmatprep.subr.mxu0 0.0
      %2033 = vmatpush1.msra.mxu0 0.0
      %2034 = vmatprep.subr.mxu0 0.0
      %2035 = vmatpush1.msra.mxu0 0.0
      %2036 = vmatprep.subr.mxu0 0.0
      %2037 = vmatpush1.msra.mxu0 0.0
      %2038 = vmatprep.subr.mxu0 0.0
      %2039 = vmatpush1.msra.mxu0 0.0
      %2040 = vmatprep.subr.mxu0 0.0
      %2041 = vmatpush1.msra.mxu0 0.0
      %2042 = vmatprep.subr.mxu0 0.0
      %2043 = vmatpush1.msra.mxu0 0.0
      %2044 = vmatprep.subr.mxu0 0.0
      %2045 = vmatpush1.msra.mxu0 0.0
      %2046 = vmatprep.subr.mxu0 0.0
      %2047 = vmatpush1.msra.mxu0 0.0
      %2048 = vmatprep.subr.mxu0 0.0
      %2049 = vmatpush1.msra.mxu0 0.0
      %2050 = vmatprep.subr.mxu0 0.0
      %2051 = vmatpush1.msra.mxu0 0.0
      %2052 = vmatprep.subr.mxu0 0.0
      %2053 = vmatpush1.msra.mxu0 0.0
      %2054 = vmatprep.subr.mxu0 0.0
      %2055 = vmatpush1.msra.mxu0 0.0
      %2056 = vmatprep.subr.mxu0 0.0
      %2057 = vmatpush1.msra.mxu0 0.0
      %2058 = vmatprep.subr.mxu0 0.0
      %2059 = vmatpush1.msra.mxu0 0.0
      %2060 = vmatprep.subr.mxu0 0.0
      %2061 = vmatpush1.msra.mxu0 0.0
      %2062 = vmatprep.subr.mxu0 0.0
      %2063 = vmatpush1.msra.mxu0 0.0
      %2064 = vmatprep.mubr.f32.mxu0 0.0
      %2065 = vmatmul.mubr.f32.gmra.mrb[0].mxu0 %v1990
      %v2066 = vpop.f32.mrb[0].mxu0
      %v2067 = vadd.f32 0.0, %v2066
      %v2068 = vpop.f32.mrb[0].mxu0
      %v2069 = vadd.f32 0.0, %v2068
      %2070 = vdwg.mxu0
      %2071 = vmatprep.subr.mxu0 %v1998
      %2072 = vmatpush1.msra.mxu0 %v1996
      %2073 = vmatprep.subr.mxu0 0.0
      %2074 = vmatpush1.msra.mxu0 0.0
      %2075 = vmatprep.subr.mxu0 0.0
      %2076 = vmatpush1.msra.mxu0 0.0
      %2077 = vmatprep.subr.mxu0 0.0
      %2078 = vmatpush1.msra.mxu0 0.0
      %2079 = vmatprep.subr.mxu0 0.0
      %2080 = vmatpush1.msra.mxu0 0.0
      %2081 = vmatprep.subr.mxu0 0.0
      %2082 = vmatpush1.msra.mxu0 0.0
      %2083 = vmatprep.subr.mxu0 0.0
      %2084 = vmatpush1.msra.mxu0 0.0
      %2085 = vmatprep.subr.mxu0 0.0
      %2086 = vmatpush1.msra.mxu0 0.0
      %2087 = vmatprep.subr.mxu0 0.0
      %2088 = vmatpush1.msra.mxu0 0.0
      %2089 = vmatprep.subr.mxu0 0.0
      %2090 = vmatpush1.msra.mxu0 0.0
      %2091 = vmatprep.subr.mxu0 0.0
      %2092 = vmatpush1.msra.mxu0 0.0
      %2093 = vmatprep.subr.mxu0 0.0
      %2094 = vmatpush1.msra.mxu0 0.0
      %2095 = vmatprep.subr.mxu0 0.0
      %2096 = vmatpush1.msra.mxu0 0.0
      %2097 = vmatprep.subr.mxu0 0.0
      %2098 = vmatpush1.msra.mxu0 0.0
      %2099 = vmatprep.subr.mxu0 0.0
      %2100 = vmatpush1.msra.mxu0 0.0
      %2101 = vmatprep.subr.mxu0 0.0
      %2102 = vmatpush1.msra.mxu0 0.0
      %2103 = vmatprep.subr.mxu0 0.0
      %2104 = vmatpush1.msra.mxu0 0.0
      %2105 = vmatprep.subr.mxu0 0.0
      %2106 = vmatpush1.msra.mxu0 0.0
      %2107 = vmatprep.subr.mxu0 0.0
      %2108 = vmatpush1.msra.mxu0 0.0
      %2109 = vmatprep.subr.mxu0 0.0
      %2110 = vmatpush1.msra.mxu0 0.0
      %2111 = vmatprep.subr.mxu0 0.0
      %2112 = vmatpush1.msra.mxu0 0.0
      %2113 = vmatprep.subr.mxu0 0.0
      %2114 = vmatpush1.msra.mxu0 0.0
      %2115 = vmatprep.subr.mxu0 0.0
      %2116 = vmatpush1.msra.mxu0 0.0
      %2117 = vmatprep.subr.mxu0 0.0
      %2118 = vmatpush1.msra.mxu0 0.0
      %2119 = vmatprep.subr.mxu0 0.0
      %2120 = vmatpush1.msra.mxu0 0.0
      %2121 = vmatprep.subr.mxu0 0.0
      %2122 = vmatpush1.msra.mxu0 0.0
      %2123 = vmatprep.subr.mxu0 0.0
      %2124 = vmatpush1.msra.mxu0 0.0
      %2125 = vmatprep.subr.mxu0 0.0
      %2126 = vmatpush1.msra.mxu0 0.0
      %2127 = vmatprep.subr.mxu0 0.0
      %2128 = vmatpush1.msra.mxu0 0.0
      %2129 = vmatprep.subr.mxu0 0.0
      %2130 = vmatpush1.msra.mxu0 0.0
      %2131 = vmatprep.subr.mxu0 0.0
      %2132 = vmatpush1.msra.mxu0 0.0
      %2133 = vmatprep.subr.mxu0 0.0
      %2134 = vmatpush1.msra.mxu0 0.0
      %2135 = vmatprep.mubr.f32.mxu0 0.0
      %2136 = vmatmul.mubr.f32.gmra.mrb[0].mxu0 %v1990
      %v2137 = vpop.f32.mrb[0].mxu0
      %v2138 = vadd.f32 0.0, %v2137
      %v2139 = vpop.f32.mrb[0].mxu0
      %v2140 = vadd.f32 0.0, %v2139
      %2141 = vdwg.mxu0
      %v2142 = vadd.f32 %v1968, %v2067
      %v2143 = vadd.f32 %v1969, %v2069
      %v2144 = vadd.f32 %v1970, %v2138
      %v2145 = vadd.f32 %v1971, %v2140
      %s2146 = scalar_lea.vmem %s1, 88
      %v2147 = vld [vmem:[%s2146] sm:$0xff]
      %2148 = vrot.lane.b32.xlu0 %v246, 62
      %v2149 = vpop.permute.xlu0 %2148
      %2150 = vrot.lane.b32.xlu0 %v255, 62
      %v2151 = vpop.permute.xlu0 %2150
      %2152 = vrot.lane.b32.xlu0 %v247, 62
      %v2153 = vpop.permute.xlu0 %2152
      %2154 = vrot.lane.b32.xlu0 %v256, 62
      %v2155 = vpop.permute.xlu0 %2154
      %2156 = vrot.lane.b32.xlu0 %v248, 62
      %v2157 = vpop.permute.xlu0 %2156
      %vm2158 = vcmask 506880
      %v2159 = vsel %vm2158, %v2149, %v2151
      %v2160 = vsel %vm2158, %v2151, %v2153
      %v2161 = vsel %vm2158, %v2153, %v2155
      %v2162 = vsel %vm2158, %v2155, %v2157
      %v2164 = vsel %vm272, %v2147, 0
      %v2166 = vsel %vm276, %v2159, 0
      %v2168 = vsel %vm276, %v2160, 0
      %v2170 = vsel %vm276, %v2161, 0
      %v2172 = vsel %vm276, %v2162, 0
      %2174 = vmatprep.subr.mxu0 %v2168
      %2175 = vmatpush1.msra.mxu0 %v2166
      %2176 = vmatprep.subr.mxu0 0.0
      %2177 = vmatpush1.msra.mxu0 0.0
      %2178 = vmatprep.subr.mxu0 0.0
      %2179 = vmatpush1.msra.mxu0 0.0
      %2180 = vmatprep.subr.mxu0 0.0
      %2181 = vmatpush1.msra.mxu0 0.0
      %2182 = vmatprep.subr.mxu0 0.0
      %2183 = vmatpush1.msra.mxu0 0.0
      %2184 = vmatprep.subr.mxu0 0.0
      %2185 = vmatpush1.msra.mxu0 0.0
      %2186 = vmatprep.subr.mxu0 0.0
      %2187 = vmatpush1.msra.mxu0 0.0
      %2188 = vmatprep.subr.mxu0 0.0
      %2189 = vmatpush1.msra.mxu0 0.0
      %2190 = vmatprep.subr.mxu0 0.0
      %2191 = vmatpush1.msra.mxu0 0.0
      %2192 = vmatprep.subr.mxu0 0.0
      %2193 = vmatpush1.msra.mxu0 0.0
      %2194 = vmatprep.subr.mxu0 0.0
      %2195 = vmatpush1.msra.mxu0 0.0
      %2196 = vmatprep.subr.mxu0 0.0
      %2197 = vmatpush1.msra.mxu0 0.0
      %2198 = vmatprep.subr.mxu0 0.0
      %2199 = vmatpush1.msra.mxu0 0.0
      %2200 = vmatprep.subr.mxu0 0.0
      %2201 = vmatpush1.msra.mxu0 0.0
      %2202 = vmatprep.subr.mxu0 0.0
      %2203 = vmatpush1.msra.mxu0 0.0
      %2204 = vmatprep.subr.mxu0 0.0
      %2205 = vmatpush1.msra.mxu0 0.0
      %2206 = vmatprep.subr.mxu0 0.0
      %2207 = vmatpush1.msra.mxu0 0.0
      %2208 = vmatprep.subr.mxu0 0.0
      %2209 = vmatpush1.msra.mxu0 0.0
      %2210 = vmatprep.subr.mxu0 0.0
      %2211 = vmatpush1.msra.mxu0 0.0
      %2212 = vmatprep.subr.mxu0 0.0
      %2213 = vmatpush1.msra.mxu0 0.0
      %2214 = vmatprep.subr.mxu0 0.0
      %2215 = vmatpush1.msra.mxu0 0.0
      %2216 = vmatprep.subr.mxu0 0.0
      %2217 = vmatpush1.msra.mxu0 0.0
      %2218 = vmatprep.subr.mxu0 0.0
      %2219 = vmatpush1.msra.mxu0 0.0
      %2220 = vmatprep.subr.mxu0 0.0
      %2221 = vmatpush1.msra.mxu0 0.0
      %2222 = vmatprep.subr.mxu0 0.0
      %2223 = vmatpush1.msra.mxu0 0.0
      %2224 = vmatprep.subr.mxu0 0.0
      %2225 = vmatpush1.msra.mxu0 0.0
      %2226 = vmatprep.subr.mxu0 0.0
      %2227 = vmatpush1.msra.mxu0 0.0
      %2228 = vmatprep.subr.mxu0 0.0
      %2229 = vmatpush1.msra.mxu0 0.0
      %2230 = vmatprep.subr.mxu0 0.0
      %2231 = vmatpush1.msra.mxu0 0.0
      %2232 = vmatprep.subr.mxu0 0.0
      %2233 = vmatpush1.msra.mxu0 0.0
      %2234 = vmatprep.subr.mxu0 0.0
      %2235 = vmatpush1.msra.mxu0 0.0
      %2236 = vmatprep.subr.mxu0 0.0
      %2237 = vmatpush1.msra.mxu0 0.0
      %2238 = vmatprep.mubr.f32.mxu0 0.0
      %2239 = vmatmul.mubr.f32.gmra.mrb[0].mxu0 %v2164
      %v2240 = vpop.f32.mrb[0].mxu0
      %v2241 = vadd.f32 0.0, %v2240
      %v2242 = vpop.f32.mrb[0].mxu0
      %v2243 = vadd.f32 0.0, %v2242
      %2244 = vdwg.mxu0
      %2245 = vmatprep.subr.mxu0 %v2172
      %2246 = vmatpush1.msra.mxu0 %v2170
      %2247 = vmatprep.subr.mxu0 0.0
      %2248 = vmatpush1.msra.mxu0 0.0
      %2249 = vmatprep.subr.mxu0 0.0
      %2250 = vmatpush1.msra.mxu0 0.0
      %2251 = vmatprep.subr.mxu0 0.0
      %2252 = vmatpush1.msra.mxu0 0.0
      %2253 = vmatprep.subr.mxu0 0.0
      %2254 = vmatpush1.msra.mxu0 0.0
      %2255 = vmatprep.subr.mxu0 0.0
      %2256 = vmatpush1.msra.mxu0 0.0
      %2257 = vmatprep.subr.mxu0 0.0
      %2258 = vmatpush1.msra.mxu0 0.0
      %2259 = vmatprep.subr.mxu0 0.0
      %2260 = vmatpush1.msra.mxu0 0.0
      %2261 = vmatprep.subr.mxu0 0.0
      %2262 = vmatpush1.msra.mxu0 0.0
      %2263 = vmatprep.subr.mxu0 0.0
      %2264 = vmatpush1.msra.mxu0 0.0
      %2265 = vmatprep.subr.mxu0 0.0
      %2266 = vmatpush1.msra.mxu0 0.0
      %2267 = vmatprep.subr.mxu0 0.0
      %2268 = vmatpush1.msra.mxu0 0.0
      %2269 = vmatprep.subr.mxu0 0.0
      %2270 = vmatpush1.msra.mxu0 0.0
      %2271 = vmatprep.subr.mxu0 0.0
      %2272 = vmatpush1.msra.mxu0 0.0
      %2273 = vmatprep.subr.mxu0 0.0
      %2274 = vmatpush1.msra.mxu0 0.0
      %2275 = vmatprep.subr.mxu0 0.0
      %2276 = vmatpush1.msra.mxu0 0.0
      %2277 = vmatprep.subr.mxu0 0.0
      %2278 = vmatpush1.msra.mxu0 0.0
      %2279 = vmatprep.subr.mxu0 0.0
      %2280 = vmatpush1.msra.mxu0 0.0
      %2281 = vmatprep.subr.mxu0 0.0
      %2282 = vmatpush1.msra.mxu0 0.0
      %2283 = vmatprep.subr.mxu0 0.0
      %2284 = vmatpush1.msra.mxu0 0.0
      %2285 = vmatprep.subr.mxu0 0.0
      %2286 = vmatpush1.msra.mxu0 0.0
      %2287 = vmatprep.subr.mxu0 0.0
      %2288 = vmatpush1.msra.mxu0 0.0
      %2289 = vmatprep.subr.mxu0 0.0
      %2290 = vmatpush1.msra.mxu0 0.0
      %2291 = vmatprep.subr.mxu0 0.0
      %2292 = vmatpush1.msra.mxu0 0.0
      %2293 = vmatprep.subr.mxu0 0.0
      %2294 = vmatpush1.msra.mxu0 0.0
      %2295 = vmatprep.subr.mxu0 0.0
      %2296 = vmatpush1.msra.mxu0 0.0
      %2297 = vmatprep.subr.mxu0 0.0
      %2298 = vmatpush1.msra.mxu0 0.0
      %2299 = vmatprep.subr.mxu0 0.0
      %2300 = vmatpush1.msra.mxu0 0.0
      %2301 = vmatprep.subr.mxu0 0.0
      %2302 = vmatpush1.msra.mxu0 0.0
      %2303 = vmatprep.subr.mxu0 0.0
      %2304 = vmatpush1.msra.mxu0 0.0
      %2305 = vmatprep.subr.mxu0 0.0
      %2306 = vmatpush1.msra.mxu0 0.0
      %2307 = vmatprep.subr.mxu0 0.0
      %2308 = vmatpush1.msra.mxu0 0.0
      %2309 = vmatprep.mubr.f32.mxu0 0.0
      %2310 = vmatmul.mubr.f32.gmra.mrb[0].mxu0 %v2164
      %v2311 = vpop.f32.mrb[0].mxu0
      %v2312 = vadd.f32 0.0, %v2311
      %v2313 = vpop.f32.mrb[0].mxu0
      %v2314 = vadd.f32 0.0, %v2313
      %2315 = vdwg.mxu0
      %v2316 = vadd.f32 %v2142, %v2241
      %v2317 = vadd.f32 %v2143, %v2243
      %v2318 = vadd.f32 %v2144, %v2312
      %v2319 = vadd.f32 %v2145, %v2314
      %s2320 = scalar_lea.vmem %s1, 96
      %v2321 = vld [vmem:[%s2320] sm:$0xff]
      %2322 = vrot.lane.b32.xlu0 %v246, 56
      %v2323 = vpop.permute.xlu0 %2322
      %2324 = vrot.lane.b32.xlu0 %v255, 56
      %v2325 = vpop.permute.xlu0 %2324
      %2326 = vrot.lane.b32.xlu0 %v247, 56
      %v2327 = vpop.permute.xlu0 %2326
      %2328 = vrot.lane.b32.xlu0 %v256, 56
      %v2329 = vpop.permute.xlu0 %2328
      %2330 = vrot.lane.b32.xlu0 %v248, 56
      %v2331 = vpop.permute.xlu0 %2330
      %vm2332 = vcmask 457728
      %v2333 = vsel %vm2332, %v2323, %v2325
      %v2334 = vsel %vm2332, %v2325, %v2327
      %v2335 = vsel %vm2332, %v2327, %v2329
      %v2336 = vsel %vm2332, %v2329, %v2331
      %v2338 = vsel %vm272, %v2321, 0
      %v2340 = vsel %vm276, %v2333, 0
      %v2342 = vsel %vm276, %v2334, 0
      %v2344 = vsel %vm276, %v2335, 0
      %v2346 = vsel %vm276, %v2336, 0
      %2348 = vmatprep.subr.mxu0 %v2342
      %2349 = vmatpush1.msra.mxu0 %v2340
      %2350 = vmatprep.subr.mxu0 0.0
      %2351 = vmatpush1.msra.mxu0 0.0
      %2352 = vmatprep.subr.mxu0 0.0
      %2353 = vmatpush1.msra.mxu0 0.0
      %2354 = vmatprep.subr.mxu0 0.0
      %2355 = vmatpush1.msra.mxu0 0.0
      %2356 = vmatprep.subr.mxu0 0.0
      %2357 = vmatpush1.msra.mxu0 0.0
      %2358 = vmatprep.subr.mxu0 0.0
      %2359 = vmatpush1.msra.mxu0 0.0
      %2360 = vmatprep.subr.mxu0 0.0
      %2361 = vmatpush1.msra.mxu0 0.0
      %2362 = vmatprep.subr.mxu0 0.0
      %2363 = vmatpush1.msra.mxu0 0.0
      %2364 = vmatprep.subr.mxu0 0.0
      %2365 = vmatpush1.msra.mxu0 0.0
      %2366 = vmatprep.subr.mxu0 0.0
      %2367 = vmatpush1.msra.mxu0 0.0
      %2368 = vmatprep.subr.mxu0 0.0
      %2369 = vmatpush1.msra.mxu0 0.0
      %2370 = vmatprep.subr.mxu0 0.0
      %2371 = vmatpush1.msra.mxu0 0.0
      %2372 = vmatprep.subr.mxu0 0.0
      %2373 = vmatpush1.msra.mxu0 0.0
      %2374 = vmatprep.subr.mxu0 0.0
      %2375 = vmatpush1.msra.mxu0 0.0
      %2376 = vmatprep.subr.mxu0 0.0
      %2377 = vmatpush1.msra.mxu0 0.0
      %2378 = vmatprep.subr.mxu0 0.0
      %2379 = vmatpush1.msra.mxu0 0.0
      %2380 = vmatprep.subr.mxu0 0.0
      %2381 = vmatpush1.msra.mxu0 0.0
      %2382 = vmatprep.subr.mxu0 0.0
      %2383 = vmatpush1.msra.mxu0 0.0
      %2384 = vmatprep.subr.mxu0 0.0
      %2385 = vmatpush1.msra.mxu0 0.0
      %2386 = vmatprep.subr.mxu0 0.0
      %2387 = vmatpush1.msra.mxu0 0.0
      %2388 = vmatprep.subr.mxu0 0.0
      %2389 = vmatpush1.msra.mxu0 0.0
      %2390 = vmatprep.subr.mxu0 0.0
      %2391 = vmatpush1.msra.mxu0 0.0
      %2392 = vmatprep.subr.mxu0 0.0
      %2393 = vmatpush1.msra.mxu0 0.0
      %2394 = vmatprep.subr.mxu0 0.0
      %2395 = vmatpush1.msra.mxu0 0.0
      %2396 = vmatprep.subr.mxu0 0.0
      %2397 = vmatpush1.msra.mxu0 0.0
      %2398 = vmatprep.subr.mxu0 0.0
      %2399 = vmatpush1.msra.mxu0 0.0
      %2400 = vmatprep.subr.mxu0 0.0
      %2401 = vmatpush1.msra.mxu0 0.0
      %2402 = vmatprep.subr.mxu0 0.0
      %2403 = vmatpush1.msra.mxu0 0.0
      %2404 = vmatprep.subr.mxu0 0.0
      %2405 = vmatpush1.msra.mxu0 0.0
      %2406 = vmatprep.subr.mxu0 0.0
      %2407 = vmatpush1.msra.mxu0 0.0
      %2408 = vmatprep.subr.mxu0 0.0
      %2409 = vmatpush1.msra.mxu0 0.0
      %2410 = vmatprep.subr.mxu0 0.0
      %2411 = vmatpush1.msra.mxu0 0.0
      %2412 = vmatprep.mubr.f32.mxu0 0.0
      %2413 = vmatmul.mubr.f32.gmra.mrb[0].mxu0 %v2338
      %v2414 = vpop.f32.mrb[0].mxu0
      %v2415 = vadd.f32 0.0, %v2414
      %v2416 = vpop.f32.mrb[0].mxu0
      %v2417 = vadd.f32 0.0, %v2416
      %2418 = vdwg.mxu0
      %2419 = vmatprep.subr.mxu0 %v2346
      %2420 = vmatpush1.msra.mxu0 %v2344
      %2421 = vmatprep.subr.mxu0 0.0
      %2422 = vmatpush1.msra.mxu0 0.0
      %2423 = vmatprep.subr.mxu0 0.0
      %2424 = vmatpush1.msra.mxu0 0.0
      %2425 = vmatprep.subr.mxu0 0.0
      %2426 = vmatpush1.msra.mxu0 0.0
      %2427 = vmatprep.subr.mxu0 0.0
      %2428 = vmatpush1.msra.mxu0 0.0
      %2429 = vmatprep.subr.mxu0 0.0
      %2430 = vmatpush1.msra.mxu0 0.0
      %2431 = vmatprep.subr.mxu0 0.0
      %2432 = vmatpush1.msra.mxu0 0.0
      %2433 = vmatprep.subr.mxu0 0.0
      %2434 = vmatpush1.msra.mxu0 0.0
      %2435 = vmatprep.subr.mxu0 0.0
      %2436 = vmatpush1.msra.mxu0 0.0
      %2437 = vmatprep.subr.mxu0 0.0
      %2438 = vmatpush1.msra.mxu0 0.0
      %2439 = vmatprep.subr.mxu0 0.0
      %2440 = vmatpush1.msra.mxu0 0.0
      %2441 = vmatprep.subr.mxu0 0.0
      %2442 = vmatpush1.msra.mxu0 0.0
      %2443 = vmatprep.subr.mxu0 0.0
      %2444 = vmatpush1.msra.mxu0 0.0
      %2445 = vmatprep.subr.mxu0 0.0
      %2446 = vmatpush1.msra.mxu0 0.0
      %2447 = vmatprep.subr.mxu0 0.0
      %2448 = vmatpush1.msra.mxu0 0.0
      %2449 = vmatprep.subr.mxu0 0.0
      %2450 = vmatpush1.msra.mxu0 0.0
      %2451 = vmatprep.subr.mxu0 0.0
      %2452 = vmatpush1.msra.mxu0 0.0
      %2453 = vmatprep.subr.mxu0 0.0
      %2454 = vmatpush1.msra.mxu0 0.0
      %2455 = vmatprep.subr.mxu0 0.0
      %2456 = vmatpush1.msra.mxu0 0.0
      %2457 = vmatprep.subr.mxu0 0.0
      %2458 = vmatpush1.msra.mxu0 0.0
      %2459 = vmatprep.subr.mxu0 0.0
      %2460 = vmatpush1.msra.mxu0 0.0
      %2461 = vmatprep.subr.mxu0 0.0
      %2462 = vmatpush1.msra.mxu0 0.0
      %2463 = vmatprep.subr.mxu0 0.0
      %2464 = vmatpush1.msra.mxu0 0.0
      %2465 = vmatprep.subr.mxu0 0.0
      %2466 = vmatpush1.msra.mxu0 0.0
      %2467 = vmatprep.subr.mxu0 0.0
      %2468 = vmatpush1.msra.mxu0 0.0
      %2469 = vmatprep.subr.mxu0 0.0
      %2470 = vmatpush1.msra.mxu0 0.0
      %2471 = vmatprep.subr.mxu0 0.0
      %2472 = vmatpush1.msra.mxu0 0.0
      %2473 = vmatprep.subr.mxu0 0.0
      %2474 = vmatpush1.msra.mxu0 0.0
      %2475 = vmatprep.subr.mxu0 0.0
      %2476 = vmatpush1.msra.mxu0 0.0
      %2477 = vmatprep.subr.mxu0 0.0
      %2478 = vmatpush1.msra.mxu0 0.0
      %2479 = vmatprep.subr.mxu0 0.0
      %2480 = vmatpush1.msra.mxu0 0.0
      %2481 = vmatprep.subr.mxu0 0.0
      %2482 = vmatpush1.msra.mxu0 0.0
      %2483 = vmatprep.mubr.f32.mxu0 0.0
      %2484 = vmatmul.mubr.f32.gmra.mrb[0].mxu0 %v2338
      %v2485 = vpop.f32.mrb[0].mxu0
      %v2486 = vadd.f32 0.0, %v2485
      %v2487 = vpop.f32.mrb[0].mxu0
      %v2488 = vadd.f32 0.0, %v2487
      %2489 = vdwg.mxu0
      %v2490 = vadd.f32 %v2316, %v2415
      %v2491 = vadd.f32 %v2317, %v2417
      %v2492 = vadd.f32 %v2318, %v2486
      %v2493 = vadd.f32 %v2319, %v2488
      %s2494 = scalar_lea.vmem %s1, 104
      %v2495 = vld [vmem:[%s2494] sm:$0xff]
      %2496 = vrot.lane.b32.xlu0 %v246, 55
      %v2497 = vpop.permute.xlu0 %2496
      %2498 = vrot.lane.b32.xlu0 %v255, 55
      %v2499 = vpop.permute.xlu0 %2498
      %2500 = vrot.lane.b32.xlu0 %v247, 55
      %v2501 = vpop.permute.xlu0 %2500
      %2502 = vrot.lane.b32.xlu0 %v256, 55
      %v2503 = vpop.permute.xlu0 %2502
      %2504 = vrot.lane.b32.xlu0 %v248, 55
      %v2505 = vpop.permute.xlu0 %2504
      %vm2506 = vcmask 449536
      %v2507 = vsel %vm2506, %v2497, %v2499
      %v2508 = vsel %vm2506, %v2499, %v2501
      %v2509 = vsel %vm2506, %v2501, %v2503
      %v2510 = vsel %vm2506, %v2503, %v2505
      %v2512 = vsel %vm272, %v2495, 0
      %v2514 = vsel %vm276, %v2507, 0
      %v2516 = vsel %vm276, %v2508, 0
      %v2518 = vsel %vm276, %v2509, 0
      %v2520 = vsel %vm276, %v2510, 0
      %2522 = vmatprep.subr.mxu0 %v2516
      %2523 = vmatpush1.msra.mxu0 %v2514
      %2524 = vmatprep.subr.mxu0 0.0
      %2525 = vmatpush1.msra.mxu0 0.0
      %2526 = vmatprep.subr.mxu0 0.0
      %2527 = vmatpush1.msra.mxu0 0.0
      %2528 = vmatprep.subr.mxu0 0.0
      %2529 = vmatpush1.msra.mxu0 0.0
      %2530 = vmatprep.subr.mxu0 0.0
      %2531 = vmatpush1.msra.mxu0 0.0
      %2532 = vmatprep.subr.mxu0 0.0
      %2533 = vmatpush1.msra.mxu0 0.0
      %2534 = vmatprep.subr.mxu0 0.0
      %2535 = vmatpush1.msra.mxu0 0.0
      %2536 = vmatprep.subr.mxu0 0.0
      %2537 = vmatpush1.msra.mxu0 0.0
      %2538 = vmatprep.subr.mxu0 0.0
      %2539 = vmatpush1.msra.mxu0 0.0
      %2540 = vmatprep.subr.mxu0 0.0
      %2541 = vmatpush1.msra.mxu0 0.0
      %2542 = vmatprep.subr.mxu0 0.0
      %2543 = vmatpush1.msra.mxu0 0.0
      %2544 = vmatprep.subr.mxu0 0.0
      %2545 = vmatpush1.msra.mxu0 0.0
      %2546 = vmatprep.subr.mxu0 0.0
      %2547 = vmatpush1.msra.mxu0 0.0
      %2548 = vmatprep.subr.mxu0 0.0
      %2549 = vmatpush1.msra.mxu0 0.0
      %2550 = vmatprep.subr.mxu0 0.0
      %2551 = vmatpush1.msra.mxu0 0.0
      %2552 = vmatprep.subr.mxu0 0.0
      %2553 = vmatpush1.msra.mxu0 0.0
      %2554 = vmatprep.subr.mxu0 0.0
      %2555 = vmatpush1.msra.mxu0 0.0
      %2556 = vmatprep.subr.mxu0 0.0
      %2557 = vmatpush1.msra.mxu0 0.0
      %2558 = vmatprep.subr.mxu0 0.0
      %2559 = vmatpush1.msra.mxu0 0.0
      %2560 = vmatprep.subr.mxu0 0.0
      %2561 = vmatpush1.msra.mxu0 0.0
      %2562 = vmatprep.subr.mxu0 0.0
      %2563 = vmatpush1.msra.mxu0 0.0
      %2564 = vmatprep.subr.mxu0 0.0
      %2565 = vmatpush1.msra.mxu0 0.0
      %2566 = vmatprep.subr.mxu0 0.0
      %2567 = vmatpush1.msra.mxu0 0.0
      %2568 = vmatprep.subr.mxu0 0.0
      %2569 = vmatpush1.msra.mxu0 0.0
      %2570 = vmatprep.subr.mxu0 0.0
      %2571 = vmatpush1.msra.mxu0 0.0
      %2572 = vmatprep.subr.mxu0 0.0
      %2573 = vmatpush1.msra.mxu0 0.0
      %2574 = vmatprep.subr.mxu0 0.0
      %2575 = vmatpush1.msra.mxu0 0.0
      %2576 = vmatprep.subr.mxu0 0.0
      %2577 = vmatpush1.msra.mxu0 0.0
      %2578 = vmatprep.subr.mxu0 0.0
      %2579 = vmatpush1.msra.mxu0 0.0
      %2580 = vmatprep.subr.mxu0 0.0
      %2581 = vmatpush1.msra.mxu0 0.0
      %2582 = vmatprep.subr.mxu0 0.0
      %2583 = vmatpush1.msra.mxu0 0.0
      %2584 = vmatprep.subr.mxu0 0.0
      %2585 = vmatpush1.msra.mxu0 0.0
      %2586 = vmatprep.mubr.f32.mxu0 0.0
      %2587 = vmatmul.mubr.f32.gmra.mrb[0].mxu0 %v2512
      %v2588 = vpop.f32.mrb[0].mxu0
      %v2589 = vadd.f32 0.0, %v2588
      %v2590 = vpop.f32.mrb[0].mxu0
      %v2591 = vadd.f32 0.0, %v2590
      %2592 = vdwg.mxu0
      %2593 = vmatprep.subr.mxu0 %v2520
      %2594 = vmatpush1.msra.mxu0 %v2518
      %2595 = vmatprep.subr.mxu0 0.0
      %2596 = vmatpush1.msra.mxu0 0.0
      %2597 = vmatprep.subr.mxu0 0.0
      %2598 = vmatpush1.msra.mxu0 0.0
      %2599 = vmatprep.subr.mxu0 0.0
      %2600 = vmatpush1.msra.mxu0 0.0
      %2601 = vmatprep.subr.mxu0 0.0
      %2602 = vmatpush1.msra.mxu0 0.0
      %2603 = vmatprep.subr.mxu0 0.0
      %2604 = vmatpush1.msra.mxu0 0.0
      %2605 = vmatprep.subr.mxu0 0.0
      %2606 = vmatpush1.msra.mxu0 0.0
      %2607 = vmatprep.subr.mxu0 0.0
      %2608 = vmatpush1.msra.mxu0 0.0
      %2609 = vmatprep.subr.mxu0 0.0
      %2610 = vmatpush1.msra.mxu0 0.0
      %2611 = vmatprep.subr.mxu0 0.0
      %2612 = vmatpush1.msra.mxu0 0.0
      %2613 = vmatprep.subr.mxu0 0.0
      %2614 = vmatpush1.msra.mxu0 0.0
      %2615 = vmatprep.subr.mxu0 0.0
      %2616 = vmatpush1.msra.mxu0 0.0
      %2617 = vmatprep.subr.mxu0 0.0
      %2618 = vmatpush1.msra.mxu0 0.0
      %2619 = vmatprep.subr.mxu0 0.0
      %2620 = vmatpush1.msra.mxu0 0.0
      %2621 = vmatprep.subr.mxu0 0.0
      %2622 = vmatpush1.msra.mxu0 0.0
      %2623 = vmatprep.subr.mxu0 0.0
      %2624 = vmatpush1.msra.mxu0 0.0
      %2625 = vmatprep.subr.mxu0 0.0
      %2626 = vmatpush1.msra.mxu0 0.0
      %2627 = vmatprep.subr.mxu0 0.0
      %2628 = vmatpush1.msra.mxu0 0.0
      %2629 = vmatprep.subr.mxu0 0.0
      %2630 = vmatpush1.msra.mxu0 0.0
      %2631 = vmatprep.subr.mxu0 0.0
      %2632 = vmatpush1.msra.mxu0 0.0
      %2633 = vmatprep.subr.mxu0 0.0
      %2634 = vmatpush1.msra.mxu0 0.0
      %2635 = vmatprep.subr.mxu0 0.0
      %2636 = vmatpush1.msra.mxu0 0.0
      %2637 = vmatprep.subr.mxu0 0.0
      %2638 = vmatpush1.msra.mxu0 0.0
      %2639 = vmatprep.subr.mxu0 0.0
      %2640 = vmatpush1.msra.mxu0 0.0
      %2641 = vmatprep.subr.mxu0 0.0
      %2642 = vmatpush1.msra.mxu0 0.0
      %2643 = vmatprep.subr.mxu0 0.0
      %2644 = vmatpush1.msra.mxu0 0.0
      %2645 = vmatprep.subr.mxu0 0.0
      %2646 = vmatpush1.msra.mxu0 0.0
      %2647 = vmatprep.subr.mxu0 0.0
      %2648 = vmatpush1.msra.mxu0 0.0
      %2649 = vmatprep.subr.mxu0 0.0
      %2650 = vmatpush1.msra.mxu0 0.0
      %2651 = vmatprep.subr.mxu0 0.0
      %2652 = vmatpush1.msra.mxu0 0.0
      %2653 = vmatprep.subr.mxu0 0.0
      %2654 = vmatpush1.msra.mxu0 0.0
      %2655 = vmatprep.subr.mxu0 0.0
      %2656 = vmatpush1.msra.mxu0 0.0
      %2657 = vmatprep.mubr.f32.mxu0 0.0
      %2658 = vmatmul.mubr.f32.gmra.mrb[0].mxu0 %v2512
      %v2659 = vpop.f32.mrb[0].mxu0
      %v2660 = vadd.f32 0.0, %v2659
      %v2661 = vpop.f32.mrb[0].mxu0
      %v2662 = vadd.f32 0.0, %v2661
      %2663 = vdwg.mxu0
      %v2664 = vadd.f32 %v2490, %v2589
      %v2665 = vadd.f32 %v2491, %v2591
      %v2666 = vadd.f32 %v2492, %v2660
      %v2667 = vadd.f32 %v2493, %v2662
      %s2668 = scalar_lea.vmem %s1, 112
      %v2669 = vld [vmem:[%s2668] sm:$0xff]
      %2670 = vrot.lane.b32.xlu0 %v246, 54
      %v2671 = vpop.permute.xlu0 %2670
      %2672 = vrot.lane.b32.xlu0 %v255, 54
      %v2673 = vpop.permute.xlu0 %2672
      %2674 = vrot.lane.b32.xlu0 %v247, 54
      %v2675 = vpop.permute.xlu0 %2674
      %2676 = vrot.lane.b32.xlu0 %v256, 54
      %v2677 = vpop.permute.xlu0 %2676
      %2678 = vrot.lane.b32.xlu0 %v248, 54
      %v2679 = vpop.permute.xlu0 %2678
      %vm2680 = vcmask 441344
      %v2681 = vsel %vm2680, %v2671, %v2673
      %v2682 = vsel %vm2680, %v2673, %v2675
      %v2683 = vsel %vm2680, %v2675, %v2677
      %v2684 = vsel %vm2680, %v2677, %v2679
      %v2686 = vsel %vm272, %v2669, 0
      %v2688 = vsel %vm276, %v2681, 0
      %v2690 = vsel %vm276, %v2682, 0
      %v2692 = vsel %vm276, %v2683, 0
      %v2694 = vsel %vm276, %v2684, 0
      %2696 = vmatprep.subr.mxu0 %v2690
      %2697 = vmatpush1.msra.mxu0 %v2688
      %2698 = vmatprep.subr.mxu0 0.0
      %2699 = vmatpush1.msra.mxu0 0.0
      %2700 = vmatprep.subr.mxu0 0.0
      %2701 = vmatpush1.msra.mxu0 0.0
      %2702 = vmatprep.subr.mxu0 0.0
      %2703 = vmatpush1.msra.mxu0 0.0
      %2704 = vmatprep.subr.mxu0 0.0
      %2705 = vmatpush1.msra.mxu0 0.0
      %2706 = vmatprep.subr.mxu0 0.0
      %2707 = vmatpush1.msra.mxu0 0.0
      %2708 = vmatprep.subr.mxu0 0.0
      %2709 = vmatpush1.msra.mxu0 0.0
      %2710 = vmatprep.subr.mxu0 0.0
      %2711 = vmatpush1.msra.mxu0 0.0
      %2712 = vmatprep.subr.mxu0 0.0
      %2713 = vmatpush1.msra.mxu0 0.0
      %2714 = vmatprep.subr.mxu0 0.0
      %2715 = vmatpush1.msra.mxu0 0.0
      %2716 = vmatprep.subr.mxu0 0.0
      %2717 = vmatpush1.msra.mxu0 0.0
      %2718 = vmatprep.subr.mxu0 0.0
      %2719 = vmatpush1.msra.mxu0 0.0
      %2720 = vmatprep.subr.mxu0 0.0
      %2721 = vmatpush1.msra.mxu0 0.0
      %2722 = vmatprep.subr.mxu0 0.0
      %2723 = vmatpush1.msra.mxu0 0.0
      %2724 = vmatprep.subr.mxu0 0.0
      %2725 = vmatpush1.msra.mxu0 0.0
      %2726 = vmatprep.subr.mxu0 0.0
      %2727 = vmatpush1.msra.mxu0 0.0
      %2728 = vmatprep.subr.mxu0 0.0
      %2729 = vmatpush1.msra.mxu0 0.0
      %2730 = vmatprep.subr.mxu0 0.0
      %2731 = vmatpush1.msra.mxu0 0.0
      %2732 = vmatprep.subr.mxu0 0.0
      %2733 = vmatpush1.msra.mxu0 0.0
      %2734 = vmatprep.subr.mxu0 0.0
      %2735 = vmatpush1.msra.mxu0 0.0
      %2736 = vmatprep.subr.mxu0 0.0
      %2737 = vmatpush1.msra.mxu0 0.0
      %2738 = vmatprep.subr.mxu0 0.0
      %2739 = vmatpush1.msra.mxu0 0.0
      %2740 = vmatprep.subr.mxu0 0.0
      %2741 = vmatpush1.msra.mxu0 0.0
      %2742 = vmatprep.subr.mxu0 0.0
      %2743 = vmatpush1.msra.mxu0 0.0
      %2744 = vmatprep.subr.mxu0 0.0
      %2745 = vmatpush1.msra.mxu0 0.0
      %2746 = vmatprep.subr.mxu0 0.0
      %2747 = vmatpush1.msra.mxu0 0.0
      %2748 = vmatprep.subr.mxu0 0.0
      %2749 = vmatpush1.msra.mxu0 0.0
      %2750 = vmatprep.subr.mxu0 0.0
      %2751 = vmatpush1.msra.mxu0 0.0
      %2752 = vmatprep.subr.mxu0 0.0
      %2753 = vmatpush1.msra.mxu0 0.0
      %2754 = vmatprep.subr.mxu0 0.0
      %2755 = vmatpush1.msra.mxu0 0.0
      %2756 = vmatprep.subr.mxu0 0.0
      %2757 = vmatpush1.msra.mxu0 0.0
      %2758 = vmatprep.subr.mxu0 0.0
      %2759 = vmatpush1.msra.mxu0 0.0
      %2760 = vmatprep.mubr.f32.mxu0 0.0
      %2761 = vmatmul.mubr.f32.gmra.mrb[0].mxu0 %v2686
      %v2762 = vpop.f32.mrb[0].mxu0
      %v2763 = vadd.f32 0.0, %v2762
      %v2764 = vpop.f32.mrb[0].mxu0
      %v2765 = vadd.f32 0.0, %v2764
      %2766 = vdwg.mxu0
      %2767 = vmatprep.subr.mxu0 %v2694
      %2768 = vmatpush1.msra.mxu0 %v2692
      %2769 = vmatprep.subr.mxu0 0.0
      %2770 = vmatpush1.msra.mxu0 0.0
      %2771 = vmatprep.subr.mxu0 0.0
      %2772 = vmatpush1.msra.mxu0 0.0
      %2773 = vmatprep.subr.mxu0 0.0
      %2774 = vmatpush1.msra.mxu0 0.0
      %2775 = vmatprep.subr.mxu0 0.0
      %2776 = vmatpush1.msra.mxu0 0.0
      %2777 = vmatprep.subr.mxu0 0.0
      %2778 = vmatpush1.msra.mxu0 0.0
      %2779 = vmatprep.subr.mxu0 0.0
      %2780 = vmatpush1.msra.mxu0 0.0
      %2781 = vmatprep.subr.mxu0 0.0
      %2782 = vmatpush1.msra.mxu0 0.0
      %2783 = vmatprep.subr.mxu0 0.0
      %2784 = vmatpush1.msra.mxu0 0.0
      %2785 = vmatprep.subr.mxu0 0.0
      %2786 = vmatpush1.msra.mxu0 0.0
      %2787 = vmatprep.subr.mxu0 0.0
      %2788 = vmatpush1.msra.mxu0 0.0
      %2789 = vmatprep.subr.mxu0 0.0
      %2790 = vmatpush1.msra.mxu0 0.0
      %2791 = vmatprep.subr.mxu0 0.0
      %2792 = vmatpush1.msra.mxu0 0.0
      %2793 = vmatprep.subr.mxu0 0.0
      %2794 = vmatpush1.msra.mxu0 0.0
      %2795 = vmatprep.subr.mxu0 0.0
      %2796 = vmatpush1.msra.mxu0 0.0
      %2797 = vmatprep.subr.mxu0 0.0
      %2798 = vmatpush1.msra.mxu0 0.0
      %2799 = vmatprep.subr.mxu0 0.0
      %2800 = vmatpush1.msra.mxu0 0.0
      %2801 = vmatprep.subr.mxu0 0.0
      %2802 = vmatpush1.msra.mxu0 0.0
      %2803 = vmatprep.subr.mxu0 0.0
      %2804 = vmatpush1.msra.mxu0 0.0
      %2805 = vmatprep.subr.mxu0 0.0
      %2806 = vmatpush1.msra.mxu0 0.0
      %2807 = vmatprep.subr.mxu0 0.0
      %2808 = vmatpush1.msra.mxu0 0.0
      %2809 = vmatprep.subr.mxu0 0.0
      %2810 = vmatpush1.msra.mxu0 0.0
      %2811 = vmatprep.subr.mxu0 0.0
      %2812 = vmatpush1.msra.mxu0 0.0
      %2813 = vmatprep.subr.mxu0 0.0
      %2814 = vmatpush1.msra.mxu0 0.0
      %2815 = vmatprep.subr.mxu0 0.0
      %2816 = vmatpush1.msra.mxu0 0.0
      %2817 = vmatprep.subr.mxu0 0.0
      %2818 = vmatpush1.msra.mxu0 0.0
      %2819 = vmatprep.subr.mxu0 0.0
      %2820 = vmatpush1.msra.mxu0 0.0
      %2821 = vmatprep.subr.mxu0 0.0
      %2822 = vmatpush1.msra.mxu0 0.0
      %2823 = vmatprep.subr.mxu0 0.0
      %2824 = vmatpush1.msra.mxu0 0.0
      %2825 = vmatprep.subr.mxu0 0.0
      %2826 = vmatpush1.msra.mxu0 0.0
      %2827 = vmatprep.subr.mxu0 0.0
      %2828 = vmatpush1.msra.mxu0 0.0
      %2829 = vmatprep.subr.mxu0 0.0
      %2830 = vmatpush1.msra.mxu0 0.0
      %2831 = vmatprep.mubr.f32.mxu0 0.0
      %2832 = vmatmul.mubr.f32.gmra.mrb[0].mxu0 %v2686
      %v2833 = vpop.f32.mrb[0].mxu0
      %v2834 = vadd.f32 0.0, %v2833
      %v2835 = vpop.f32.mrb[0].mxu0
      %v2836 = vadd.f32 0.0, %v2835
      %2837 = vdwg.mxu0
      %v2838 = vadd.f32 %v2664, %v2763
      %v2839 = vadd.f32 %v2665, %v2765
      %v2840 = vadd.f32 %v2666, %v2834
      %v2841 = vadd.f32 %v2667, %v2836
      %s2842 = scalar_lea.vmem %s1, 120
      %v2843 = vld [vmem:[%s2842] sm:$0xff]
      %2844 = vrot.lane.b32.xlu0 %v246, 48
      %v2845 = vpop.permute.xlu0 %2844
      %2846 = vrot.lane.b32.xlu0 %v255, 48
      %v2847 = vpop.permute.xlu0 %2846
      %2848 = vrot.lane.b32.xlu0 %v247, 48
      %v2849 = vpop.permute.xlu0 %2848
      %2850 = vrot.lane.b32.xlu0 %v256, 48
      %v2851 = vpop.permute.xlu0 %2850
      %2852 = vrot.lane.b32.xlu0 %v248, 48
      %v2853 = vpop.permute.xlu0 %2852
      %vm2854 = vcmask 392192
      %v2855 = vsel %vm2854, %v2845, %v2847
      %v2856 = vsel %vm2854, %v2847, %v2849
      %v2857 = vsel %vm2854, %v2849, %v2851
      %v2858 = vsel %vm2854, %v2851, %v2853
      %v2860 = vsel %vm272, %v2843, 0
      %v2862 = vsel %vm276, %v2855, 0
      %v2864 = vsel %vm276, %v2856, 0
      %v2866 = vsel %vm276, %v2857, 0
      %v2868 = vsel %vm276, %v2858, 0
      %2870 = vmatprep.subr.mxu0 %v2864
      %2871 = vmatpush1.msra.mxu0 %v2862
      %2872 = vmatprep.subr.mxu0 0.0
      %2873 = vmatpush1.msra.mxu0 0.0
      %2874 = vmatprep.subr.mxu0 0.0
      %2875 = vmatpush1.msra.mxu0 0.0
      %2876 = vmatprep.subr.mxu0 0.0
      %2877 = vmatpush1.msra.mxu0 0.0
      %2878 = vmatprep.subr.mxu0 0.0
      %2879 = vmatpush1.msra.mxu0 0.0
      %2880 = vmatprep.subr.mxu0 0.0
      %2881 = vmatpush1.msra.mxu0 0.0
      %2882 = vmatprep.subr.mxu0 0.0
      %2883 = vmatpush1.msra.mxu0 0.0
      %2884 = vmatprep.subr.mxu0 0.0
      %2885 = vmatpush1.msra.mxu0 0.0
      %2886 = vmatprep.subr.mxu0 0.0
      %2887 = vmatpush1.msra.mxu0 0.0
      %2888 = vmatprep.subr.mxu0 0.0
      %2889 = vmatpush1.msra.mxu0 0.0
      %2890 = vmatprep.subr.mxu0 0.0
      %2891 = vmatpush1.msra.mxu0 0.0
      %2892 = vmatprep.subr.mxu0 0.0
      %2893 = vmatpush1.msra.mxu0 0.0
      %2894 = vmatprep.subr.mxu0 0.0
      %2895 = vmatpush1.msra.mxu0 0.0
      %2896 = vmatprep.subr.mxu0 0.0
      %2897 = vmatpush1.msra.mxu0 0.0
      %2898 = vmatprep.subr.mxu0 0.0
      %2899 = vmatpush1.msra.mxu0 0.0
      %2900 = vmatprep.subr.mxu0 0.0
      %2901 = vmatpush1.msra.mxu0 0.0
      %2902 = vmatprep.subr.mxu0 0.0
      %2903 = vmatpush1.msra.mxu0 0.0
      %2904 = vmatprep.subr.mxu0 0.0
      %2905 = vmatpush1.msra.mxu0 0.0
      %2906 = vmatprep.subr.mxu0 0.0
      %2907 = vmatpush1.msra.mxu0 0.0
      %2908 = vmatprep.subr.mxu0 0.0
      %2909 = vmatpush1.msra.mxu0 0.0
      %2910 = vmatprep.subr.mxu0 0.0
      %2911 = vmatpush1.msra.mxu0 0.0
      %2912 = vmatprep.subr.mxu0 0.0
      %2913 = vmatpush1.msra.mxu0 0.0
      %2914 = vmatprep.subr.mxu0 0.0
      %2915 = vmatpush1.msra.mxu0 0.0
      %2916 = vmatprep.subr.mxu0 0.0
      %2917 = vmatpush1.msra.mxu0 0.0
      %2918 = vmatprep.subr.mxu0 0.0
      %2919 = vmatpush1.msra.mxu0 0.0
      %2920 = vmatprep.subr.mxu0 0.0
      %2921 = vmatpush1.msra.mxu0 0.0
      %2922 = vmatprep.subr.mxu0 0.0
      %2923 = vmatpush1.msra.mxu0 0.0
      %2924 = vmatprep.subr.mxu0 0.0
      %2925 = vmatpush1.msra.mxu0 0.0
      %2926 = vmatprep.subr.mxu0 0.0
      %2927 = vmatpush1.msra.mxu0 0.0
      %2928 = vmatprep.subr.mxu0 0.0
      %2929 = vmatpush1.msra.mxu0 0.0
      %2930 = vmatprep.subr.mxu0 0.0
      %2931 = vmatpush1.msra.mxu0 0.0
      %2932 = vmatprep.subr.mxu0 0.0
      %2933 = vmatpush1.msra.mxu0 0.0
      %2934 = vmatprep.mubr.f32.mxu0 0.0
      %2935 = vmatmul.mubr.f32.gmra.mrb[0].mxu0 %v2860
      %v2936 = vpop.f32.mrb[0].mxu0
      %v2937 = vadd.f32 0.0, %v2936
      %v2938 = vpop.f32.mrb[0].mxu0
      %v2939 = vadd.f32 0.0, %v2938
      %2940 = vdwg.mxu0
      %2941 = vmatprep.subr.mxu0 %v2868
      %2942 = vmatpush1.msra.mxu0 %v2866
      %2943 = vmatprep.subr.mxu0 0.0
      %2944 = vmatpush1.msra.mxu0 0.0
      %2945 = vmatprep.subr.mxu0 0.0
      %2946 = vmatpush1.msra.mxu0 0.0
      %2947 = vmatprep.subr.mxu0 0.0
      %2948 = vmatpush1.msra.mxu0 0.0
      %2949 = vmatprep.subr.mxu0 0.0
      %2950 = vmatpush1.msra.mxu0 0.0
      %2951 = vmatprep.subr.mxu0 0.0
      %2952 = vmatpush1.msra.mxu0 0.0
      %2953 = vmatprep.subr.mxu0 0.0
      %2954 = vmatpush1.msra.mxu0 0.0
      %2955 = vmatprep.subr.mxu0 0.0
      %2956 = vmatpush1.msra.mxu0 0.0
      %2957 = vmatprep.subr.mxu0 0.0
      %2958 = vmatpush1.msra.mxu0 0.0
      %2959 = vmatprep.subr.mxu0 0.0
      %2960 = vmatpush1.msra.mxu0 0.0
      %2961 = vmatprep.subr.mxu0 0.0
      %2962 = vmatpush1.msra.mxu0 0.0
      %2963 = vmatprep.subr.mxu0 0.0
      %2964 = vmatpush1.msra.mxu0 0.0
      %2965 = vmatprep.subr.mxu0 0.0
      %2966 = vmatpush1.msra.mxu0 0.0
      %2967 = vmatprep.subr.mxu0 0.0
      %2968 = vmatpush1.msra.mxu0 0.0
      %2969 = vmatprep.subr.mxu0 0.0
      %2970 = vmatpush1.msra.mxu0 0.0
      %2971 = vmatprep.subr.mxu0 0.0
      %2972 = vmatpush1.msra.mxu0 0.0
      %2973 = vmatprep.subr.mxu0 0.0
      %2974 = vmatpush1.msra.mxu0 0.0
      %2975 = vmatprep.subr.mxu0 0.0
      %2976 = vmatpush1.msra.mxu0 0.0
      %2977 = vmatprep.subr.mxu0 0.0
      %2978 = vmatpush1.msra.mxu0 0.0
      %2979 = vmatprep.subr.mxu0 0.0
      %2980 = vmatpush1.msra.mxu0 0.0
      %2981 = vmatprep.subr.mxu0 0.0
      %2982 = vmatpush1.msra.mxu0 0.0
      %2983 = vmatprep.subr.mxu0 0.0
      %2984 = vmatpush1.msra.mxu0 0.0
      %2985 = vmatprep.subr.mxu0 0.0
      %2986 = vmatpush1.msra.mxu0 0.0
      %2987 = vmatprep.subr.mxu0 0.0
      %2988 = vmatpush1.msra.mxu0 0.0
      %2989 = vmatprep.subr.mxu0 0.0
      %2990 = vmatpush1.msra.mxu0 0.0
      %2991 = vmatprep.subr.mxu0 0.0
      %2992 = vmatpush1.msra.mxu0 0.0
      %2993 = vmatprep.subr.mxu0 0.0
      %2994 = vmatpush1.msra.mxu0 0.0
      %2995 = vmatprep.subr.mxu0 0.0
      %2996 = vmatpush1.msra.mxu0 0.0
      %2997 = vmatprep.subr.mxu0 0.0
      %2998 = vmatpush1.msra.mxu0 0.0
      %2999 = vmatprep.subr.mxu0 0.0
      %3000 = vmatpush1.msra.mxu0 0.0
      %3001 = vmatprep.subr.mxu0 0.0
      %3002 = vmatpush1.msra.mxu0 0.0
      %3003 = vmatprep.subr.mxu0 0.0
      %3004 = vmatpush1.msra.mxu0 0.0
      %3005 = vmatprep.mubr.f32.mxu0 0.0
      %3006 = vmatmul.mubr.f32.gmra.mrb[0].mxu0 %v2860
      %v3007 = vpop.f32.mrb[0].mxu0
      %v3008 = vadd.f32 0.0, %v3007
      %v3009 = vpop.f32.mrb[0].mxu0
      %v3010 = vadd.f32 0.0, %v3009
      %3011 = vdwg.mxu0
      %v3012 = vadd.f32 %v2838, %v2937
      %v3013 = vadd.f32 %v2839, %v2939
      %v3014 = vadd.f32 %v2840, %v3008
      %v3015 = vadd.f32 %v2841, %v3010
      %s3016 = scalar_lea.vmem %s1, 128
      %v3017 = vld [vmem:[%s3016] sm:$0xff]
      %3018 = vrot.lane.b32.xlu0 %v246, 47
      %v3019 = vpop.permute.xlu0 %3018
      %3020 = vrot.lane.b32.xlu0 %v255, 47
      %v3021 = vpop.permute.xlu0 %3020
      %3022 = vrot.lane.b32.xlu0 %v247, 47
      %v3023 = vpop.permute.xlu0 %3022
      %3024 = vrot.lane.b32.xlu0 %v256, 47
      %v3025 = vpop.permute.xlu0 %3024
      %3026 = vrot.lane.b32.xlu0 %v248, 47
      %v3027 = vpop.permute.xlu0 %3026
      %vm3028 = vcmask 384000
      %v3029 = vsel %vm3028, %v3019, %v3021
      %v3030 = vsel %vm3028, %v3021, %v3023
      %v3031 = vsel %vm3028, %v3023, %v3025
      %v3032 = vsel %vm3028, %v3025, %v3027
      %v3034 = vsel %vm272, %v3017, 0
      %v3036 = vsel %vm276, %v3029, 0
      %v3038 = vsel %vm276, %v3030, 0
      %v3040 = vsel %vm276, %v3031, 0
      %v3042 = vsel %vm276, %v3032, 0
      %3044 = vmatprep.subr.mxu0 %v3038
      %3045 = vmatpush1.msra.mxu0 %v3036
      %3046 = vmatprep.subr.mxu0 0.0
      %3047 = vmatpush1.msra.mxu0 0.0
      %3048 = vmatprep.subr.mxu0 0.0
      %3049 = vmatpush1.msra.mxu0 0.0
      %3050 = vmatprep.subr.mxu0 0.0
      %3051 = vmatpush1.msra.mxu0 0.0
      %3052 = vmatprep.subr.mxu0 0.0
      %3053 = vmatpush1.msra.mxu0 0.0
      %3054 = vmatprep.subr.mxu0 0.0
      %3055 = vmatpush1.msra.mxu0 0.0
      %3056 = vmatprep.subr.mxu0 0.0
      %3057 = vmatpush1.msra.mxu0 0.0
      %3058 = vmatprep.subr.mxu0 0.0
      %3059 = vmatpush1.msra.mxu0 0.0
      %3060 = vmatprep.subr.mxu0 0.0
      %3061 = vmatpush1.msra.mxu0 0.0
      %3062 = vmatprep.subr.mxu0 0.0
      %3063 = vmatpush1.msra.mxu0 0.0
      %3064 = vmatprep.subr.mxu0 0.0
      %3065 = vmatpush1.msra.mxu0 0.0
      %3066 = vmatprep.subr.mxu0 0.0
      %3067 = vmatpush1.msra.mxu0 0.0
      %3068 = vmatprep.subr.mxu0 0.0
      %3069 = vmatpush1.msra.mxu0 0.0
      %3070 = vmatprep.subr.mxu0 0.0
      %3071 = vmatpush1.msra.mxu0 0.0
      %3072 = vmatprep.subr.mxu0 0.0
      %3073 = vmatpush1.msra.mxu0 0.0
      %3074 = vmatprep.subr.mxu0 0.0
      %3075 = vmatpush1.msra.mxu0 0.0
      %3076 = vmatprep.subr.mxu0 0.0
      %3077 = vmatpush1.msra.mxu0 0.0
      %3078 = vmatprep.subr.mxu0 0.0
      %3079 = vmatpush1.msra.mxu0 0.0
      %3080 = vmatprep.subr.mxu0 0.0
      %3081 = vmatpush1.msra.mxu0 0.0
      %3082 = vmatprep.subr.mxu0 0.0
      %3083 = vmatpush1.msra.mxu0 0.0
      %3084 = vmatprep.subr.mxu0 0.0
      %3085 = vmatpush1.msra.mxu0 0.0
      %3086 = vmatprep.subr.mxu0 0.0
      %3087 = vmatpush1.msra.mxu0 0.0
      %3088 = vmatprep.subr.mxu0 0.0
      %3089 = vmatpush1.msra.mxu0 0.0
      %3090 = vmatprep.subr.mxu0 0.0
      %3091 = vmatpush1.msra.mxu0 0.0
      %3092 = vmatprep.subr.mxu0 0.0
      %3093 = vmatpush1.msra.mxu0 0.0
      %3094 = vmatprep.subr.mxu0 0.0
      %3095 = vmatpush1.msra.mxu0 0.0
      %3096 = vmatprep.subr.mxu0 0.0
      %3097 = vmatpush1.msra.mxu0 0.0
      %3098 = vmatprep.subr.mxu0 0.0
      %3099 = vmatpush1.msra.mxu0 0.0
      %3100 = vmatprep.subr.mxu0 0.0
      %3101 = vmatpush1.msra.mxu0 0.0
      %3102 = vmatprep.subr.mxu0 0.0
      %3103 = vmatpush1.msra.mxu0 0.0
      %3104 = vmatprep.subr.mxu0 0.0
      %3105 = vmatpush1.msra.mxu0 0.0
      %3106 = vmatprep.subr.mxu0 0.0
      %3107 = vmatpush1.msra.mxu0 0.0
      %3108 = vmatprep.mubr.f32.mxu0 0.0
      %3109 = vmatmul.mubr.f32.gmra.mrb[0].mxu0 %v3034
      %v3110 = vpop.f32.mrb[0].mxu0
      %v3111 = vadd.f32 0.0, %v3110
      %v3112 = vpop.f32.mrb[0].mxu0
      %v3113 = vadd.f32 0.0, %v3112
      %3114 = vdwg.mxu0
      %3115 = vmatprep.subr.mxu0 %v3042
      %3116 = vmatpush1.msra.mxu0 %v3040
      %3117 = vmatprep.subr.mxu0 0.0
      %3118 = vmatpush1.msra.mxu0 0.0
      %3119 = vmatprep.subr.mxu0 0.0
      %3120 = vmatpush1.msra.mxu0 0.0
      %3121 = vmatprep.subr.mxu0 0.0
      %3122 = vmatpush1.msra.mxu0 0.0
      %3123 = vmatprep.subr.mxu0 0.0
      %3124 = vmatpush1.msra.mxu0 0.0
      %3125 = vmatprep.subr.mxu0 0.0
      %3126 = vmatpush1.msra.mxu0 0.0
      %3127 = vmatprep.subr.mxu0 0.0
      %3128 = vmatpush1.msra.mxu0 0.0
      %3129 = vmatprep.subr.mxu0 0.0
      %3130 = vmatpush1.msra.mxu0 0.0
      %3131 = vmatprep.subr.mxu0 0.0
      %3132 = vmatpush1.msra.mxu0 0.0
      %3133 = vmatprep.subr.mxu0 0.0
      %3134 = vmatpush1.msra.mxu0 0.0
      %3135 = vmatprep.subr.mxu0 0.0
      %3136 = vmatpush1.msra.mxu0 0.0
      %3137 = vmatprep.subr.mxu0 0.0
      %3138 = vmatpush1.msra.mxu0 0.0
      %3139 = vmatprep.subr.mxu0 0.0
      %3140 = vmatpush1.msra.mxu0 0.0
      %3141 = vmatprep.subr.mxu0 0.0
      %3142 = vmatpush1.msra.mxu0 0.0
      %3143 = vmatprep.subr.mxu0 0.0
      %3144 = vmatpush1.msra.mxu0 0.0
      %3145 = vmatprep.subr.mxu0 0.0
      %3146 = vmatpush1.msra.mxu0 0.0
      %3147 = vmatprep.subr.mxu0 0.0
      %3148 = vmatpush1.msra.mxu0 0.0
      %3149 = vmatprep.subr.mxu0 0.0
      %3150 = vmatpush1.msra.mxu0 0.0
      %3151 = vmatprep.subr.mxu0 0.0
      %3152 = vmatpush1.msra.mxu0 0.0
      %3153 = vmatprep.subr.mxu0 0.0
      %3154 = vmatpush1.msra.mxu0 0.0
      %3155 = vmatprep.subr.mxu0 0.0
      %3156 = vmatpush1.msra.mxu0 0.0
      %3157 = vmatprep.subr.mxu0 0.0
      %3158 = vmatpush1.msra.mxu0 0.0
      %3159 = vmatprep.subr.mxu0 0.0
      %3160 = vmatpush1.msra.mxu0 0.0
      %3161 = vmatprep.subr.mxu0 0.0
      %3162 = vmatpush1.msra.mxu0 0.0
      %3163 = vmatprep.subr.mxu0 0.0
      %3164 = vmatpush1.msra.mxu0 0.0
      %3165 = vmatprep.subr.mxu0 0.0
      %3166 = vmatpush1.msra.mxu0 0.0
      %3167 = vmatprep.subr.mxu0 0.0
      %3168 = vmatpush1.msra.mxu0 0.0
      %3169 = vmatprep.subr.mxu0 0.0
      %3170 = vmatpush1.msra.mxu0 0.0
      %3171 = vmatprep.subr.mxu0 0.0
      %3172 = vmatpush1.msra.mxu0 0.0
      %3173 = vmatprep.subr.mxu0 0.0
      %3174 = vmatpush1.msra.mxu0 0.0
      %3175 = vmatprep.subr.mxu0 0.0
      %3176 = vmatpush1.msra.mxu0 0.0
      %3177 = vmatprep.subr.mxu0 0.0
      %3178 = vmatpush1.msra.mxu0 0.0
      %3179 = vmatprep.mubr.f32.mxu0 0.0
      %3180 = vmatmul.mubr.f32.gmra.mrb[0].mxu0 %v3034
      %v3181 = vpop.f32.mrb[0].mxu0
      %v3182 = vadd.f32 0.0, %v3181
      %v3183 = vpop.f32.mrb[0].mxu0
      %v3184 = vadd.f32 0.0, %v3183
      %3185 = vdwg.mxu0
      %v3186 = vadd.f32 %v3012, %v3111
      %v3187 = vadd.f32 %v3013, %v3113
      %v3188 = vadd.f32 %v3014, %v3182
      %v3189 = vadd.f32 %v3015, %v3184
      %s3190 = scalar_lea.vmem %s1, 136
      %v3191 = vld [vmem:[%s3190] sm:$0xff]
      %3192 = vrot.lane.b32.xlu0 %v246, 46
      %v3193 = vpop.permute.xlu0 %3192
      %3194 = vrot.lane.b32.xlu0 %v255, 46
      %v3195 = vpop.permute.xlu0 %3194
      %3196 = vrot.lane.b32.xlu0 %v247, 46
      %v3197 = vpop.permute.xlu0 %3196
      %3198 = vrot.lane.b32.xlu0 %v256, 46
      %v3199 = vpop.permute.xlu0 %3198
      %3200 = vrot.lane.b32.xlu0 %v248, 46
      %v3201 = vpop.permute.xlu0 %3200
      %vm3202 = vcmask 375808
      %v3203 = vsel %vm3202, %v3193, %v3195
      %v3204 = vsel %vm3202, %v3195, %v3197
      %v3205 = vsel %vm3202, %v3197, %v3199
      %v3206 = vsel %vm3202, %v3199, %v3201
      %v3208 = vsel %vm272, %v3191, 0
      %v3210 = vsel %vm276, %v3203, 0
      %v3212 = vsel %vm276, %v3204, 0
      %v3214 = vsel %vm276, %v3205, 0
      %v3216 = vsel %vm276, %v3206, 0
      %3218 = vmatprep.subr.mxu0 %v3212
      %3219 = vmatpush1.msra.mxu0 %v3210
      %3220 = vmatprep.subr.mxu0 0.0
      %3221 = vmatpush1.msra.mxu0 0.0
      %3222 = vmatprep.subr.mxu0 0.0
      %3223 = vmatpush1.msra.mxu0 0.0
      %3224 = vmatprep.subr.mxu0 0.0
      %3225 = vmatpush1.msra.mxu0 0.0
      %3226 = vmatprep.subr.mxu0 0.0
      %3227 = vmatpush1.msra.mxu0 0.0
      %3228 = vmatprep.subr.mxu0 0.0
      %3229 = vmatpush1.msra.mxu0 0.0
      %3230 = vmatprep.subr.mxu0 0.0
      %3231 = vmatpush1.msra.mxu0 0.0
      %3232 = vmatprep.subr.mxu0 0.0
      %3233 = vmatpush1.msra.mxu0 0.0
      %3234 = vmatprep.subr.mxu0 0.0
      %3235 = vmatpush1.msra.mxu0 0.0
      %3236 = vmatprep.subr.mxu0 0.0
      %3237 = vmatpush1.msra.mxu0 0.0
      %3238 = vmatprep.subr.mxu0 0.0
      %3239 = vmatpush1.msra.mxu0 0.0
      %3240 = vmatprep.subr.mxu0 0.0
      %3241 = vmatpush1.msra.mxu0 0.0
      %3242 = vmatprep.subr.mxu0 0.0
      %3243 = vmatpush1.msra.mxu0 0.0
      %3244 = vmatprep.subr.mxu0 0.0
      %3245 = vmatpush1.msra.mxu0 0.0
      %3246 = vmatprep.subr.mxu0 0.0
      %3247 = vmatpush1.msra.mxu0 0.0
      %3248 = vmatprep.subr.mxu0 0.0
      %3249 = vmatpush1.msra.mxu0 0.0
      %3250 = vmatprep.subr.mxu0 0.0
      %3251 = vmatpush1.msra.mxu0 0.0
      %3252 = vmatprep.subr.mxu0 0.0
      %3253 = vmatpush1.msra.mxu0 0.0
      %3254 = vmatprep.subr.mxu0 0.0
      %3255 = vmatpush1.msra.mxu0 0.0
      %3256 = vmatprep.subr.mxu0 0.0
      %3257 = vmatpush1.msra.mxu0 0.0
      %3258 = vmatprep.subr.mxu0 0.0
      %3259 = vmatpush1.msra.mxu0 0.0
      %3260 = vmatprep.subr.mxu0 0.0
      %3261 = vmatpush1.msra.mxu0 0.0
      %3262 = vmatprep.subr.mxu0 0.0
      %3263 = vmatpush1.msra.mxu0 0.0
      %3264 = vmatprep.subr.mxu0 0.0
      %3265 = vmatpush1.msra.mxu0 0.0
      %3266 = vmatprep.subr.mxu0 0.0
      %3267 = vmatpush1.msra.mxu0 0.0
      %3268 = vmatprep.subr.mxu0 0.0
      %3269 = vmatpush1.msra.mxu0 0.0
      %3270 = vmatprep.subr.mxu0 0.0
      %3271 = vmatpush1.msra.mxu0 0.0
      %3272 = vmatprep.subr.mxu0 0.0
      %3273 = vmatpush1.msra.mxu0 0.0
      %3274 = vmatprep.subr.mxu0 0.0
      %3275 = vmatpush1.msra.mxu0 0.0
      %3276 = vmatprep.subr.mxu0 0.0
      %3277 = vmatpush1.msra.mxu0 0.0
      %3278 = vmatprep.subr.mxu0 0.0
      %3279 = vmatpush1.msra.mxu0 0.0
      %3280 = vmatprep.subr.mxu0 0.0
      %3281 = vmatpush1.msra.mxu0 0.0
      %3282 = vmatprep.mubr.f32.mxu0 0.0
      %3283 = vmatmul.mubr.f32.gmra.mrb[0].mxu0 %v3208
      %v3284 = vpop.f32.mrb[0].mxu0
      %v3285 = vadd.f32 0.0, %v3284
      %v3286 = vpop.f32.mrb[0].mxu0
      %v3287 = vadd.f32 0.0, %v3286
      %3288 = vdwg.mxu0
      %3289 = vmatprep.subr.mxu0 %v3216
      %3290 = vmatpush1.msra.mxu0 %v3214
      %3291 = vmatprep.subr.mxu0 0.0
      %3292 = vmatpush1.msra.mxu0 0.0
      %3293 = vmatprep.subr.mxu0 0.0
      %3294 = vmatpush1.msra.mxu0 0.0
      %3295 = vmatprep.subr.mxu0 0.0
      %3296 = vmatpush1.msra.mxu0 0.0
      %3297 = vmatprep.subr.mxu0 0.0
      %3298 = vmatpush1.msra.mxu0 0.0
      %3299 = vmatprep.subr.mxu0 0.0
      %3300 = vmatpush1.msra.mxu0 0.0
      %3301 = vmatprep.subr.mxu0 0.0
      %3302 = vmatpush1.msra.mxu0 0.0
      %3303 = vmatprep.subr.mxu0 0.0
      %3304 = vmatpush1.msra.mxu0 0.0
      %3305 = vmatprep.subr.mxu0 0.0
      %3306 = vmatpush1.msra.mxu0 0.0
      %3307 = vmatprep.subr.mxu0 0.0
      %3308 = vmatpush1.msra.mxu0 0.0
      %3309 = vmatprep.subr.mxu0 0.0
      %3310 = vmatpush1.msra.mxu0 0.0
      %3311 = vmatprep.subr.mxu0 0.0
      %3312 = vmatpush1.msra.mxu0 0.0
      %3313 = vmatprep.subr.mxu0 0.0
      %3314 = vmatpush1.msra.mxu0 0.0
      %3315 = vmatprep.subr.mxu0 0.0
      %3316 = vmatpush1.msra.mxu0 0.0
      %3317 = vmatprep.subr.mxu0 0.0
      %3318 = vmatpush1.msra.mxu0 0.0
      %3319 = vmatprep.subr.mxu0 0.0
      %3320 = vmatpush1.msra.mxu0 0.0
      %3321 = vmatprep.subr.mxu0 0.0
      %3322 = vmatpush1.msra.mxu0 0.0
      %3323 = vmatprep.subr.mxu0 0.0
      %3324 = vmatpush1.msra.mxu0 0.0
      %3325 = vmatprep.subr.mxu0 0.0
      %3326 = vmatpush1.msra.mxu0 0.0
      %3327 = vmatprep.subr.mxu0 0.0
      %3328 = vmatpush1.msra.mxu0 0.0
      %3329 = vmatprep.subr.mxu0 0.0
      %3330 = vmatpush1.msra.mxu0 0.0
      %3331 = vmatprep.subr.mxu0 0.0
      %3332 = vmatpush1.msra.mxu0 0.0
      %3333 = vmatprep.subr.mxu0 0.0
      %3334 = vmatpush1.msra.mxu0 0.0
      %3335 = vmatprep.subr.mxu0 0.0
      %3336 = vmatpush1.msra.mxu0 0.0
      %3337 = vmatprep.subr.mxu0 0.0
      %3338 = vmatpush1.msra.mxu0 0.0
      %3339 = vmatprep.subr.mxu0 0.0
      %3340 = vmatpush1.msra.mxu0 0.0
      %3341 = vmatprep.subr.mxu0 0.0
      %3342 = vmatpush1.msra.mxu0 0.0
      %3343 = vmatprep.subr.mxu0 0.0
      %3344 = vmatpush1.msra.mxu0 0.0
      %3345 = vmatprep.subr.mxu0 0.0
      %3346 = vmatpush1.msra.mxu0 0.0
      %3347 = vmatprep.subr.mxu0 0.0
      %3348 = vmatpush1.msra.mxu0 0.0
      %3349 = vmatprep.subr.mxu0 0.0
      %3350 = vmatpush1.msra.mxu0 0.0
      %3351 = vmatprep.subr.mxu0 0.0
      %3352 = vmatpush1.msra.mxu0 0.0
      %3353 = vmatprep.mubr.f32.mxu0 0.0
      %3354 = vmatmul.mubr.f32.gmra.mrb[0].mxu0 %v3208
      %v3355 = vpop.f32.mrb[0].mxu0
      %v3356 = vadd.f32 0.0, %v3355
      %v3357 = vpop.f32.mrb[0].mxu0
      %v3358 = vadd.f32 0.0, %v3357
      %3359 = vdwg.mxu0
      %v3360 = vadd.f32 %v3186, %v3285
      %v3361 = vadd.f32 %v3187, %v3287
      %v3362 = vadd.f32 %v3188, %v3356
      %v3363 = vadd.f32 %v3189, %v3358
      %s3364 = scalar_lea.vmem %s1, 144
      %v3365 = vld [vmem:[%s3364] sm:$0xff]
      %v3367 = vsel %vm272, %v3365, 0
      %v3369 = vsel %vm276, %v248, 0
      %3371 = vmatprep.subr.mxu0 %v434
      %3372 = vmatpush1.msra.mxu0 %v432
      %3373 = vmatprep.subr.mxu0 0.0
      %3374 = vmatpush1.msra.mxu0 0.0
      %3375 = vmatprep.subr.mxu0 0.0
      %3376 = vmatpush1.msra.mxu0 0.0
      %3377 = vmatprep.subr.mxu0 0.0
      %3378 = vmatpush1.msra.mxu0 0.0
      %3379 = vmatprep.subr.mxu0 0.0
      %3380 = vmatpush1.msra.mxu0 0.0
      %3381 = vmatprep.subr.mxu0 0.0
      %3382 = vmatpush1.msra.mxu0 0.0
      %3383 = vmatprep.subr.mxu0 0.0
      %3384 = vmatpush1.msra.mxu0 0.0
      %3385 = vmatprep.subr.mxu0 0.0
      %3386 = vmatpush1.msra.mxu0 0.0
      %3387 = vmatprep.subr.mxu0 0.0
      %3388 = vmatpush1.msra.mxu0 0.0
      %3389 = vmatprep.subr.mxu0 0.0
      %3390 = vmatpush1.msra.mxu0 0.0
      %3391 = vmatprep.subr.mxu0 0.0
      %3392 = vmatpush1.msra.mxu0 0.0
      %3393 = vmatprep.subr.mxu0 0.0
      %3394 = vmatpush1.msra.mxu0 0.0
      %3395 = vmatprep.subr.mxu0 0.0
      %3396 = vmatpush1.msra.mxu0 0.0
      %3397 = vmatprep.subr.mxu0 0.0
      %3398 = vmatpush1.msra.mxu0 0.0
      %3399 = vmatprep.subr.mxu0 0.0
      %3400 = vmatpush1.msra.mxu0 0.0
      %3401 = vmatprep.subr.mxu0 0.0
      %3402 = vmatpush1.msra.mxu0 0.0
      %3403 = vmatprep.subr.mxu0 0.0
      %3404 = vmatpush1.msra.mxu0 0.0
      %3405 = vmatprep.subr.mxu0 0.0
      %3406 = vmatpush1.msra.mxu0 0.0
      %3407 = vmatprep.subr.mxu0 0.0
      %3408 = vmatpush1.msra.mxu0 0.0
      %3409 = vmatprep.subr.mxu0 0.0
      %3410 = vmatpush1.msra.mxu0 0.0
      %3411 = vmatprep.subr.mxu0 0.0
      %3412 = vmatpush1.msra.mxu0 0.0
      %3413 = vmatprep.subr.mxu0 0.0
      %3414 = vmatpush1.msra.mxu0 0.0
      %3415 = vmatprep.subr.mxu0 0.0
      %3416 = vmatpush1.msra.mxu0 0.0
      %3417 = vmatprep.subr.mxu0 0.0
      %3418 = vmatpush1.msra.mxu0 0.0
      %3419 = vmatprep.subr.mxu0 0.0
      %3420 = vmatpush1.msra.mxu0 0.0
      %3421 = vmatprep.subr.mxu0 0.0
      %3422 = vmatpush1.msra.mxu0 0.0
      %3423 = vmatprep.subr.mxu0 0.0
      %3424 = vmatpush1.msra.mxu0 0.0
      %3425 = vmatprep.subr.mxu0 0.0
      %3426 = vmatpush1.msra.mxu0 0.0
      %3427 = vmatprep.subr.mxu0 0.0
      %3428 = vmatpush1.msra.mxu0 0.0
      %3429 = vmatprep.subr.mxu0 0.0
      %3430 = vmatpush1.msra.mxu0 0.0
      %3431 = vmatprep.subr.mxu0 0.0
      %3432 = vmatpush1.msra.mxu0 0.0
      %3433 = vmatprep.subr.mxu0 0.0
      %3434 = vmatpush1.msra.mxu0 0.0
      %3435 = vmatprep.mubr.f32.mxu0 0.0
      %3436 = vmatmul.mubr.f32.gmra.mrb[0].mxu0 %v3367
      %v3437 = vpop.f32.mrb[0].mxu0
      %v3438 = vadd.f32 0.0, %v3437
      %v3439 = vpop.f32.mrb[0].mxu0
      %v3440 = vadd.f32 0.0, %v3439
      %3441 = vdwg.mxu0
      %3442 = vmatprep.subr.mxu0 %v3369
      %3443 = vmatpush1.msra.mxu0 %v436
      %3444 = vmatprep.subr.mxu0 0.0
      %3445 = vmatpush1.msra.mxu0 0.0
      %3446 = vmatprep.subr.mxu0 0.0
      %3447 = vmatpush1.msra.mxu0 0.0
      %3448 = vmatprep.subr.mxu0 0.0
      %3449 = vmatpush1.msra.mxu0 0.0
      %3450 = vmatprep.subr.mxu0 0.0
      %3451 = vmatpush1.msra.mxu0 0.0
      %3452 = vmatprep.subr.mxu0 0.0
      %3453 = vmatpush1.msra.mxu0 0.0
      %3454 = vmatprep.subr.mxu0 0.0
      %3455 = vmatpush1.msra.mxu0 0.0
      %3456 = vmatprep.subr.mxu0 0.0
      %3457 = vmatpush1.msra.mxu0 0.0
      %3458 = vmatprep.subr.mxu0 0.0
      %3459 = vmatpush1.msra.mxu0 0.0
      %3460 = vmatprep.subr.mxu0 0.0
      %3461 = vmatpush1.msra.mxu0 0.0
      %3462 = vmatprep.subr.mxu0 0.0
      %3463 = vmatpush1.msra.mxu0 0.0
      %3464 = vmatprep.subr.mxu0 0.0
      %3465 = vmatpush1.msra.mxu0 0.0
      %3466 = vmatprep.subr.mxu0 0.0
      %3467 = vmatpush1.msra.mxu0 0.0
      %3468 = vmatprep.subr.mxu0 0.0
      %3469 = vmatpush1.msra.mxu0 0.0
      %3470 = vmatprep.subr.mxu0 0.0
      %3471 = vmatpush1.msra.mxu0 0.0
      %3472 = vmatprep.subr.mxu0 0.0
      %3473 = vmatpush1.msra.mxu0 0.0
      %3474 = vmatprep.subr.mxu0 0.0
      %3475 = vmatpush1.msra.mxu0 0.0
      %3476 = vmatprep.subr.mxu0 0.0
      %3477 = vmatpush1.msra.mxu0 0.0
      %3478 = vmatprep.subr.mxu0 0.0
      %3479 = vmatpush1.msra.mxu0 0.0
      %3480 = vmatprep.subr.mxu0 0.0
      %3481 = vmatpush1.msra.mxu0 0.0
      %3482 = vmatprep.subr.mxu0 0.0
      %3483 = vmatpush1.msra.mxu0 0.0
      %3484 = vmatprep.subr.mxu0 0.0
      %3485 = vmatpush1.msra.mxu0 0.0
      %3486 = vmatprep.subr.mxu0 0.0
      %3487 = vmatpush1.msra.mxu0 0.0
      %3488 = vmatprep.subr.mxu0 0.0
      %3489 = vmatpush1.msra.mxu0 0.0
      %3490 = vmatprep.subr.mxu0 0.0
      %3491 = vmatpush1.msra.mxu0 0.0
      %3492 = vmatprep.subr.mxu0 0.0
      %3493 = vmatpush1.msra.mxu0 0.0
      %3494 = vmatprep.subr.mxu0 0.0
      %3495 = vmatpush1.msra.mxu0 0.0
      %3496 = vmatprep.subr.mxu0 0.0
      %3497 = vmatpush1.msra.mxu0 0.0
      %3498 = vmatprep.subr.mxu0 0.0
      %3499 = vmatpush1.msra.mxu0 0.0
      %3500 = vmatprep.subr.mxu0 0.0
      %3501 = vmatpush1.msra.mxu0 0.0
      %3502 = vmatprep.subr.mxu0 0.0
      %3503 = vmatpush1.msra.mxu0 0.0
      %3504 = vmatprep.subr.mxu0 0.0
      %3505 = vmatpush1.msra.mxu0 0.0
      %3506 = vmatprep.mubr.f32.mxu0 0.0
      %3507 = vmatmul.mubr.f32.gmra.mrb[0].mxu0 %v3367
      %v3508 = vpop.f32.mrb[0].mxu0
      %v3509 = vadd.f32 0.0, %v3508
      %v3510 = vpop.f32.mrb[0].mxu0
      %v3511 = vadd.f32 0.0, %v3510
      %3512 = vdwg.mxu0
      %v3513 = vadd.f32 %v3360, %v3438
      %v3514 = vadd.f32 %v3361, %v3440
      %v3515 = vadd.f32 %v3362, %v3509
      %v3516 = vadd.f32 %v3363, %v3511
      %s3517 = scalar_lea.vmem %s1, 152
      %v3518 = vld [vmem:[%s3517] sm:$0xff]
      %v3519 = vcombine.high %v248, %v248
      %3520 = vrot.lane.b32.xlu0 %v3519, 127
      %v3521 = vpop.permute.xlu0 %3520
      %v3522 = vsel %vm267, %v266, %v3521
      %v3524 = vsel %vm272, %v3518, 0
      %v3526 = vsel %vm276, %v3522, 0
      %3528 = vmatprep.subr.mxu0 %v281
      %3529 = vmatpush1.msra.mxu0 %v279
      %3530 = vmatprep.subr.mxu0 0.0
      %3531 = vmatpush1.msra.mxu0 0.0
      %3532 = vmatprep.subr.mxu0 0.0
      %3533 = vmatpush1.msra.mxu0 0.0
      %3534 = vmatprep.subr.mxu0 0.0
      %3535 = vmatpush1.msra.mxu0 0.0
      %3536 = vmatprep.subr.mxu0 0.0
      %3537 = vmatpush1.msra.mxu0 0.0
      %3538 = vmatprep.subr.mxu0 0.0
      %3539 = vmatpush1.msra.mxu0 0.0
      %3540 = vmatprep.subr.mxu0 0.0
      %3541 = vmatpush1.msra.mxu0 0.0
      %3542 = vmatprep.subr.mxu0 0.0
      %3543 = vmatpush1.msra.mxu0 0.0
      %3544 = vmatprep.subr.mxu0 0.0
      %3545 = vmatpush1.msra.mxu0 0.0
      %3546 = vmatprep.subr.mxu0 0.0
      %3547 = vmatpush1.msra.mxu0 0.0
      %3548 = vmatprep.subr.mxu0 0.0
      %3549 = vmatpush1.msra.mxu0 0.0
      %3550 = vmatprep.subr.mxu0 0.0
      %3551 = vmatpush1.msra.mxu0 0.0
      %3552 = vmatprep.subr.mxu0 0.0
      %3553 = vmatpush1.msra.mxu0 0.0
      %3554 = vmatprep.subr.mxu0 0.0
      %3555 = vmatpush1.msra.mxu0 0.0
      %3556 = vmatprep.subr.mxu0 0.0
      %3557 = vmatpush1.msra.mxu0 0.0
      %3558 = vmatprep.subr.mxu0 0.0
      %3559 = vmatpush1.msra.mxu0 0.0
      %3560 = vmatprep.subr.mxu0 0.0
      %3561 = vmatpush1.msra.mxu0 0.0
      %3562 = vmatprep.subr.mxu0 0.0
      %3563 = vmatpush1.msra.mxu0 0.0
      %3564 = vmatprep.subr.mxu0 0.0
      %3565 = vmatpush1.msra.mxu0 0.0
      %3566 = vmatprep.subr.mxu0 0.0
      %3567 = vmatpush1.msra.mxu0 0.0
      %3568 = vmatprep.subr.mxu0 0.0
      %3569 = vmatpush1.msra.mxu0 0.0
      %3570 = vmatprep.subr.mxu0 0.0
      %3571 = vmatpush1.msra.mxu0 0.0
      %3572 = vmatprep.subr.mxu0 0.0
      %3573 = vmatpush1.msra.mxu0 0.0
      %3574 = vmatprep.subr.mxu0 0.0
      %3575 = vmatpush1.msra.mxu0 0.0
      %3576 = vmatprep.subr.mxu0 0.0
      %3577 = vmatpush1.msra.mxu0 0.0
      %3578 = vmatprep.subr.mxu0 0.0
      %3579 = vmatpush1.msra.mxu0 0.0
      %3580 = vmatprep.subr.mxu0 0.0
      %3581 = vmatpush1.msra.mxu0 0.0
      %3582 = vmatprep.subr.mxu0 0.0
      %3583 = vmatpush1.msra.mxu0 0.0
      %3584 = vmatprep.subr.mxu0 0.0
      %3585 = vmatpush1.msra.mxu0 0.0
      %3586 = vmatprep.subr.mxu0 0.0
      %3587 = vmatpush1.msra.mxu0 0.0
      %3588 = vmatprep.subr.mxu0 0.0
      %3589 = vmatpush1.msra.mxu0 0.0
      %3590 = vmatprep.subr.mxu0 0.0
      %3591 = vmatpush1.msra.mxu0 0.0
      %3592 = vmatprep.mubr.f32.mxu0 0.0
      %3593 = vmatmul.mubr.f32.gmra.mrb[0].mxu0 %v3524
      %v3594 = vpop.f32.mrb[0].mxu0
      %v3595 = vadd.f32 0.0, %v3594
      %v3596 = vpop.f32.mrb[0].mxu0
      %v3597 = vadd.f32 0.0, %v3596
      %3598 = vdwg.mxu0
      %3599 = vmatprep.subr.mxu0 %v3526
      %3600 = vmatpush1.msra.mxu0 %v283
      %3601 = vmatprep.subr.mxu0 0.0
      %3602 = vmatpush1.msra.mxu0 0.0
      %3603 = vmatprep.subr.mxu0 0.0
      %3604 = vmatpush1.msra.mxu0 0.0
      %3605 = vmatprep.subr.mxu0 0.0
      %3606 = vmatpush1.msra.mxu0 0.0
      %3607 = vmatprep.subr.mxu0 0.0
      %3608 = vmatpush1.msra.mxu0 0.0
      %3609 = vmatprep.subr.mxu0 0.0
      %3610 = vmatpush1.msra.mxu0 0.0
      %3611 = vmatprep.subr.mxu0 0.0
      %3612 = vmatpush1.msra.mxu0 0.0
      %3613 = vmatprep.subr.mxu0 0.0
      %3614 = vmatpush1.msra.mxu0 0.0
      %3615 = vmatprep.subr.mxu0 0.0
      %3616 = vmatpush1.msra.mxu0 0.0
      %3617 = vmatprep.subr.mxu0 0.0
      %3618 = vmatpush1.msra.mxu0 0.0
      %3619 = vmatprep.subr.mxu0 0.0
      %3620 = vmatpush1.msra.mxu0 0.0
      %3621 = vmatprep.subr.mxu0 0.0
      %3622 = vmatpush1.msra.mxu0 0.0
      %3623 = vmatprep.subr.mxu0 0.0
      %3624 = vmatpush1.msra.mxu0 0.0
      %3625 = vmatprep.subr.mxu0 0.0
      %3626 = vmatpush1.msra.mxu0 0.0
      %3627 = vmatprep.subr.mxu0 0.0
      %3628 = vmatpush1.msra.mxu0 0.0
      %3629 = vmatprep.subr.mxu0 0.0
      %3630 = vmatpush1.msra.mxu0 0.0
      %3631 = vmatprep.subr.mxu0 0.0
      %3632 = vmatpush1.msra.mxu0 0.0
      %3633 = vmatprep.subr.mxu0 0.0
      %3634 = vmatpush1.msra.mxu0 0.0
      %3635 = vmatprep.subr.mxu0 0.0
      %3636 = vmatpush1.msra.mxu0 0.0
      %3637 = vmatprep.subr.mxu0 0.0
      %3638 = vmatpush1.msra.mxu0 0.0
      %3639 = vmatprep.subr.mxu0 0.0
      %3640 = vmatpush1.msra.mxu0 0.0
      %3641 = vmatprep.subr.mxu0 0.0
      %3642 = vmatpush1.msra.mxu0 0.0
      %3643 = vmatprep.subr.mxu0 0.0
      %3644 = vmatpush1.msra.mxu0 0.0
      %3645 = vmatprep.subr.mxu0 0.0
      %3646 = vmatpush1.msra.mxu0 0.0
      %3647 = vmatprep.subr.mxu0 0.0
      %3648 = vmatpush1.msra.mxu0 0.0
      %3649 = vmatprep.subr.mxu0 0.0
      %3650 = vmatpush1.msra.mxu0 0.0
      %3651 = vmatprep.subr.mxu0 0.0
      %3652 = vmatpush1.msra.mxu0 0.0
      %3653 = vmatprep.subr.mxu0 0.0
      %3654 = vmatpush1.msra.mxu0 0.0
      %3655 = vmatprep.subr.mxu0 0.0
      %3656 = vmatpush1.msra.mxu0 0.0
      %3657 = vmatprep.subr.mxu0 0.0
      %3658 = vmatpush1.msra.mxu0 0.0
      %3659 = vmatprep.subr.mxu0 0.0
      %3660 = vmatpush1.msra.mxu0 0.0
      %3661 = vmatprep.subr.mxu0 0.0
      %3662 = vmatpush1.msra.mxu0 0.0
      %3663 = vmatprep.mubr.f32.mxu0 0.0
      %3664 = vmatmul.mubr.f32.gmra.mrb[0].mxu0 %v3524
      %v3665 = vpop.f32.mrb[0].mxu0
      %v3666 = vadd.f32 0.0, %v3665
      %v3667 = vpop.f32.mrb[0].mxu0
      %v3668 = vadd.f32 0.0, %v3667
      %3669 = vdwg.mxu0
      %v3670 = vadd.f32 %v3513, %v3595
      %v3671 = vadd.f32 %v3514, %v3597
      %v3672 = vadd.f32 %v3515, %v3666
      %v3673 = vadd.f32 %v3516, %v3668
      %s3674 = scalar_lea.vmem %s1, 160
      %v3675 = vld [vmem:[%s3674] sm:$0xff]
      %3676 = vrot.lane.b32.xlu0 %v3519, 126
      %v3677 = vpop.permute.xlu0 %3676
      %v3678 = vsel %vm592, %v591, %v3677
      %v3680 = vsel %vm272, %v3675, 0
      %v3682 = vsel %vm276, %v3678, 0
      %3684 = vmatprep.subr.mxu0 %v604
      %3685 = vmatpush1.msra.mxu0 %v602
      %3686 = vmatprep.subr.mxu0 0.0
      %3687 = vmatpush1.msra.mxu0 0.0
      %3688 = vmatprep.subr.mxu0 0.0
      %3689 = vmatpush1.msra.mxu0 0.0
      %3690 = vmatprep.subr.mxu0 0.0
      %3691 = vmatpush1.msra.mxu0 0.0
      %3692 = vmatprep.subr.mxu0 0.0
      %3693 = vmatpush1.msra.mxu0 0.0
      %3694 = vmatprep.subr.mxu0 0.0
      %3695 = vmatpush1.msra.mxu0 0.0
      %3696 = vmatprep.subr.mxu0 0.0
      %3697 = vmatpush1.msra.mxu0 0.0
      %3698 = vmatprep.subr.mxu0 0.0
      %3699 = vmatpush1.msra.mxu0 0.0
      %3700 = vmatprep.subr.mxu0 0.0
      %3701 = vmatpush1.msra.mxu0 0.0
      %3702 = vmatprep.subr.mxu0 0.0
      %3703 = vmatpush1.msra.mxu0 0.0
      %3704 = vmatprep.subr.mxu0 0.0
      %3705 = vmatpush1.msra.mxu0 0.0
      %3706 = vmatprep.subr.mxu0 0.0
      %3707 = vmatpush1.msra.mxu0 0.0
      %3708 = vmatprep.subr.mxu0 0.0
      %3709 = vmatpush1.msra.mxu0 0.0
      %3710 = vmatprep.subr.mxu0 0.0
      %3711 = vmatpush1.msra.mxu0 0.0
      %3712 = vmatprep.subr.mxu0 0.0
      %3713 = vmatpush1.msra.mxu0 0.0
      %3714 = vmatprep.subr.mxu0 0.0
      %3715 = vmatpush1.msra.mxu0 0.0
      %3716 = vmatprep.subr.mxu0 0.0
      %3717 = vmatpush1.msra.mxu0 0.0
      %3718 = vmatprep.subr.mxu0 0.0
      %3719 = vmatpush1.msra.mxu0 0.0
      %3720 = vmatprep.subr.mxu0 0.0
      %3721 = vmatpush1.msra.mxu0 0.0
      %3722 = vmatprep.subr.mxu0 0.0
      %3723 = vmatpush1.msra.mxu0 0.0
      %3724 = vmatprep.subr.mxu0 0.0
      %3725 = vmatpush1.msra.mxu0 0.0
      %3726 = vmatprep.subr.mxu0 0.0
      %3727 = vmatpush1.msra.mxu0 0.0
      %3728 = vmatprep.subr.mxu0 0.0
      %3729 = vmatpush1.msra.mxu0 0.0
      %3730 = vmatprep.subr.mxu0 0.0
      %3731 = vmatpush1.msra.mxu0 0.0
      %3732 = vmatprep.subr.mxu0 0.0
      %3733 = vmatpush1.msra.mxu0 0.0
      %3734 = vmatprep.subr.mxu0 0.0
      %3735 = vmatpush1.msra.mxu0 0.0
      %3736 = vmatprep.subr.mxu0 0.0
      %3737 = vmatpush1.msra.mxu0 0.0
      %3738 = vmatprep.subr.mxu0 0.0
      %3739 = vmatpush1.msra.mxu0 0.0
      %3740 = vmatprep.subr.mxu0 0.0
      %3741 = vmatpush1.msra.mxu0 0.0
      %3742 = vmatprep.subr.mxu0 0.0
      %3743 = vmatpush1.msra.mxu0 0.0
      %3744 = vmatprep.subr.mxu0 0.0
      %3745 = vmatpush1.msra.mxu0 0.0
      %3746 = vmatprep.subr.mxu0 0.0
      %3747 = vmatpush1.msra.mxu0 0.0
      %3748 = vmatprep.mubr.f32.mxu0 0.0
      %3749 = vmatmul.mubr.f32.gmra.mrb[0].mxu0 %v3680
      %v3750 = vpop.f32.mrb[0].mxu0
      %v3751 = vadd.f32 0.0, %v3750
      %v3752 = vpop.f32.mrb[0].mxu0
      %v3753 = vadd.f32 0.0, %v3752
      %3754 = vdwg.mxu0
      %3755 = vmatprep.subr.mxu0 %v3682
      %3756 = vmatpush1.msra.mxu0 %v606
      %3757 = vmatprep.subr.mxu0 0.0
      %3758 = vmatpush1.msra.mxu0 0.0
      %3759 = vmatprep.subr.mxu0 0.0
      %3760 = vmatpush1.msra.mxu0 0.0
      %3761 = vmatprep.subr.mxu0 0.0
      %3762 = vmatpush1.msra.mxu0 0.0
      %3763 = vmatprep.subr.mxu0 0.0
      %3764 = vmatpush1.msra.mxu0 0.0
      %3765 = vmatprep.subr.mxu0 0.0
      %3766 = vmatpush1.msra.mxu0 0.0
      %3767 = vmatprep.subr.mxu0 0.0
      %3768 = vmatpush1.msra.mxu0 0.0
      %3769 = vmatprep.subr.mxu0 0.0
      %3770 = vmatpush1.msra.mxu0 0.0
      %3771 = vmatprep.subr.mxu0 0.0
      %3772 = vmatpush1.msra.mxu0 0.0
      %3773 = vmatprep.subr.mxu0 0.0
      %3774 = vmatpush1.msra.mxu0 0.0
      %3775 = vmatprep.subr.mxu0 0.0
      %3776 = vmatpush1.msra.mxu0 0.0
      %3777 = vmatprep.subr.mxu0 0.0
      %3778 = vmatpush1.msra.mxu0 0.0
      %3779 = vmatprep.subr.mxu0 0.0
      %3780 = vmatpush1.msra.mxu0 0.0
      %3781 = vmatprep.subr.mxu0 0.0
      %3782 = vmatpush1.msra.mxu0 0.0
      %3783 = vmatprep.subr.mxu0 0.0
      %3784 = vmatpush1.msra.mxu0 0.0
      %3785 = vmatprep.subr.mxu0 0.0
      %3786 = vmatpush1.msra.mxu0 0.0
      %3787 = vmatprep.subr.mxu0 0.0
      %3788 = vmatpush1.msra.mxu0 0.0
      %3789 = vmatprep.subr.mxu0 0.0
      %3790 = vmatpush1.msra.mxu0 0.0
      %3791 = vmatprep.subr.mxu0 0.0
      %3792 = vmatpush1.msra.mxu0 0.0
      %3793 = vmatprep.subr.mxu0 0.0
      %3794 = vmatpush1.msra.mxu0 0.0
      %3795 = vmatprep.subr.mxu0 0.0
      %3796 = vmatpush1.msra.mxu0 0.0
      %3797 = vmatprep.subr.mxu0 0.0
      %3798 = vmatpush1.msra.mxu0 0.0
      %3799 = vmatprep.subr.mxu0 0.0
      %3800 = vmatpush1.msra.mxu0 0.0
      %3801 = vmatprep.subr.mxu0 0.0
      %3802 = vmatpush1.msra.mxu0 0.0
      %3803 = vmatprep.subr.mxu0 0.0
      %3804 = vmatpush1.msra.mxu0 0.0
      %3805 = vmatprep.subr.mxu0 0.0
      %3806 = vmatpush1.msra.mxu0 0.0
      %3807 = vmatprep.subr.mxu0 0.0
      %3808 = vmatpush1.msra.mxu0 0.0
      %3809 = vmatprep.subr.mxu0 0.0
      %3810 = vmatpush1.msra.mxu0 0.0
      %3811 = vmatprep.subr.mxu0 0.0
      %3812 = vmatpush1.msra.mxu0 0.0
      %3813 = vmatprep.subr.mxu0 0.0
      %3814 = vmatpush1.msra.mxu0 0.0
      %3815 = vmatprep.subr.mxu0 0.0
      %3816 = vmatpush1.msra.mxu0 0.0
      %3817 = vmatprep.subr.mxu0 0.0
      %3818 = vmatpush1.msra.mxu0 0.0
      %3819 = vmatprep.mubr.f32.mxu0 0.0
      %3820 = vmatmul.mubr.f32.gmra.mrb[0].mxu0 %v3680
      %v3821 = vpop.f32.mrb[0].mxu0
      %v3822 = vadd.f32 0.0, %v3821
      %v3823 = vpop.f32.mrb[0].mxu0
      %v3824 = vadd.f32 0.0, %v3823
      %3825 = vdwg.mxu0
      %v3826 = vadd.f32 %v3670, %v3751
      %v3827 = vadd.f32 %v3671, %v3753
      %v3828 = vadd.f32 %v3672, %v3822
      %v3829 = vadd.f32 %v3673, %v3824
      %s3830 = scalar_lea.vmem %s1, 168
      %v3831 = vld [vmem:[%s3830] sm:$0xff]
      %3832 = vrot.lane.b32.xlu0 %v3519, 120
      %v3833 = vpop.permute.xlu0 %3832
      %v3834 = vsel %vm766, %v765, %v3833
      %v3836 = vsel %vm272, %v3831, 0
      %v3838 = vsel %vm276, %v3834, 0
      %3840 = vmatprep.subr.mxu0 %v778
      %3841 = vmatpush1.msra.mxu0 %v776
      %3842 = vmatprep.subr.mxu0 0.0
      %3843 = vmatpush1.msra.mxu0 0.0
      %3844 = vmatprep.subr.mxu0 0.0
      %3845 = vmatpush1.msra.mxu0 0.0
      %3846 = vmatprep.subr.mxu0 0.0
      %3847 = vmatpush1.msra.mxu0 0.0
      %3848 = vmatprep.subr.mxu0 0.0
      %3849 = vmatpush1.msra.mxu0 0.0
      %3850 = vmatprep.subr.mxu0 0.0
      %3851 = vmatpush1.msra.mxu0 0.0
      %3852 = vmatprep.subr.mxu0 0.0
      %3853 = vmatpush1.msra.mxu0 0.0
      %3854 = vmatprep.subr.mxu0 0.0
      %3855 = vmatpush1.msra.mxu0 0.0
      %3856 = vmatprep.subr.mxu0 0.0
      %3857 = vmatpush1.msra.mxu0 0.0
      %3858 = vmatprep.subr.mxu0 0.0
      %3859 = vmatpush1.msra.mxu0 0.0
      %3860 = vmatprep.subr.mxu0 0.0
      %3861 = vmatpush1.msra.mxu0 0.0
      %3862 = vmatprep.subr.mxu0 0.0
      %3863 = vmatpush1.msra.mxu0 0.0
      %3864 = vmatprep.subr.mxu0 0.0
      %3865 = vmatpush1.msra.mxu0 0.0
      %3866 = vmatprep.subr.mxu0 0.0
      %3867 = vmatpush1.msra.mxu0 0.0
      %3868 = vmatprep.subr.mxu0 0.0
      %3869 = vmatpush1.msra.mxu0 0.0
      %3870 = vmatprep.subr.mxu0 0.0
      %3871 = vmatpush1.msra.mxu0 0.0
      %3872 = vmatprep.subr.mxu0 0.0
      %3873 = vmatpush1.msra.mxu0 0.0
      %3874 = vmatprep.subr.mxu0 0.0
      %3875 = vmatpush1.msra.mxu0 0.0
      %3876 = vmatprep.subr.mxu0 0.0
      %3877 = vmatpush1.msra.mxu0 0.0
      %3878 = vmatprep.subr.mxu0 0.0
      %3879 = vmatpush1.msra.mxu0 0.0
      %3880 = vmatprep.subr.mxu0 0.0
      %3881 = vmatpush1.msra.mxu0 0.0
      %3882 = vmatprep.subr.mxu0 0.0
      %3883 = vmatpush1.msra.mxu0 0.0
      %3884 = vmatprep.subr.mxu0 0.0
      %3885 = vmatpush1.msra.mxu0 0.0
      %3886 = vmatprep.subr.mxu0 0.0
      %3887 = vmatpush1.msra.mxu0 0.0
      %3888 = vmatprep.subr.mxu0 0.0
      %3889 = vmatpush1.msra.mxu0 0.0
      %3890 = vmatprep.subr.mxu0 0.0
      %3891 = vmatpush1.msra.mxu0 0.0
      %3892 = vmatprep.subr.mxu0 0.0
      %3893 = vmatpush1.msra.mxu0 0.0
      %3894 = vmatprep.subr.mxu0 0.0
      %3895 = vmatpush1.msra.mxu0 0.0
      %3896 = vmatprep.subr.mxu0 0.0
      %3897 = vmatpush1.msra.mxu0 0.0
      %3898 = vmatprep.subr.mxu0 0.0
      %3899 = vmatpush1.msra.mxu0 0.0
      %3900 = vmatprep.subr.mxu0 0.0
      %3901 = vmatpush1.msra.mxu0 0.0
      %3902 = vmatprep.subr.mxu0 0.0
      %3903 = vmatpush1.msra.mxu0 0.0
      %3904 = vmatprep.mubr.f32.mxu0 0.0
      %3905 = vmatmul.mubr.f32.gmra.mrb[0].mxu0 %v3836
      %v3906 = vpop.f32.mrb[0].mxu0
      %v3907 = vadd.f32 0.0, %v3906
      %v3908 = vpop.f32.mrb[0].mxu0
      %v3909 = vadd.f32 0.0, %v3908
      %3910 = vdwg.mxu0
      %3911 = vmatprep.subr.mxu0 %v3838
      %3912 = vmatpush1.msra.mxu0 %v780
      %3913 = vmatprep.subr.mxu0 0.0
      %3914 = vmatpush1.msra.mxu0 0.0
      %3915 = vmatprep.subr.mxu0 0.0
      %3916 = vmatpush1.msra.mxu0 0.0
      %3917 = vmatprep.subr.mxu0 0.0
      %3918 = vmatpush1.msra.mxu0 0.0
      %3919 = vmatprep.subr.mxu0 0.0
      %3920 = vmatpush1.msra.mxu0 0.0
      %3921 = vmatprep.subr.mxu0 0.0
      %3922 = vmatpush1.msra.mxu0 0.0
      %3923 = vmatprep.subr.mxu0 0.0
      %3924 = vmatpush1.msra.mxu0 0.0
      %3925 = vmatprep.subr.mxu0 0.0
      %3926 = vmatpush1.msra.mxu0 0.0
      %3927 = vmatprep.subr.mxu0 0.0
      %3928 = vmatpush1.msra.mxu0 0.0
      %3929 = vmatprep.subr.mxu0 0.0
      %3930 = vmatpush1.msra.mxu0 0.0
      %3931 = vmatprep.subr.mxu0 0.0
      %3932 = vmatpush1.msra.mxu0 0.0
      %3933 = vmatprep.subr.mxu0 0.0
      %3934 = vmatpush1.msra.mxu0 0.0
      %3935 = vmatprep.subr.mxu0 0.0
      %3936 = vmatpush1.msra.mxu0 0.0
      %3937 = vmatprep.subr.mxu0 0.0
      %3938 = vmatpush1.msra.mxu0 0.0
      %3939 = vmatprep.subr.mxu0 0.0
      %3940 = vmatpush1.msra.mxu0 0.0
      %3941 = vmatprep.subr.mxu0 0.0
      %3942 = vmatpush1.msra.mxu0 0.0
      %3943 = vmatprep.subr.mxu0 0.0
      %3944 = vmatpush1.msra.mxu0 0.0
      %3945 = vmatprep.subr.mxu0 0.0
      %3946 = vmatpush1.msra.mxu0 0.0
      %3947 = vmatprep.subr.mxu0 0.0
      %3948 = vmatpush1.msra.mxu0 0.0
      %3949 = vmatprep.subr.mxu0 0.0
      %3950 = vmatpush1.msra.mxu0 0.0
      %3951 = vmatprep.subr.mxu0 0.0
      %3952 = vmatpush1.msra.mxu0 0.0
      %3953 = vmatprep.subr.mxu0 0.0
      %3954 = vmatpush1.msra.mxu0 0.0
      %3955 = vmatprep.subr.mxu0 0.0
      %3956 = vmatpush1.msra.mxu0 0.0
      %3957 = vmatprep.subr.mxu0 0.0
      %3958 = vmatpush1.msra.mxu0 0.0
      %3959 = vmatprep.subr.mxu0 0.0
      %3960 = vmatpush1.msra.mxu0 0.0
      %3961 = vmatprep.subr.mxu0 0.0
      %3962 = vmatpush1.msra.mxu0 0.0
      %3963 = vmatprep.subr.mxu0 0.0
      %3964 = vmatpush1.msra.mxu0 0.0
      %3965 = vmatprep.subr.mxu0 0.0
      %3966 = vmatpush1.msra.mxu0 0.0
      %3967 = vmatprep.subr.mxu0 0.0
      %3968 = vmatpush1.msra.mxu0 0.0
      %3969 = vmatprep.subr.mxu0 0.0
      %3970 = vmatpush1.msra.mxu0 0.0
      %3971 = vmatprep.subr.mxu0 0.0
      %3972 = vmatpush1.msra.mxu0 0.0
      %3973 = vmatprep.subr.mxu0 0.0
      %3974 = vmatpush1.msra.mxu0 0.0
      %3975 = vmatprep.mubr.f32.mxu0 0.0
      %3976 = vmatmul.mubr.f32.gmra.mrb[0].mxu0 %v3836
      %v3977 = vpop.f32.mrb[0].mxu0
      %v3978 = vadd.f32 0.0, %v3977
      %v3979 = vpop.f32.mrb[0].mxu0
      %v3980 = vadd.f32 0.0, %v3979
      %3981 = vdwg.mxu0
      %v3982 = vadd.f32 %v3826, %v3907
      %v3983 = vadd.f32 %v3827, %v3909
      %v3984 = vadd.f32 %v3828, %v3978
      %v3985 = vadd.f32 %v3829, %v3980
      %s3986 = scalar_lea.vmem %s1, 176
      %v3987 = vld [vmem:[%s3986] sm:$0xff]
      %3988 = vrot.lane.b32.xlu0 %v3519, 119
      %v3989 = vpop.permute.xlu0 %3988
      %v3990 = vsel %vm940, %v939, %v3989
      %v3992 = vsel %vm272, %v3987, 0
      %v3994 = vsel %vm276, %v3990, 0
      %3996 = vmatprep.subr.mxu0 %v952
      %3997 = vmatpush1.msra.mxu0 %v950
      %3998 = vmatprep.subr.mxu0 0.0
      %3999 = vmatpush1.msra.mxu0 0.0
      %4000 = vmatprep.subr.mxu0 0.0
      %4001 = vmatpush1.msra.mxu0 0.0
      %4002 = vmatprep.subr.mxu0 0.0
      %4003 = vmatpush1.msra.mxu0 0.0
      %4004 = vmatprep.subr.mxu0 0.0
      %4005 = vmatpush1.msra.mxu0 0.0
      %4006 = vmatprep.subr.mxu0 0.0
      %4007 = vmatpush1.msra.mxu0 0.0
      %4008 = vmatprep.subr.mxu0 0.0
      %4009 = vmatpush1.msra.mxu0 0.0
      %4010 = vmatprep.subr.mxu0 0.0
      %4011 = vmatpush1.msra.mxu0 0.0
      %4012 = vmatprep.subr.mxu0 0.0
      %4013 = vmatpush1.msra.mxu0 0.0
      %4014 = vmatprep.subr.mxu0 0.0
      %4015 = vmatpush1.msra.mxu0 0.0
      %4016 = vmatprep.subr.mxu0 0.0
      %4017 = vmatpush1.msra.mxu0 0.0
      %4018 = vmatprep.subr.mxu0 0.0
      %4019 = vmatpush1.msra.mxu0 0.0
      %4020 = vmatprep.subr.mxu0 0.0
      %4021 = vmatpush1.msra.mxu0 0.0
      %4022 = vmatprep.subr.mxu0 0.0
      %4023 = vmatpush1.msra.mxu0 0.0
      %4024 = vmatprep.subr.mxu0 0.0
      %4025 = vmatpush1.msra.mxu0 0.0
      %4026 = vmatprep.subr.mxu0 0.0
      %4027 = vmatpush1.msra.mxu0 0.0
      %4028 = vmatprep.subr.mxu0 0.0
      %4029 = vmatpush1.msra.mxu0 0.0
      %4030 = vmatprep.subr.mxu0 0.0
      %4031 = vmatpush1.msra.mxu0 0.0
      %4032 = vmatprep.subr.mxu0 0.0
      %4033 = vmatpush1.msra.mxu0 0.0
      %4034 = vmatprep.subr.mxu0 0.0
      %4035 = vmatpush1.msra.mxu0 0.0
      %4036 = vmatprep.subr.mxu0 0.0
      %4037 = vmatpush1.msra.mxu0 0.0
      %4038 = vmatprep.subr.mxu0 0.0
      %4039 = vmatpush1.msra.mxu0 0.0
      %4040 = vmatprep.subr.mxu0 0.0
      %4041 = vmatpush1.msra.mxu0 0.0
      %4042 = vmatprep.subr.mxu0 0.0
      %4043 = vmatpush1.msra.mxu0 0.0
      %4044 = vmatprep.subr.mxu0 0.0
      %4045 = vmatpush1.msra.mxu0 0.0
      %4046 = vmatprep.subr.mxu0 0.0
      %4047 = vmatpush1.msra.mxu0 0.0
      %4048 = vmatprep.subr.mxu0 0.0
      %4049 = vmatpush1.msra.mxu0 0.0
      %4050 = vmatprep.subr.mxu0 0.0
      %4051 = vmatpush1.msra.mxu0 0.0
      %4052 = vmatprep.subr.mxu0 0.0
      %4053 = vmatpush1.msra.mxu0 0.0
      %4054 = vmatprep.subr.mxu0 0.0
      %4055 = vmatpush1.msra.mxu0 0.0
      %4056 = vmatprep.subr.mxu0 0.0
      %4057 = vmatpush1.msra.mxu0 0.0
      %4058 = vmatprep.subr.mxu0 0.0
      %4059 = vmatpush1.msra.mxu0 0.0
      %4060 = vmatprep.mubr.f32.mxu0 0.0
      %4061 = vmatmul.mubr.f32.gmra.mrb[0].mxu0 %v3992
      %v4062 = vpop.f32.mrb[0].mxu0
      %v4063 = vadd.f32 0.0, %v4062
      %v4064 = vpop.f32.mrb[0].mxu0
      %v4065 = vadd.f32 0.0, %v4064
      %4066 = vdwg.mxu0
      %4067 = vmatprep.subr.mxu0 %v3994
      %4068 = vmatpush1.msra.mxu0 %v954
      %4069 = vmatprep.subr.mxu0 0.0
      %4070 = vmatpush1.msra.mxu0 0.0
      %4071 = vmatprep.subr.mxu0 0.0
      %4072 = vmatpush1.msra.mxu0 0.0
      %4073 = vmatprep.subr.mxu0 0.0
      %4074 = vmatpush1.msra.mxu0 0.0
      %4075 = vmatprep.subr.mxu0 0.0
      %4076 = vmatpush1.msra.mxu0 0.0
      %4077 = vmatprep.subr.mxu0 0.0
      %4078 = vmatpush1.msra.mxu0 0.0
      %4079 = vmatprep.subr.mxu0 0.0
      %4080 = vmatpush1.msra.mxu0 0.0
      %4081 = vmatprep.subr.mxu0 0.0
      %4082 = vmatpush1.msra.mxu0 0.0
      %4083 = vmatprep.subr.mxu0 0.0
      %4084 = vmatpush1.msra.mxu0 0.0
      %4085 = vmatprep.subr.mxu0 0.0
      %4086 = vmatpush1.msra.mxu0 0.0
      %4087 = vmatprep.subr.mxu0 0.0
      %4088 = vmatpush1.msra.mxu0 0.0
      %4089 = vmatprep.subr.mxu0 0.0
      %4090 = vmatpush1.msra.mxu0 0.0
      %4091 = vmatprep.subr.mxu0 0.0
      %4092 = vmatpush1.msra.mxu0 0.0
      %4093 = vmatprep.subr.mxu0 0.0
      %4094 = vmatpush1.msra.mxu0 0.0
      %4095 = vmatprep.subr.mxu0 0.0
      %4096 = vmatpush1.msra.mxu0 0.0
      %4097 = vmatprep.subr.mxu0 0.0
      %4098 = vmatpush1.msra.mxu0 0.0
      %4099 = vmatprep.subr.mxu0 0.0
      %4100 = vmatpush1.msra.mxu0 0.0
      %4101 = vmatprep.subr.mxu0 0.0
      %4102 = vmatpush1.msra.mxu0 0.0
      %4103 = vmatprep.subr.mxu0 0.0
      %4104 = vmatpush1.msra.mxu0 0.0
      %4105 = vmatprep.subr.mxu0 0.0
      %4106 = vmatpush1.msra.mxu0 0.0
      %4107 = vmatprep.subr.mxu0 0.0
      %4108 = vmatpush1.msra.mxu0 0.0
      %4109 = vmatprep.subr.mxu0 0.0
      %4110 = vmatpush1.msra.mxu0 0.0
      %4111 = vmatprep.subr.mxu0 0.0
      %4112 = vmatpush1.msra.mxu0 0.0
      %4113 = vmatprep.subr.mxu0 0.0
      %4114 = vmatpush1.msra.mxu0 0.0
      %4115 = vmatprep.subr.mxu0 0.0
      %4116 = vmatpush1.msra.mxu0 0.0
      %4117 = vmatprep.subr.mxu0 0.0
      %4118 = vmatpush1.msra.mxu0 0.0
      %4119 = vmatprep.subr.mxu0 0.0
      %4120 = vmatpush1.msra.mxu0 0.0
      %4121 = vmatprep.subr.mxu0 0.0
      %4122 = vmatpush1.msra.mxu0 0.0
      %4123 = vmatprep.subr.mxu0 0.0
      %4124 = vmatpush1.msra.mxu0 0.0
      %4125 = vmatprep.subr.mxu0 0.0
      %4126 = vmatpush1.msra.mxu0 0.0
      %4127 = vmatprep.subr.mxu0 0.0
      %4128 = vmatpush1.msra.mxu0 0.0
      %4129 = vmatprep.subr.mxu0 0.0
      %4130 = vmatpush1.msra.mxu0 0.0
      %4131 = vmatprep.mubr.f32.mxu0 0.0
      %4132 = vmatmul.mubr.f32.gmra.mrb[0].mxu0 %v3992
      %v4133 = vpop.f32.mrb[0].mxu0
      %v4134 = vadd.f32 0.0, %v4133
      %v4135 = vpop.f32.mrb[0].mxu0
      %v4136 = vadd.f32 0.0, %v4135
      %4137 = vdwg.mxu0
      %v4138 = vadd.f32 %v3982, %v4063
      %v4139 = vadd.f32 %v3983, %v4065
      %v4140 = vadd.f32 %v3984, %v4134
      %v4141 = vadd.f32 %v3985, %v4136
      %s4142 = scalar_lea.vmem %s1, 184
      %v4143 = vld [vmem:[%s4142] sm:$0xff]
      %4144 = vrot.lane.b32.xlu0 %v3519, 118
      %v4145 = vpop.permute.xlu0 %4144
      %v4146 = vsel %vm1114, %v1113, %v4145
      %v4148 = vsel %vm272, %v4143, 0
      %v4150 = vsel %vm276, %v4146, 0
      %4152 = vmatprep.subr.mxu0 %v1126
      %4153 = vmatpush1.msra.mxu0 %v1124
      %4154 = vmatprep.subr.mxu0 0.0
      %4155 = vmatpush1.msra.mxu0 0.0
      %4156 = vmatprep.subr.mxu0 0.0
      %4157 = vmatpush1.msra.mxu0 0.0
      %4158 = vmatprep.subr.mxu0 0.0
      %4159 = vmatpush1.msra.mxu0 0.0
      %4160 = vmatprep.subr.mxu0 0.0
      %4161 = vmatpush1.msra.mxu0 0.0
      %4162 = vmatprep.subr.mxu0 0.0
      %4163 = vmatpush1.msra.mxu0 0.0
      %4164 = vmatprep.subr.mxu0 0.0
      %4165 = vmatpush1.msra.mxu0 0.0
      %4166 = vmatprep.subr.mxu0 0.0
      %4167 = vmatpush1.msra.mxu0 0.0
      %4168 = vmatprep.subr.mxu0 0.0
      %4169 = vmatpush1.msra.mxu0 0.0
      %4170 = vmatprep.subr.mxu0 0.0
      %4171 = vmatpush1.msra.mxu0 0.0
      %4172 = vmatprep.subr.mxu0 0.0
      %4173 = vmatpush1.msra.mxu0 0.0
      %4174 = vmatprep.subr.mxu0 0.0
      %4175 = vmatpush1.msra.mxu0 0.0
      %4176 = vmatprep.subr.mxu0 0.0
      %4177 = vmatpush1.msra.mxu0 0.0
      %4178 = vmatprep.subr.mxu0 0.0
      %4179 = vmatpush1.msra.mxu0 0.0
      %4180 = vmatprep.subr.mxu0 0.0
      %4181 = vmatpush1.msra.mxu0 0.0
      %4182 = vmatprep.subr.mxu0 0.0
      %4183 = vmatpush1.msra.mxu0 0.0
      %4184 = vmatprep.subr.mxu0 0.0
      %4185 = vmatpush1.msra.mxu0 0.0
      %4186 = vmatprep.subr.mxu0 0.0
      %4187 = vmatpush1.msra.mxu0 0.0
      %4188 = vmatprep.subr.mxu0 0.0
      %4189 = vmatpush1.msra.mxu0 0.0
      %4190 = vmatprep.subr.mxu0 0.0
      %4191 = vmatpush1.msra.mxu0 0.0
      %4192 = vmatprep.subr.mxu0 0.0
      %4193 = vmatpush1.msra.mxu0 0.0
      %4194 = vmatprep.subr.mxu0 0.0
      %4195 = vmatpush1.msra.mxu0 0.0
      %4196 = vmatprep.subr.mxu0 0.0
      %4197 = vmatpush1.msra.mxu0 0.0
      %4198 = vmatprep.subr.mxu0 0.0
      %4199 = vmatpush1.msra.mxu0 0.0
      %4200 = vmatprep.subr.mxu0 0.0
      %4201 = vmatpush1.msra.mxu0 0.0
      %4202 = vmatprep.subr.mxu0 0.0
      %4203 = vmatpush1.msra.mxu0 0.0
      %4204 = vmatprep.subr.mxu0 0.0
      %4205 = vmatpush1.msra.mxu0 0.0
      %4206 = vmatprep.subr.mxu0 0.0
      %4207 = vmatpush1.msra.mxu0 0.0
      %4208 = vmatprep.subr.mxu0 0.0
      %4209 = vmatpush1.msra.mxu0 0.0
      %4210 = vmatprep.subr.mxu0 0.0
      %4211 = vmatpush1.msra.mxu0 0.0
      %4212 = vmatprep.subr.mxu0 0.0
      %4213 = vmatpush1.msra.mxu0 0.0
      %4214 = vmatprep.subr.mxu0 0.0
      %4215 = vmatpush1.msra.mxu0 0.0
      %4216 = vmatprep.mubr.f32.mxu0 0.0
      %4217 = vmatmul.mubr.f32.gmra.mrb[0].mxu0 %v4148
      %v4218 = vpop.f32.mrb[0].mxu0
      %v4219 = vadd.f32 0.0, %v4218
      %v4220 = vpop.f32.mrb[0].mxu0
      %v4221 = vadd.f32 0.0, %v4220
      %4222 = vdwg.mxu0
      %4223 = vmatprep.subr.mxu0 %v4150
      %4224 = vmatpush1.msra.mxu0 %v1128
      %4225 = vmatprep.subr.mxu0 0.0
      %4226 = vmatpush1.msra.mxu0 0.0
      %4227 = vmatprep.subr.mxu0 0.0
      %4228 = vmatpush1.msra.mxu0 0.0
      %4229 = vmatprep.subr.mxu0 0.0
      %4230 = vmatpush1.msra.mxu0 0.0
      %4231 = vmatprep.subr.mxu0 0.0
      %4232 = vmatpush1.msra.mxu0 0.0
      %4233 = vmatprep.subr.mxu0 0.0
      %4234 = vmatpush1.msra.mxu0 0.0
      %4235 = vmatprep.subr.mxu0 0.0
      %4236 = vmatpush1.msra.mxu0 0.0
      %4237 = vmatprep.subr.mxu0 0.0
      %4238 = vmatpush1.msra.mxu0 0.0
      %4239 = vmatprep.subr.mxu0 0.0
      %4240 = vmatpush1.msra.mxu0 0.0
      %4241 = vmatprep.subr.mxu0 0.0
      %4242 = vmatpush1.msra.mxu0 0.0
      %4243 = vmatprep.subr.mxu0 0.0
      %4244 = vmatpush1.msra.mxu0 0.0
      %4245 = vmatprep.subr.mxu0 0.0
      %4246 = vmatpush1.msra.mxu0 0.0
      %4247 = vmatprep.subr.mxu0 0.0
      %4248 = vmatpush1.msra.mxu0 0.0
      %4249 = vmatprep.subr.mxu0 0.0
      %4250 = vmatpush1.msra.mxu0 0.0
      %4251 = vmatprep.subr.mxu0 0.0
      %4252 = vmatpush1.msra.mxu0 0.0
      %4253 = vmatprep.subr.mxu0 0.0
      %4254 = vmatpush1.msra.mxu0 0.0
      %4255 = vmatprep.subr.mxu0 0.0
      %4256 = vmatpush1.msra.mxu0 0.0
      %4257 = vmatprep.subr.mxu0 0.0
      %4258 = vmatpush1.msra.mxu0 0.0
      %4259 = vmatprep.subr.mxu0 0.0
      %4260 = vmatpush1.msra.mxu0 0.0
      %4261 = vmatprep.subr.mxu0 0.0
      %4262 = vmatpush1.msra.mxu0 0.0
      %4263 = vmatprep.subr.mxu0 0.0
      %4264 = vmatpush1.msra.mxu0 0.0
      %4265 = vmatprep.subr.mxu0 0.0
      %4266 = vmatpush1.msra.mxu0 0.0
      %4267 = vmatprep.subr.mxu0 0.0
      %4268 = vmatpush1.msra.mxu0 0.0
      %4269 = vmatprep.subr.mxu0 0.0
      %4270 = vmatpush1.msra.mxu0 0.0
      %4271 = vmatprep.subr.mxu0 0.0
      %4272 = vmatpush1.msra.mxu0 0.0
      %4273 = vmatprep.subr.mxu0 0.0
      %4274 = vmatpush1.msra.mxu0 0.0
      %4275 = vmatprep.subr.mxu0 0.0
      %4276 = vmatpush1.msra.mxu0 0.0
      %4277 = vmatprep.subr.mxu0 0.0
      %4278 = vmatpush1.msra.mxu0 0.0
      %4279 = vmatprep.subr.mxu0 0.0
      %4280 = vmatpush1.msra.mxu0 0.0
      %4281 = vmatprep.subr.mxu0 0.0
      %4282 = vmatpush1.msra.mxu0 0.0
      %4283 = vmatprep.subr.mxu0 0.0
      %4284 = vmatpush1.msra.mxu0 0.0
      %4285 = vmatprep.subr.mxu0 0.0
      %4286 = vmatpush1.msra.mxu0 0.0
      %4287 = vmatprep.mubr.f32.mxu0 0.0
      %4288 = vmatmul.mubr.f32.gmra.mrb[0].mxu0 %v4148
      %v4289 = vpop.f32.mrb[0].mxu0
      %v4290 = vadd.f32 0.0, %v4289
      %v4291 = vpop.f32.mrb[0].mxu0
      %v4292 = vadd.f32 0.0, %v4291
      %4293 = vdwg.mxu0
      %v4294 = vadd.f32 %v4138, %v4219
      %v4295 = vadd.f32 %v4139, %v4221
      %v4296 = vadd.f32 %v4140, %v4290
      %v4297 = vadd.f32 %v4141, %v4292
      %s4298 = scalar_lea.vmem %s1, 192
      %v4299 = vld [vmem:[%s4298] sm:$0xff]
      %4300 = vrot.lane.b32.xlu0 %v3519, 112
      %v4301 = vpop.permute.xlu0 %4300
      %v4302 = vsel %vm1288, %v1287, %v4301
      %v4304 = vsel %vm272, %v4299, 0
      %v4306 = vsel %vm276, %v4302, 0
      %4308 = vmatprep.subr.mxu0 %v1300
      %4309 = vmatpush1.msra.mxu0 %v1298
      %4310 = vmatprep.subr.mxu0 0.0
      %4311 = vmatpush1.msra.mxu0 0.0
      %4312 = vmatprep.subr.mxu0 0.0
      %4313 = vmatpush1.msra.mxu0 0.0
      %4314 = vmatprep.subr.mxu0 0.0
      %4315 = vmatpush1.msra.mxu0 0.0
      %4316 = vmatprep.subr.mxu0 0.0
      %4317 = vmatpush1.msra.mxu0 0.0
      %4318 = vmatprep.subr.mxu0 0.0
      %4319 = vmatpush1.msra.mxu0 0.0
      %4320 = vmatprep.subr.mxu0 0.0
      %4321 = vmatpush1.msra.mxu0 0.0
      %4322 = vmatprep.subr.mxu0 0.0
      %4323 = vmatpush1.msra.mxu0 0.0
      %4324 = vmatprep.subr.mxu0 0.0
      %4325 = vmatpush1.msra.mxu0 0.0
      %4326 = vmatprep.subr.mxu0 0.0
      %4327 = vmatpush1.msra.mxu0 0.0
      %4328 = vmatprep.subr.mxu0 0.0
      %4329 = vmatpush1.msra.mxu0 0.0
      %4330 = vmatprep.subr.mxu0 0.0
      %4331 = vmatpush1.msra.mxu0 0.0
      %4332 = vmatprep.subr.mxu0 0.0
      %4333 = vmatpush1.msra.mxu0 0.0
      %4334 = vmatprep.subr.mxu0 0.0
      %4335 = vmatpush1.msra.mxu0 0.0
      %4336 = vmatprep.subr.mxu0 0.0
      %4337 = vmatpush1.msra.mxu0 0.0
      %4338 = vmatprep.subr.mxu0 0.0
      %4339 = vmatpush1.msra.mxu0 0.0
      %4340 = vmatprep.subr.mxu0 0.0
      %4341 = vmatpush1.msra.mxu0 0.0
      %4342 = vmatprep.subr.mxu0 0.0
      %4343 = vmatpush1.msra.mxu0 0.0
      %4344 = vmatprep.subr.mxu0 0.0
      %4345 = vmatpush1.msra.mxu0 0.0
      %4346 = vmatprep.subr.mxu0 0.0
      %4347 = vmatpush1.msra.mxu0 0.0
      %4348 = vmatprep.subr.mxu0 0.0
      %4349 = vmatpush1.msra.mxu0 0.0
      %4350 = vmatprep.subr.mxu0 0.0
      %4351 = vmatpush1.msra.mxu0 0.0
      %4352 = vmatprep.subr.mxu0 0.0
      %4353 = vmatpush1.msra.mxu0 0.0
      %4354 = vmatprep.subr.mxu0 0.0
      %4355 = vmatpush1.msra.mxu0 0.0
      %4356 = vmatprep.subr.mxu0 0.0
      %4357 = vmatpush1.msra.mxu0 0.0
      %4358 = vmatprep.subr.mxu0 0.0
      %4359 = vmatpush1.msra.mxu0 0.0
      %4360 = vmatprep.subr.mxu0 0.0
      %4361 = vmatpush1.msra.mxu0 0.0
      %4362 = vmatprep.subr.mxu0 0.0
      %4363 = vmatpush1.msra.mxu0 0.0
      %4364 = vmatprep.subr.mxu0 0.0
      %4365 = vmatpush1.msra.mxu0 0.0
      %4366 = vmatprep.subr.mxu0 0.0
      %4367 = vmatpush1.msra.mxu0 0.0
      %4368 = vmatprep.subr.mxu0 0.0
      %4369 = vmatpush1.msra.mxu0 0.0
      %4370 = vmatprep.subr.mxu0 0.0
      %4371 = vmatpush1.msra.mxu0 0.0
      %4372 = vmatprep.mubr.f32.mxu0 0.0
      %4373 = vmatmul.mubr.f32.gmra.mrb[0].mxu0 %v4304
      %v4374 = vpop.f32.mrb[0].mxu0
      %v4375 = vadd.f32 0.0, %v4374
      %v4376 = vpop.f32.mrb[0].mxu0
      %v4377 = vadd.f32 0.0, %v4376
      %4378 = vdwg.mxu0
      %4379 = vmatprep.subr.mxu0 %v4306
      %4380 = vmatpush1.msra.mxu0 %v1302
      %4381 = vmatprep.subr.mxu0 0.0
      %4382 = vmatpush1.msra.mxu0 0.0
      %4383 = vmatprep.subr.mxu0 0.0
      %4384 = vmatpush1.msra.mxu0 0.0
      %4385 = vmatprep.subr.mxu0 0.0
      %4386 = vmatpush1.msra.mxu0 0.0
      %4387 = vmatprep.subr.mxu0 0.0
      %4388 = vmatpush1.msra.mxu0 0.0
      %4389 = vmatprep.subr.mxu0 0.0
      %4390 = vmatpush1.msra.mxu0 0.0
      %4391 = vmatprep.subr.mxu0 0.0
      %4392 = vmatpush1.msra.mxu0 0.0
      %4393 = vmatprep.subr.mxu0 0.0
      %4394 = vmatpush1.msra.mxu0 0.0
      %4395 = vmatprep.subr.mxu0 0.0
      %4396 = vmatpush1.msra.mxu0 0.0
      %4397 = vmatprep.subr.mxu0 0.0
      %4398 = vmatpush1.msra.mxu0 0.0
      %4399 = vmatprep.subr.mxu0 0.0
      %4400 = vmatpush1.msra.mxu0 0.0
      %4401 = vmatprep.subr.mxu0 0.0
      %4402 = vmatpush1.msra.mxu0 0.0
      %4403 = vmatprep.subr.mxu0 0.0
      %4404 = vmatpush1.msra.mxu0 0.0
      %4405 = vmatprep.subr.mxu0 0.0
      %4406 = vmatpush1.msra.mxu0 0.0
      %4407 = vmatprep.subr.mxu0 0.0
      %4408 = vmatpush1.msra.mxu0 0.0
      %4409 = vmatprep.subr.mxu0 0.0
      %4410 = vmatpush1.msra.mxu0 0.0
      %4411 = vmatprep.subr.mxu0 0.0
      %4412 = vmatpush1.msra.mxu0 0.0
      %4413 = vmatprep.subr.mxu0 0.0
      %4414 = vmatpush1.msra.mxu0 0.0
      %4415 = vmatprep.subr.mxu0 0.0
      %4416 = vmatpush1.msra.mxu0 0.0
      %4417 = vmatprep.subr.mxu0 0.0
      %4418 = vmatpush1.msra.mxu0 0.0
      %4419 = vmatprep.subr.mxu0 0.0
      %4420 = vmatpush1.msra.mxu0 0.0
      %4421 = vmatprep.subr.mxu0 0.0
      %4422 = vmatpush1.msra.mxu0 0.0
      %4423 = vmatprep.subr.mxu0 0.0
      %4424 = vmatpush1.msra.mxu0 0.0
      %4425 = vmatprep.subr.mxu0 0.0
      %4426 = vmatpush1.msra.mxu0 0.0
      %4427 = vmatprep.subr.mxu0 0.0
      %4428 = vmatpush1.msra.mxu0 0.0
      %4429 = vmatprep.subr.mxu0 0.0
      %4430 = vmatpush1.msra.mxu0 0.0
      %4431 = vmatprep.subr.mxu0 0.0
      %4432 = vmatpush1.msra.mxu0 0.0
      %4433 = vmatprep.subr.mxu0 0.0
      %4434 = vmatpush1.msra.mxu0 0.0
      %4435 = vmatprep.subr.mxu0 0.0
      %4436 = vmatpush1.msra.mxu0 0.0
      %4437 = vmatprep.subr.mxu0 0.0
      %4438 = vmatpush1.msra.mxu0 0.0
      %4439 = vmatprep.subr.mxu0 0.0
      %4440 = vmatpush1.msra.mxu0 0.0
      %4441 = vmatprep.subr.mxu0 0.0
      %4442 = vmatpush1.msra.mxu0 0.0
      %4443 = vmatprep.mubr.f32.mxu0 0.0
      %4444 = vmatmul.mubr.f32.gmra.mrb[0].mxu0 %v4304
      %v4445 = vpop.f32.mrb[0].mxu0
      %v4446 = vadd.f32 0.0, %v4445
      %v4447 = vpop.f32.mrb[0].mxu0
      %v4448 = vadd.f32 0.0, %v4447
      %4449 = vdwg.mxu0
      %v4450 = vadd.f32 %v4294, %v4375
      %v4451 = vadd.f32 %v4295, %v4377
      %v4452 = vadd.f32 %v4296, %v4446
      %v4453 = vadd.f32 %v4297, %v4448
      %s4454 = scalar_lea.vmem %s1, 200
      %v4455 = vld [vmem:[%s4454] sm:$0xff]
      %4456 = vrot.lane.b32.xlu0 %v3519, 111
      %v4457 = vpop.permute.xlu0 %4456
      %v4458 = vsel %vm1462, %v1461, %v4457
      %v4460 = vsel %vm272, %v4455, 0
      %v4462 = vsel %vm276, %v4458, 0
      %4464 = vmatprep.subr.mxu0 %v1474
      %4465 = vmatpush1.msra.mxu0 %v1472
      %4466 = vmatprep.subr.mxu0 0.0
      %4467 = vmatpush1.msra.mxu0 0.0
      %4468 = vmatprep.subr.mxu0 0.0
      %4469 = vmatpush1.msra.mxu0 0.0
      %4470 = vmatprep.subr.mxu0 0.0
      %4471 = vmatpush1.msra.mxu0 0.0
      %4472 = vmatprep.subr.mxu0 0.0
      %4473 = vmatpush1.msra.mxu0 0.0
      %4474 = vmatprep.subr.mxu0 0.0
      %4475 = vmatpush1.msra.mxu0 0.0
      %4476 = vmatprep.subr.mxu0 0.0
      %4477 = vmatpush1.msra.mxu0 0.0
      %4478 = vmatprep.subr.mxu0 0.0
      %4479 = vmatpush1.msra.mxu0 0.0
      %4480 = vmatprep.subr.mxu0 0.0
      %4481 = vmatpush1.msra.mxu0 0.0
      %4482 = vmatprep.subr.mxu0 0.0
      %4483 = vmatpush1.msra.mxu0 0.0
      %4484 = vmatprep.subr.mxu0 0.0
      %4485 = vmatpush1.msra.mxu0 0.0
      %4486 = vmatprep.subr.mxu0 0.0
      %4487 = vmatpush1.msra.mxu0 0.0
      %4488 = vmatprep.subr.mxu0 0.0
      %4489 = vmatpush1.msra.mxu0 0.0
      %4490 = vmatprep.subr.mxu0 0.0
      %4491 = vmatpush1.msra.mxu0 0.0
      %4492 = vmatprep.subr.mxu0 0.0
      %4493 = vmatpush1.msra.mxu0 0.0
      %4494 = vmatprep.subr.mxu0 0.0
      %4495 = vmatpush1.msra.mxu0 0.0
      %4496 = vmatprep.subr.mxu0 0.0
      %4497 = vmatpush1.msra.mxu0 0.0
      %4498 = vmatprep.subr.mxu0 0.0
      %4499 = vmatpush1.msra.mxu0 0.0
      %4500 = vmatprep.subr.mxu0 0.0
      %4501 = vmatpush1.msra.mxu0 0.0
      %4502 = vmatprep.subr.mxu0 0.0
      %4503 = vmatpush1.msra.mxu0 0.0
      %4504 = vmatprep.subr.mxu0 0.0
      %4505 = vmatpush1.msra.mxu0 0.0
      %4506 = vmatprep.subr.mxu0 0.0
      %4507 = vmatpush1.msra.mxu0 0.0
      %4508 = vmatprep.subr.mxu0 0.0
      %4509 = vmatpush1.msra.mxu0 0.0
      %4510 = vmatprep.subr.mxu0 0.0
      %4511 = vmatpush1.msra.mxu0 0.0
      %4512 = vmatprep.subr.mxu0 0.0
      %4513 = vmatpush1.msra.mxu0 0.0
      %4514 = vmatprep.subr.mxu0 0.0
      %4515 = vmatpush1.msra.mxu0 0.0
      %4516 = vmatprep.subr.mxu0 0.0
      %4517 = vmatpush1.msra.mxu0 0.0
      %4518 = vmatprep.subr.mxu0 0.0
      %4519 = vmatpush1.msra.mxu0 0.0
      %4520 = vmatprep.subr.mxu0 0.0
      %4521 = vmatpush1.msra.mxu0 0.0
      %4522 = vmatprep.subr.mxu0 0.0
      %4523 = vmatpush1.msra.mxu0 0.0
      %4524 = vmatprep.subr.mxu0 0.0
      %4525 = vmatpush1.msra.mxu0 0.0
      %4526 = vmatprep.subr.mxu0 0.0
      %4527 = vmatpush1.msra.mxu0 0.0
      %4528 = vmatprep.mubr.f32.mxu0 0.0
      %4529 = vmatmul.mubr.f32.gmra.mrb[0].mxu0 %v4460
      %v4530 = vpop.f32.mrb[0].mxu0
      %v4531 = vadd.f32 0.0, %v4530
      %v4532 = vpop.f32.mrb[0].mxu0
      %v4533 = vadd.f32 0.0, %v4532
      %4534 = vdwg.mxu0
      %4535 = vmatprep.subr.mxu0 %v4462
      %4536 = vmatpush1.msra.mxu0 %v1476
      %4537 = vmatprep.subr.mxu0 0.0
      %4538 = vmatpush1.msra.mxu0 0.0
      %4539 = vmatprep.subr.mxu0 0.0
      %4540 = vmatpush1.msra.mxu0 0.0
      %4541 = vmatprep.subr.mxu0 0.0
      %4542 = vmatpush1.msra.mxu0 0.0
      %4543 = vmatprep.subr.mxu0 0.0
      %4544 = vmatpush1.msra.mxu0 0.0
      %4545 = vmatprep.subr.mxu0 0.0
      %4546 = vmatpush1.msra.mxu0 0.0
      %4547 = vmatprep.subr.mxu0 0.0
      %4548 = vmatpush1.msra.mxu0 0.0
      %4549 = vmatprep.subr.mxu0 0.0
      %4550 = vmatpush1.msra.mxu0 0.0
      %4551 = vmatprep.subr.mxu0 0.0
      %4552 = vmatpush1.msra.mxu0 0.0
      %4553 = vmatprep.subr.mxu0 0.0
      %4554 = vmatpush1.msra.mxu0 0.0
      %4555 = vmatprep.subr.mxu0 0.0
      %4556 = vmatpush1.msra.mxu0 0.0
      %4557 = vmatprep.subr.mxu0 0.0
      %4558 = vmatpush1.msra.mxu0 0.0
      %4559 = vmatprep.subr.mxu0 0.0
      %4560 = vmatpush1.msra.mxu0 0.0
      %4561 = vmatprep.subr.mxu0 0.0
      %4562 = vmatpush1.msra.mxu0 0.0
      %4563 = vmatprep.subr.mxu0 0.0
      %4564 = vmatpush1.msra.mxu0 0.0
      %4565 = vmatprep.subr.mxu0 0.0
      %4566 = vmatpush1.msra.mxu0 0.0
      %4567 = vmatprep.subr.mxu0 0.0
      %4568 = vmatpush1.msra.mxu0 0.0
      %4569 = vmatprep.subr.mxu0 0.0
      %4570 = vmatpush1.msra.mxu0 0.0
      %4571 = vmatprep.subr.mxu0 0.0
      %4572 = vmatpush1.msra.mxu0 0.0
      %4573 = vmatprep.subr.mxu0 0.0
      %4574 = vmatpush1.msra.mxu0 0.0
      %4575 = vmatprep.subr.mxu0 0.0
      %4576 = vmatpush1.msra.mxu0 0.0
      %4577 = vmatprep.subr.mxu0 0.0
      %4578 = vmatpush1.msra.mxu0 0.0
      %4579 = vmatprep.subr.mxu0 0.0
      %4580 = vmatpush1.msra.mxu0 0.0
      %4581 = vmatprep.subr.mxu0 0.0
      %4582 = vmatpush1.msra.mxu0 0.0
      %4583 = vmatprep.subr.mxu0 0.0
      %4584 = vmatpush1.msra.mxu0 0.0
      %4585 = vmatprep.subr.mxu0 0.0
      %4586 = vmatpush1.msra.mxu0 0.0
      %4587 = vmatprep.subr.mxu0 0.0
      %4588 = vmatpush1.msra.mxu0 0.0
      %4589 = vmatprep.subr.mxu0 0.0
      %4590 = vmatpush1.msra.mxu0 0.0
      %4591 = vmatprep.subr.mxu0 0.0
      %4592 = vmatpush1.msra.mxu0 0.0
      %4593 = vmatprep.subr.mxu0 0.0
      %4594 = vmatpush1.msra.mxu0 0.0
      %4595 = vmatprep.subr.mxu0 0.0
      %4596 = vmatpush1.msra.mxu0 0.0
      %4597 = vmatprep.subr.mxu0 0.0
      %4598 = vmatpush1.msra.mxu0 0.0
      %4599 = vmatprep.mubr.f32.mxu0 0.0
      %4600 = vmatmul.mubr.f32.gmra.mrb[0].mxu0 %v4460
      %v4601 = vpop.f32.mrb[0].mxu0
      %v4602 = vadd.f32 0.0, %v4601
      %v4603 = vpop.f32.mrb[0].mxu0
      %v4604 = vadd.f32 0.0, %v4603
      %4605 = vdwg.mxu0
      %v4606 = vadd.f32 %v4450, %v4531
      %v4607 = vadd.f32 %v4451, %v4533
      %v4608 = vadd.f32 %v4452, %v4602
      %v4609 = vadd.f32 %v4453, %v4604
      %s4610 = scalar_lea.vmem %s1, 208
      %v4611 = vld [vmem:[%s4610] sm:$0xff]
      %4612 = vrot.lane.b32.xlu0 %v3519, 110
      %v4613 = vpop.permute.xlu0 %4612
      %v4614 = vsel %vm1636, %v1635, %v4613
      %v4616 = vsel %vm272, %v4611, 0
      %v4618 = vsel %vm276, %v4614, 0
      %4620 = vmatprep.subr.mxu0 %v1648
      %4621 = vmatpush1.msra.mxu0 %v1646
      %4622 = vmatprep.subr.mxu0 0.0
      %4623 = vmatpush1.msra.mxu0 0.0
      %4624 = vmatprep.subr.mxu0 0.0
      %4625 = vmatpush1.msra.mxu0 0.0
      %4626 = vmatprep.subr.mxu0 0.0
      %4627 = vmatpush1.msra.mxu0 0.0
      %4628 = vmatprep.subr.mxu0 0.0
      %4629 = vmatpush1.msra.mxu0 0.0
      %4630 = vmatprep.subr.mxu0 0.0
      %4631 = vmatpush1.msra.mxu0 0.0
      %4632 = vmatprep.subr.mxu0 0.0
      %4633 = vmatpush1.msra.mxu0 0.0
      %4634 = vmatprep.subr.mxu0 0.0
      %4635 = vmatpush1.msra.mxu0 0.0
      %4636 = vmatprep.subr.mxu0 0.0
      %4637 = vmatpush1.msra.mxu0 0.0
      %4638 = vmatprep.subr.mxu0 0.0
      %4639 = vmatpush1.msra.mxu0 0.0
      %4640 = vmatprep.subr.mxu0 0.0
      %4641 = vmatpush1.msra.mxu0 0.0
      %4642 = vmatprep.subr.mxu0 0.0
      %4643 = vmatpush1.msra.mxu0 0.0
      %4644 = vmatprep.subr.mxu0 0.0
      %4645 = vmatpush1.msra.mxu0 0.0
      %4646 = vmatprep.subr.mxu0 0.0
      %4647 = vmatpush1.msra.mxu0 0.0
      %4648 = vmatprep.subr.mxu0 0.0
      %4649 = vmatpush1.msra.mxu0 0.0
      %4650 = vmatprep.subr.mxu0 0.0
      %4651 = vmatpush1.msra.mxu0 0.0
      %4652 = vmatprep.subr.mxu0 0.0
      %4653 = vmatpush1.msra.mxu0 0.0
      %4654 = vmatprep.subr.mxu0 0.0
      %4655 = vmatpush1.msra.mxu0 0.0
      %4656 = vmatprep.subr.mxu0 0.0
      %4657 = vmatpush1.msra.mxu0 0.0
      %4658 = vmatprep.subr.mxu0 0.0
      %4659 = vmatpush1.msra.mxu0 0.0
      %4660 = vmatprep.subr.mxu0 0.0
      %4661 = vmatpush1.msra.mxu0 0.0
      %4662 = vmatprep.subr.mxu0 0.0
      %4663 = vmatpush1.msra.mxu0 0.0
      %4664 = vmatprep.subr.mxu0 0.0
      %4665 = vmatpush1.msra.mxu0 0.0
      %4666 = vmatprep.subr.mxu0 0.0
      %4667 = vmatpush1.msra.mxu0 0.0
      %4668 = vmatprep.subr.mxu0 0.0
      %4669 = vmatpush1.msra.mxu0 0.0
      %4670 = vmatprep.subr.mxu0 0.0
      %4671 = vmatpush1.msra.mxu0 0.0
      %4672 = vmatprep.subr.mxu0 0.0
      %4673 = vmatpush1.msra.mxu0 0.0
      %4674 = vmatprep.subr.mxu0 0.0
      %4675 = vmatpush1.msra.mxu0 0.0
      %4676 = vmatprep.subr.mxu0 0.0
      %4677 = vmatpush1.msra.mxu0 0.0
      %4678 = vmatprep.subr.mxu0 0.0
      %4679 = vmatpush1.msra.mxu0 0.0
      %4680 = vmatprep.subr.mxu0 0.0
      %4681 = vmatpush1.msra.mxu0 0.0
      %4682 = vmatprep.subr.mxu0 0.0
      %4683 = vmatpush1.msra.mxu0 0.0
      %4684 = vmatprep.mubr.f32.mxu0 0.0
      %4685 = vmatmul.mubr.f32.gmra.mrb[0].mxu0 %v4616
      %v4686 = vpop.f32.mrb[0].mxu0
      %v4687 = vadd.f32 0.0, %v4686
      %v4688 = vpop.f32.mrb[0].mxu0
      %v4689 = vadd.f32 0.0, %v4688
      %4690 = vdwg.mxu0
      %4691 = vmatprep.subr.mxu0 %v4618
      %4692 = vmatpush1.msra.mxu0 %v1650
      %4693 = vmatprep.subr.mxu0 0.0
      %4694 = vmatpush1.msra.mxu0 0.0
      %4695 = vmatprep.subr.mxu0 0.0
      %4696 = vmatpush1.msra.mxu0 0.0
      %4697 = vmatprep.subr.mxu0 0.0
      %4698 = vmatpush1.msra.mxu0 0.0
      %4699 = vmatprep.subr.mxu0 0.0
      %4700 = vmatpush1.msra.mxu0 0.0
      %4701 = vmatprep.subr.mxu0 0.0
      %4702 = vmatpush1.msra.mxu0 0.0
      %4703 = vmatprep.subr.mxu0 0.0
      %4704 = vmatpush1.msra.mxu0 0.0
      %4705 = vmatprep.subr.mxu0 0.0
      %4706 = vmatpush1.msra.mxu0 0.0
      %4707 = vmatprep.subr.mxu0 0.0
      %4708 = vmatpush1.msra.mxu0 0.0
      %4709 = vmatprep.subr.mxu0 0.0
      %4710 = vmatpush1.msra.mxu0 0.0
      %4711 = vmatprep.subr.mxu0 0.0
      %4712 = vmatpush1.msra.mxu0 0.0
      %4713 = vmatprep.subr.mxu0 0.0
      %4714 = vmatpush1.msra.mxu0 0.0
      %4715 = vmatprep.subr.mxu0 0.0
      %4716 = vmatpush1.msra.mxu0 0.0
      %4717 = vmatprep.subr.mxu0 0.0
      %4718 = vmatpush1.msra.mxu0 0.0
      %4719 = vmatprep.subr.mxu0 0.0
      %4720 = vmatpush1.msra.mxu0 0.0
      %4721 = vmatprep.subr.mxu0 0.0
      %4722 = vmatpush1.msra.mxu0 0.0
      %4723 = vmatprep.subr.mxu0 0.0
      %4724 = vmatpush1.msra.mxu0 0.0
      %4725 = vmatprep.subr.mxu0 0.0
      %4726 = vmatpush1.msra.mxu0 0.0
      %4727 = vmatprep.subr.mxu0 0.0
      %4728 = vmatpush1.msra.mxu0 0.0
      %4729 = vmatprep.subr.mxu0 0.0
      %4730 = vmatpush1.msra.mxu0 0.0
      %4731 = vmatprep.subr.mxu0 0.0
      %4732 = vmatpush1.msra.mxu0 0.0
      %4733 = vmatprep.subr.mxu0 0.0
      %4734 = vmatpush1.msra.mxu0 0.0
      %4735 = vmatprep.subr.mxu0 0.0
      %4736 = vmatpush1.msra.mxu0 0.0
      %4737 = vmatprep.subr.mxu0 0.0
      %4738 = vmatpush1.msra.mxu0 0.0
      %4739 = vmatprep.subr.mxu0 0.0
      %4740 = vmatpush1.msra.mxu0 0.0
      %4741 = vmatprep.subr.mxu0 0.0
      %4742 = vmatpush1.msra.mxu0 0.0
      %4743 = vmatprep.subr.mxu0 0.0
      %4744 = vmatpush1.msra.mxu0 0.0
      %4745 = vmatprep.subr.mxu0 0.0
      %4746 = vmatpush1.msra.mxu0 0.0
      %4747 = vmatprep.subr.mxu0 0.0
      %4748 = vmatpush1.msra.mxu0 0.0
      %4749 = vmatprep.subr.mxu0 0.0
      %4750 = vmatpush1.msra.mxu0 0.0
      %4751 = vmatprep.subr.mxu0 0.0
      %4752 = vmatpush1.msra.mxu0 0.0
      %4753 = vmatprep.subr.mxu0 0.0
      %4754 = vmatpush1.msra.mxu0 0.0
      %4755 = vmatprep.mubr.f32.mxu0 0.0
      %4756 = vmatmul.mubr.f32.gmra.mrb[0].mxu0 %v4616
      %v4757 = vpop.f32.mrb[0].mxu0
      %v4758 = vadd.f32 0.0, %v4757
      %v4759 = vpop.f32.mrb[0].mxu0
      %v4760 = vadd.f32 0.0, %v4759
      %4761 = vdwg.mxu0
      %v4762 = vadd.f32 %v4606, %v4687
      %v4763 = vadd.f32 %v4607, %v4689
      %v4764 = vadd.f32 %v4608, %v4758
      %v4765 = vadd.f32 %v4609, %v4760
      %4766 = vst [vmem:[%s237] sm:$0xff] %v4762
      %4767 = vst [vmem:[%s237 + $0x8] sm:$0xff] %v4763
      %4768 = vst [vmem:[%s237 + $0x10] sm:$0xff] %v4764
      %4769 = vst [vmem:[%s237 + $0x18] sm:$0xff] %v4765
      %v4770 = vld [vmem:[%s2] sm:$0xff]
      %v4771 = vld [vmem:[%s2 + $0x8] sm:$0xff]
      %v4772 = vld [vmem:[%s2 + $0x10] sm:$0xff]
      %v4773 = vld [vmem:[%s2 + $0x18] sm:$0xff]
      %v4774 = vld [vmem:[%s2 + $0x20] sm:$0xff]
      %v4775 = vld [vmem:[%s2 + $0x28] sm:$0xff]
      %v4776 = vld [vmem:[%s2 + $0x30] sm:$0xff]
      %v4777 = vld [vmem:[%s2 + $0x38] sm:$0xff]
      %v4778 = vld [vmem:[%s2 + $0x40] sm:$0xff]
      %v4779 = vld [vmem:[%s2 + $0x48] sm:$0xff]
      %v4780 = vld [vmem:[%s2 + $0x50] sm:$0xff]
      %v4781 = vld [vmem:[%s2 + $0x58] sm:$0xff]
      %v4782 = vld [vmem:[%s2 + $0x60] sm:$0xff]
      %v4783 = vld [vmem:[%s2 + $0x68] sm:$0xff]
      %v4784 = vld [vmem:[%s2 + $0x70] sm:$0xff]
      %v4785 = vld [vmem:[%s2 + $0x78] sm:$0xff]
      %v4786 = vld [vmem:[%s2 + $0x80] sm:$0xff]
      %v4787 = vld [vmem:[%s2 + $0x88] sm:$0xff]
      %v4788 = vld [vmem:[%s2 + $0x90] sm:$0xff]
      %v4789 = vld [vmem:[%s2 + $0x98] sm:$0xff]
      %v4790 = vld [vmem:[%s2 + $0xa0] sm:$0xff]
      %v4791 = vld [vmem:[%s2 + $0xa8] sm:$0xff]
      %v4792 = vld [vmem:[%s2 + $0xb0] sm:$0xff]
      %v4793 = vld [vmem:[%s2 + $0xb8] sm:$0xff]
      %v4794 = vld [vmem:[%s2 + $0xc0] sm:$0xff]
      %v4795 = vld [vmem:[%s2 + $0xc8] sm:$0xff]
      %v4796 = vld [vmem:[%s2 + $0xd0] sm:$0xff]
      %v4797 = vld [vmem:[%s2 + $0xd8] sm:$0xff]
      %v4798 = vld [vmem:[%s2 + $0xe0] sm:$0xff]
      %v4799 = vld [vmem:[%s2 + $0xe8] sm:$0xff]
      %v4800 = vld [vmem:[%s2 + $0xf0] sm:$0xff]
      %v4801 = vld [vmem:[%s2 + $0xf8] sm:$0xff]
      %v4802 = vld [vmem:[%s2 + $0x100] sm:$0xff]
      %v4803 = vld [vmem:[%s2 + $0x108] sm:$0xff]
      %v4804 = vld [vmem:[%s2 + $0x110] sm:$0xff]
      %v4805 = vld [vmem:[%s2 + $0x118] sm:$0xff]
      %v4806 = vld [vmem:[%s2 + $0x120] sm:$0xff]
      %v4807 = vld [vmem:[%s2 + $0x128] sm:$0xff]
      %v4808 = vld [vmem:[%s2 + $0x130] sm:$0xff]
      %v4809 = vld [vmem:[%s2 + $0x138] sm:$0xff]
      %v4810 = vld [vmem:[%s2 + $0x140] sm:$0xff]
      %v4811 = vld [vmem:[%s2 + $0x148] sm:$0xff]
      %v4812 = vld [vmem:[%s2 + $0x150] sm:$0xff]
      %v4813 = vld [vmem:[%s2 + $0x158] sm:$0xff]
      %v4814 = vld [vmem:[%s2 + $0x160] sm:$0xff]
      %v4815 = vld [vmem:[%s2 + $0x168] sm:$0xff]
      %v4816 = vld [vmem:[%s2 + $0x170] sm:$0xff]
      %v4817 = vld [vmem:[%s2 + $0x178] sm:$0xff]
      %v4818 = vld [vmem:[%s2 + $0x180] sm:$0xff]
      %v4819 = vld [vmem:[%s2 + $0x188] sm:$0xff]
      %v4820 = vld [vmem:[%s2 + $0x190] sm:$0xff]
      %v4821 = vld [vmem:[%s2 + $0x198] sm:$0xff]
      %v4822 = vld [vmem:[%s2 + $0x1a0] sm:$0xff]
      %v4823 = vld [vmem:[%s2 + $0x1a8] sm:$0xff]
      %v4824 = vld [vmem:[%s2 + $0x1b0] sm:$0xff]
      %v4825 = vld [vmem:[%s2 + $0x1b8] sm:$0xff]
      %v4826 = vld [vmem:[%s2 + $0x1c0] sm:$0xff]
      %v4827 = vld [vmem:[%s2 + $0x1c8] sm:$0xff]
      %v4828 = vld [vmem:[%s2 + $0x1d0] sm:$0xff]
      %v4829 = vld [vmem:[%s2 + $0x1d8] sm:$0xff]
      %v4830 = vld [vmem:[%s2 + $0x1e0] sm:$0xff]
      %v4831 = vld [vmem:[%s2 + $0x1e8] sm:$0xff]
      %v4832 = vld [vmem:[%s2 + $0x1f0] sm:$0xff]
      %v4833 = vld [vmem:[%s2 + $0x1f8] sm:$0xff]
      %4834 = vmatprep.subr.mxu0 0.0
      %4835 = vmatpush1.msra.mxu0 %v4770
      %4836 = vmatprep.subr.mxu0 0.0
      %4837 = vmatpush1.msra.mxu0 %v4771
      %4838 = vmatprep.subr.mxu0 0.0
      %4839 = vmatpush1.msra.mxu0 %v4772
      %4840 = vmatprep.subr.mxu0 0.0
      %4841 = vmatpush1.msra.mxu0 %v4773
      %4842 = vmatprep.subr.mxu0 0.0
      %4843 = vmatpush1.msra.mxu0 %v4774
      %4844 = vmatprep.subr.mxu0 0.0
      %4845 = vmatpush1.msra.mxu0 %v4775
      %4846 = vmatprep.subr.mxu0 0.0
      %4847 = vmatpush1.msra.mxu0 %v4776
      %4848 = vmatprep.subr.mxu0 0.0
      %4849 = vmatpush1.msra.mxu0 %v4777
      %4850 = vmatprep.subr.mxu0 0.0
      %4851 = vmatpush1.msra.mxu0 %v4778
      %4852 = vmatprep.subr.mxu0 0.0
      %4853 = vmatpush1.msra.mxu0 %v4779
      %4854 = vmatprep.subr.mxu0 0.0
      %4855 = vmatpush1.msra.mxu0 %v4780
      %4856 = vmatprep.subr.mxu0 0.0
      %4857 = vmatpush1.msra.mxu0 %v4781
      %4858 = vmatprep.subr.mxu0 0.0
      %4859 = vmatpush1.msra.mxu0 %v4782
      %4860 = vmatprep.subr.mxu0 0.0
      %4861 = vmatpush1.msra.mxu0 %v4783
      %4862 = vmatprep.subr.mxu0 0.0
      %4863 = vmatpush1.msra.mxu0 %v4784
      %4864 = vmatprep.subr.mxu0 0.0
      %4865 = vmatpush1.msra.mxu0 %v4785
      %4866 = vmatprep.subr.mxu0 0.0
      %4867 = vmatpush1.msra.mxu0 %v4786
      %4868 = vmatprep.subr.mxu0 0.0
      %4869 = vmatpush1.msra.mxu0 %v4787
      %4870 = vmatprep.subr.mxu0 0.0
      %4871 = vmatpush1.msra.mxu0 %v4788
      %4872 = vmatprep.subr.mxu0 0.0
      %4873 = vmatpush1.msra.mxu0 %v4789
      %4874 = vmatprep.subr.mxu0 0.0
      %4875 = vmatpush1.msra.mxu0 %v4790
      %4876 = vmatprep.subr.mxu0 0.0
      %4877 = vmatpush1.msra.mxu0 %v4791
      %4878 = vmatprep.subr.mxu0 0.0
      %4879 = vmatpush1.msra.mxu0 %v4792
      %4880 = vmatprep.subr.mxu0 0.0
      %4881 = vmatpush1.msra.mxu0 %v4793
      %4882 = vmatprep.subr.mxu0 0.0
      %4883 = vmatpush1.msra.mxu0 %v4794
      %4884 = vmatprep.subr.mxu0 0.0
      %4885 = vmatpush1.msra.mxu0 %v4795
      %4886 = vmatprep.subr.mxu0 0.0
      %4887 = vmatpush1.msra.mxu0 %v4796
      %4888 = vmatprep.subr.mxu0 0.0
      %4889 = vmatpush1.msra.mxu0 %v4797
      %4890 = vmatprep.subr.mxu0 0.0
      %4891 = vmatpush1.msra.mxu0 %v4798
      %4892 = vmatprep.subr.mxu0 0.0
      %4893 = vmatpush1.msra.mxu0 %v4799
      %4894 = vmatprep.subr.mxu0 0.0
      %4895 = vmatpush1.msra.mxu0 %v4800
      %4896 = vmatprep.subr.mxu0 0.0
      %4897 = vmatpush1.msra.mxu0 %v4801
      %4898 = vmatprep.mubr.f32.mxu0 %v4763
      %4899 = vmatmul.mubr.f32.gmra.mrb[0].mxu0 %v4762
      %v4900 = vpop.f32.mrb[0].mxu0
      %v4901 = vadd.f32 0.0, %v4900
      %v4902 = vpop.f32.mrb[0].mxu0
      %4903 = vdwg.mxu0
      %4904 = vmatprep.subr.mxu0 0.0
      %4905 = vmatpush1.msra.mxu0 %v4802
      %4906 = vmatprep.subr.mxu0 0.0
      %4907 = vmatpush1.msra.mxu0 %v4803
      %4908 = vmatprep.subr.mxu0 0.0
      %4909 = vmatpush1.msra.mxu0 %v4804
      %4910 = vmatprep.subr.mxu0 0.0
      %4911 = vmatpush1.msra.mxu0 %v4805
      %4912 = vmatprep.subr.mxu0 0.0
      %4913 = vmatpush1.msra.mxu0 %v4806
      %4914 = vmatprep.subr.mxu0 0.0
      %4915 = vmatpush1.msra.mxu0 %v4807
      %4916 = vmatprep.subr.mxu0 0.0
      %4917 = vmatpush1.msra.mxu0 %v4808
      %4918 = vmatprep.subr.mxu0 0.0
      %4919 = vmatpush1.msra.mxu0 %v4809
      %4920 = vmatprep.subr.mxu0 0.0
      %4921 = vmatpush1.msra.mxu0 %v4810
      %4922 = vmatprep.subr.mxu0 0.0
      %4923 = vmatpush1.msra.mxu0 %v4811
      %4924 = vmatprep.subr.mxu0 0.0
      %4925 = vmatpush1.msra.mxu0 %v4812
      %4926 = vmatprep.subr.mxu0 0.0
      %4927 = vmatpush1.msra.mxu0 %v4813
      %4928 = vmatprep.subr.mxu0 0.0
      %4929 = vmatpush1.msra.mxu0 %v4814
      %4930 = vmatprep.subr.mxu0 0.0
      %4931 = vmatpush1.msra.mxu0 %v4815
      %4932 = vmatprep.subr.mxu0 0.0
      %4933 = vmatpush1.msra.mxu0 %v4816
      %4934 = vmatprep.subr.mxu0 0.0
      %4935 = vmatpush1.msra.mxu0 %v4817
      %4936 = vmatprep.subr.mxu0 0.0
      %4937 = vmatpush1.msra.mxu0 %v4818
      %4938 = vmatprep.subr.mxu0 0.0
      %4939 = vmatpush1.msra.mxu0 %v4819
      %4940 = vmatprep.subr.mxu0 0.0
      %4941 = vmatpush1.msra.mxu0 %v4820
      %4942 = vmatprep.subr.mxu0 0.0
      %4943 = vmatpush1.msra.mxu0 %v4821
      %4944 = vmatprep.subr.mxu0 0.0
      %4945 = vmatpush1.msra.mxu0 %v4822
      %4946 = vmatprep.subr.mxu0 0.0
      %4947 = vmatpush1.msra.mxu0 %v4823
      %4948 = vmatprep.subr.mxu0 0.0
      %4949 = vmatpush1.msra.mxu0 %v4824
      %4950 = vmatprep.subr.mxu0 0.0
      %4951 = vmatpush1.msra.mxu0 %v4825
      %4952 = vmatprep.subr.mxu0 0.0
      %4953 = vmatpush1.msra.mxu0 %v4826
      %4954 = vmatprep.subr.mxu0 0.0
      %4955 = vmatpush1.msra.mxu0 %v4827
      %4956 = vmatprep.subr.mxu0 0.0
      %4957 = vmatpush1.msra.mxu0 %v4828
      %4958 = vmatprep.subr.mxu0 0.0
      %4959 = vmatpush1.msra.mxu0 %v4829
      %4960 = vmatprep.subr.mxu0 0.0
      %4961 = vmatpush1.msra.mxu0 %v4830
      %4962 = vmatprep.subr.mxu0 0.0
      %4963 = vmatpush1.msra.mxu0 %v4831
      %4964 = vmatprep.subr.mxu0 0.0
      %4965 = vmatpush1.msra.mxu0 %v4832
      %4966 = vmatprep.subr.mxu0 0.0
      %4967 = vmatpush1.msra.mxu0 %v4833
      %4968 = vmatprep.mubr.f32.mxu0 %v4765
      %4969 = vmatmul.mubr.f32.gmra.mrb[0].mxu0 %v4764
      %v4970 = vpop.f32.mrb[0].mxu0
      %v4971 = vadd.f32 %v4901, %v4970
      %v4972 = vpop.f32.mrb[0].mxu0
      %4973 = vdwg.mxu0
      %vm4974 = vcmask 7168
      %4975 = vst.msk [vmem:[%s241] sm:$0xff] %vm4974, %v4971
      %v4976 = vmul.f32 %v4762, %v4762
      %v4977 = vmul.f32 %v4763, %v4763
      %v4978 = vmul.f32 %v4764, %v4764
      %v4979 = vmul.f32 %v4765, %v4765
      %4980 = vmatprep.subr.mxu0 0.0
      %4981 = vmatpush1.msra.mxu0 %v4770
      %4982 = vmatprep.subr.mxu0 0.0
      %4983 = vmatpush1.msra.mxu0 %v4771
      %4984 = vmatprep.subr.mxu0 0.0
      %4985 = vmatpush1.msra.mxu0 %v4772
      %4986 = vmatprep.subr.mxu0 0.0
      %4987 = vmatpush1.msra.mxu0 %v4773
      %4988 = vmatprep.subr.mxu0 0.0
      %4989 = vmatpush1.msra.mxu0 %v4774
      %4990 = vmatprep.subr.mxu0 0.0
      %4991 = vmatpush1.msra.mxu0 %v4775
      %4992 = vmatprep.subr.mxu0 0.0
      %4993 = vmatpush1.msra.mxu0 %v4776
      %4994 = vmatprep.subr.mxu0 0.0
      %4995 = vmatpush1.msra.mxu0 %v4777
      %4996 = vmatprep.subr.mxu0 0.0
      %4997 = vmatpush1.msra.mxu0 %v4778
      %4998 = vmatprep.subr.mxu0 0.0
      %4999 = vmatpush1.msra.mxu0 %v4779
      %5000 = vmatprep.subr.mxu0 0.0
      %5001 = vmatpush1.msra.mxu0 %v4780
      %5002 = vmatprep.subr.mxu0 0.0
      %5003 = vmatpush1.msra.mxu0 %v4781
      %5004 = vmatprep.subr.mxu0 0.0
      %5005 = vmatpush1.msra.mxu0 %v4782
      %5006 = vmatprep.subr.mxu0 0.0
      %5007 = vmatpush1.msra.mxu0 %v4783
      %5008 = vmatprep.subr.mxu0 0.0
      %5009 = vmatpush1.msra.mxu0 %v4784
      %5010 = vmatprep.subr.mxu0 0.0
      %5011 = vmatpush1.msra.mxu0 %v4785
      %5012 = vmatprep.subr.mxu0 0.0
      %5013 = vmatpush1.msra.mxu0 %v4786
      %5014 = vmatprep.subr.mxu0 0.0
      %5015 = vmatpush1.msra.mxu0 %v4787
      %5016 = vmatprep.subr.mxu0 0.0
      %5017 = vmatpush1.msra.mxu0 %v4788
      %5018 = vmatprep.subr.mxu0 0.0
      %5019 = vmatpush1.msra.mxu0 %v4789
      %5020 = vmatprep.subr.mxu0 0.0
      %5021 = vmatpush1.msra.mxu0 %v4790
      %5022 = vmatprep.subr.mxu0 0.0
      %5023 = vmatpush1.msra.mxu0 %v4791
      %5024 = vmatprep.subr.mxu0 0.0
      %5025 = vmatpush1.msra.mxu0 %v4792
      %5026 = vmatprep.subr.mxu0 0.0
      %5027 = vmatpush1.msra.mxu0 %v4793
      %5028 = vmatprep.subr.mxu0 0.0
      %5029 = vmatpush1.msra.mxu0 %v4794
      %5030 = vmatprep.subr.mxu0 0.0
      %5031 = vmatpush1.msra.mxu0 %v4795
      %5032 = vmatprep.subr.mxu0 0.0
      %5033 = vmatpush1.msra.mxu0 %v4796
      %5034 = vmatprep.subr.mxu0 0.0
      %5035 = vmatpush1.msra.mxu0 %v4797
      %5036 = vmatprep.subr.mxu0 0.0
      %5037 = vmatpush1.msra.mxu0 %v4798
      %5038 = vmatprep.subr.mxu0 0.0
      %5039 = vmatpush1.msra.mxu0 %v4799
      %5040 = vmatprep.subr.mxu0 0.0
      %5041 = vmatpush1.msra.mxu0 %v4800
      %5042 = vmatprep.subr.mxu0 0.0
      %5043 = vmatpush1.msra.mxu0 %v4801
      %5044 = vmatprep.mubr.f32.mxu0 %v4977
      %5045 = vmatmul.mubr.f32.gmra.mrb[0].mxu0 %v4976
      %v5046 = vpop.f32.mrb[0].mxu0
      %v5047 = vadd.f32 0.0, %v5046
      %v5048 = vpop.f32.mrb[0].mxu0
      %5049 = vdwg.mxu0
      %5050 = vmatprep.subr.mxu0 0.0
      %5051 = vmatpush1.msra.mxu0 %v4802
      %5052 = vmatprep.subr.mxu0 0.0
      %5053 = vmatpush1.msra.mxu0 %v4803
      %5054 = vmatprep.subr.mxu0 0.0
      %5055 = vmatpush1.msra.mxu0 %v4804
      %5056 = vmatprep.subr.mxu0 0.0
      %5057 = vmatpush1.msra.mxu0 %v4805
      %5058 = vmatprep.subr.mxu0 0.0
      %5059 = vmatpush1.msra.mxu0 %v4806
      %5060 = vmatprep.subr.mxu0 0.0
      %5061 = vmatpush1.msra.mxu0 %v4807
      %5062 = vmatprep.subr.mxu0 0.0
      %5063 = vmatpush1.msra.mxu0 %v4808
      %5064 = vmatprep.subr.mxu0 0.0
      %5065 = vmatpush1.msra.mxu0 %v4809
      %5066 = vmatprep.subr.mxu0 0.0
      %5067 = vmatpush1.msra.mxu0 %v4810
      %5068 = vmatprep.subr.mxu0 0.0
      %5069 = vmatpush1.msra.mxu0 %v4811
      %5070 = vmatprep.subr.mxu0 0.0
      %5071 = vmatpush1.msra.mxu0 %v4812
      %5072 = vmatprep.subr.mxu0 0.0
      %5073 = vmatpush1.msra.mxu0 %v4813
      %5074 = vmatprep.subr.mxu0 0.0
      %5075 = vmatpush1.msra.mxu0 %v4814
      %5076 = vmatprep.subr.mxu0 0.0
      %5077 = vmatpush1.msra.mxu0 %v4815
      %5078 = vmatprep.subr.mxu0 0.0
      %5079 = vmatpush1.msra.mxu0 %v4816
      %5080 = vmatprep.subr.mxu0 0.0
      %5081 = vmatpush1.msra.mxu0 %v4817
      %5082 = vmatprep.subr.mxu0 0.0
      %5083 = vmatpush1.msra.mxu0 %v4818
      %5084 = vmatprep.subr.mxu0 0.0
      %5085 = vmatpush1.msra.mxu0 %v4819
      %5086 = vmatprep.subr.mxu0 0.0
      %5087 = vmatpush1.msra.mxu0 %v4820
      %5088 = vmatprep.subr.mxu0 0.0
      %5089 = vmatpush1.msra.mxu0 %v4821
      %5090 = vmatprep.subr.mxu0 0.0
      %5091 = vmatpush1.msra.mxu0 %v4822
      %5092 = vmatprep.subr.mxu0 0.0
      %5093 = vmatpush1.msra.mxu0 %v4823
      %5094 = vmatprep.subr.mxu0 0.0
      %5095 = vmatpush1.msra.mxu0 %v4824
      %5096 = vmatprep.subr.mxu0 0.0
      %5097 = vmatpush1.msra.mxu0 %v4825
      %5098 = vmatprep.subr.mxu0 0.0
      %5099 = vmatpush1.msra.mxu0 %v4826
      %5100 = vmatprep.subr.mxu0 0.0
      %5101 = vmatpush1.msra.mxu0 %v4827
      %5102 = vmatprep.subr.mxu0 0.0
      %5103 = vmatpush1.msra.mxu0 %v4828
      %5104 = vmatprep.subr.mxu0 0.0
      %5105 = vmatpush1.msra.mxu0 %v4829
      %5106 = vmatprep.subr.mxu0 0.0
      %5107 = vmatpush1.msra.mxu0 %v4830
      %5108 = vmatprep.subr.mxu0 0.0
      %5109 = vmatpush1.msra.mxu0 %v4831
      %5110 = vmatprep.subr.mxu0 0.0
      %5111 = vmatpush1.msra.mxu0 %v4832
      %5112 = vmatprep.subr.mxu0 0.0
      %5113 = vmatpush1.msra.mxu0 %v4833
      %5114 = vmatprep.mubr.f32.mxu0 %v4979
      %5115 = vmatmul.mubr.f32.gmra.mrb[0].mxu0 %v4978
      %v5116 = vpop.f32.mrb[0].mxu0
      %v5117 = vadd.f32 %v5047, %v5116
      %v5118 = vpop.f32.mrb[0].mxu0
      %5119 = vdwg.mxu0
      %5120 = vst.msk [vmem:[%s245] sm:$0xff] %vm4974, %v5117
      %p5121 = scmp.lt.s32.totalorder %s17, 1
      %s5122 = scalar_select %p5121, %s17, 1
      %s5123 = smul.addr %s5122, 4
      %s5124 = smul.addr %s5123, 8
      %s5125 = scalar_lea.vmem %s3, %s5124
      %p5126 = scmp.lt.s32.totalorder %s17, 1
      %s5127 = scalar_select %p5126, %s17, 1
      %s5128 = smul.addr %s5127, 8
      %s5129 = scalar_lea.vmem %s4, %s5128
      %p5130 = scmp.lt.s32.totalorder %s17, 1
      %s5131 = scalar_select %p5130, %s17, 1
      %s5132 = smul.addr %s5131, 8
      %s5133 = scalar_lea.vmem %s5, %s5132
      // Predicated region
      $region33: #{conv_unit_forward.2} parent=31 // pred_check
        %p5134 = pneg %p103
      $region34: #{conv_unit_forward.2} parent=31 // pred_check_branch
        %5136 = sbr.rel (%p5134) target = $region36
      $region35: #{conv_unit_forward.2} parent=31 // pred_region
        _
      $region36: #{conv_unit_forward.2} parent=31 // pred_fallthru
        _
      // Predicated region
      $region37: #{conv_unit_forward.2} parent=31 // pred_check
        %p5137 = pneg %p129
      $region38: #{conv_unit_forward.2} parent=31 // pred_check_branch
        %5139 = sbr.rel (%p5137) target = $region40
      $region39: #{conv_unit_forward.2} parent=31 // pred_region
        _
      $region40: #{conv_unit_forward.2} parent=31 // pred_fallthru
        _
      // Predicated region
      $region41: #{conv_unit_forward.2} parent=31 // pred_check
        %p5140 = pneg %p155
      $region42: #{conv_unit_forward.2} parent=31 // pred_check_branch
        %5142 = sbr.rel (%p5140) target = $region44
      $region43: #{conv_unit_forward.2} parent=31 // pred_region
        _
      $region44: #{conv_unit_forward.2} parent=31 // pred_fallthru
        _
    $region32: #{conv_unit_forward.2} parent=5 // pred_fallthru
      _
    %p5143 = scmp.le.s32.totalorder 2, %s12
    // Predicated region
    $region45: #{conv_unit_forward.2} parent=5 // pred_check
      %p5144 = pneg %p5143
    $region46: #{conv_unit_forward.2} parent=5 // pred_check_branch
      %5146 = sbr.rel (%p5144) target = $region48
    $region47: #{conv_unit_forward.2} parent=5 // pred_region
      %s5147 = ssub.s32 %s12, 2
      // Predicated region
      $region49: #{conv_unit_forward.2} parent=47 // pred_check
        %p5148 = pneg %p109
      $region50: #{conv_unit_forward.2} parent=47 // pred_check_branch
        %5150 = sbr.rel (%p5148) target = $region52
      $region51: #{conv_unit_forward.2} parent=47 // pred_region
        %p5151 = scmp.lt.s32.totalorder %s18, 1
        %s5152 = scalar_select %p5151, %s18, 1
        %s5153 = smul.addr %s5152, 4
        %s5154 = smul.addr %s5153, 8
        %s5155 = scalar_lea.vmem %s3, %s5154
      $region52: #{conv_unit_forward.2} parent=47 // pred_fallthru
        _
      // Predicated region
      $region53: #{conv_unit_forward.2} parent=47 // pred_check
        %p5156 = pneg %p135
      $region54: #{conv_unit_forward.2} parent=47 // pred_check_branch
        %5158 = sbr.rel (%p5156) target = $region56
      $region55: #{conv_unit_forward.2} parent=47 // pred_region
        %p5159 = scmp.lt.s32.totalorder %s18, 1
        %s5160 = scalar_select %p5159, %s18, 1
        %s5161 = smul.addr %s5160, 8
        %s5162 = scalar_lea.vmem %s4, %s5161
      $region56: #{conv_unit_forward.2} parent=47 // pred_fallthru
        _
      // Predicated region
      $region57: #{conv_unit_forward.2} parent=47 // pred_check
        %p5163 = pneg %p161
      $region58: #{conv_unit_forward.2} parent=47 // pred_check_branch
        %5165 = sbr.rel (%p5163) target = $region60
      $region59: #{conv_unit_forward.2} parent=47 // pred_region
        %p5166 = scmp.lt.s32.totalorder %s18, 1
        %s5167 = scalar_select %p5166, %s18, 1
        %s5168 = smul.addr %s5167, 8
        %s5169 = scalar_lea.vmem %s5, %s5168
      $region60: #{conv_unit_forward.2} parent=47 // pred_fallthru
        _
    $region48: #{conv_unit_forward.2} parent=5 // pred_fallthru
      _
  $region6: #{conv_unit_forward.2} parent=0 // loop_footer
    %s16 = sadd.s32 1, %s12
  $region7: #{conv_unit_forward.2} parent=0 // loop_footer_branch
    %11 = sbr.rel target = $region3
  $region8: #{conv_unit_forward.2} parent=0 // loop_exit
    _

</llo_original>
